<compile_context>
chip_gen: v5e
topology: v5e:2x2
jax: 0.10.0
libtpu: 0.0.40
codegen_flags: <defaults>
</compile_context>

<pallas_src>
import math
from functools import partial

import jax
import jax.numpy as jnp
from jax.experimental import pallas as pl
from jax.experimental.pallas import tpu as pltpu


def _nbytes(shape, dtype):
    n = 1
    for d in shape:
        n *= int(d)
    return n * jnp.dtype(dtype).itemsize


def _vmem_limit(*block_bytes):
    # Everything (including constant-index weight/bias blocks) gets
    # double-buffered by the pipeline, so count each block twice and add slack
    # for epilogue temporaries.  Cap at 40 MiB so tiles stay safe on v7x's
    # 64 MiB physical VMEM (v5e/v6e have 128 MiB and are never the binding
    # constraint at these budgets).
    total = 2 * sum(int(b) for b in block_bytes) + (4 << 20)
    return int(max(16 << 20, min(total, 40 << 20)))


def _tile_m(M):
    """M-tile: multiple of 16 (safe sublane granularity for bf16 blocks),
    <= 512, dividing M, preferring >= 2 grid steps so both v7x TensorCores
    get work.  Falls back to the largest divisor, then to full M."""
    cands = (512, 256, 128, 64, 32, 16)
    for t in cands:
        if M % t == 0 and M // t >= 2:
            return t
    for t in cands:
        if M % t == 0:
            return t
    return M


# --------------------------- Pallas kernels ---------------------------------

def _linear_kernel(x_ref, w_ref, b_ref, o_ref, *, activation):
    x = x_ref[...].astype(jnp.bfloat16)
    y = jnp.dot(x, w_ref[...], preferred_element_type=jnp.float32) + b_ref[...]
    if activation == "gelu":
        # TODO(synk): tanh-approx GELU; HF BERT default is exact erf GELU.
        c = math.sqrt(2.0 / math.pi)
        y = 0.5 * y * (1.0 + jnp.tanh(c * (y + 0.044715 * y * y * y)))
    o_ref[...] = y.astype(o_ref.dtype)


def linear(x, w, b, activation=None, out_dtype=jnp.bfloat16):
    """y = act(x @ w + b).  x:(M,K), w:(K,N) bf16, b:(N,) f32 -> (M,N) out_dtype."""
    M, K = x.shape
    _, N = w.shape
    tm = _tile_m(M)
    vmem = _vmem_limit(_nbytes((tm, K), x.dtype), _nbytes((K, N), w.dtype),
                       _nbytes((1, N), jnp.float32), _nbytes((tm, N), out_dtype))
    return pl.pallas_call(
        partial(_linear_kernel, activation=activation),
        out_shape=jax.ShapeDtypeStruct((M, N), out_dtype),
        grid=(M // tm,),
        in_specs=[pl.BlockSpec((tm, K), lambda i: (i, 0)),
                  pl.BlockSpec((K, N), lambda i: (0, 0)),
                  pl.BlockSpec((1, N), lambda i: (0, 0))],
        out_specs=pl.BlockSpec((tm, N), lambda i: (i, 0)),
        compiler_params=pltpu.CompilerParams(
            dimension_semantics=("parallel",),
            vmem_limit_bytes=vmem),
    )(x, w, b.reshape(1, N))


def _linear_res_ln_kernel(x_ref, w_ref, b_ref, r_ref, g_ref, bt_ref, o_ref, *, eps):
    # y = LayerNorm(x @ w + b + residual) * gamma + beta   (f32 LN math)
    x = x_ref[...].astype(jnp.bfloat16)
    y = jnp.dot(x, w_ref[...], preferred_element_type=jnp.float32) + b_ref[...]
    y = y + r_ref[...].astype(jnp.float32)
    mu = jnp.mean(y, axis=-1, keepdims=True)
    d = y - mu
    var = jnp.mean(d * d, axis=-1, keepdims=True)
    yn = d * jax.lax.rsqrt(var + eps)
    o_ref[...] = (yn * g_ref[...] + bt_ref[...]).astype(o_ref.dtype)


def linear_res_ln(x, w, b, residual, gamma, beta, eps=1e-12):
    """Fused projection + residual add + LayerNorm epilogue -> f32 (M, N)."""
    M, K = x.shape
    _, N = w.shape
    tm = _tile_m(M)
    vmem = _vmem_limit(_nbytes((tm, K), x.dtype), _nbytes((K, N), w.dtype),
                       3 * _nbytes((1, N), jnp.float32),
                       _nbytes((tm, N), residual.dtype),
                       _nbytes((tm, N), jnp.float32))
    return pl.pallas_call(
        partial(_linear_res_ln_kernel, eps=eps),
        out_shape=jax.ShapeDtypeStruct((M, N), jnp.float32),
        grid=(M // tm,),
        in_specs=[pl.BlockSpec((tm, K), lambda i: (i, 0)),
                  pl.BlockSpec((K, N), lambda i: (0, 0)),
                  pl.BlockSpec((1, N), lambda i: (0, 0)),
                  pl.BlockSpec((tm, N), lambda i: (i, 0)),
                  pl.BlockSpec((1, N), lambda i: (0, 0)),
                  pl.BlockSpec((1, N), lambda i: (0, 0))],
        out_specs=pl.BlockSpec((tm, N), lambda i: (i, 0)),
        compiler_params=pltpu.CompilerParams(
            dimension_semantics=("parallel",),
            vmem_limit_bytes=vmem),
    )(x, w, b.reshape(1, N), residual, gamma.reshape(1, N), beta.reshape(1, N))


def _linear_res_ln_qa_kernel(x_ref, w_ref, b_ref, r_ref, g_ref, bt_ref,
                             qw_ref, qb_ref, o_ref, *, eps):
    # Last-layer epilogue: proj + residual + LayerNorm, then the lane-padded
    # QA head matmul on the normalized output (second matmul, single launch).
    x = x_ref[...].astype(jnp.bfloat16)
    y = jnp.dot(x, w_ref[...], preferred_element_type=jnp.float32) + b_ref[...]
    y = y + r_ref[...].astype(jnp.float32)
    mu = jnp.mean(y, axis=-1, keepdims=True)
    d = y - mu
    var = jnp.mean(d * d, axis=-1, keepdims=True)
    hn = d * jax.lax.rsqrt(var + eps) * g_ref[...] + bt_ref[...]
    logits = jnp.dot(hn.astype(jnp.bfloat16), qw_ref[...],
                     preferred_element_type=jnp.float32) + qb_ref[...]
    o_ref[...] = logits.astype(o_ref.dtype)


def linear_res_ln_qa(x, w, b, residual, gamma, beta, qa_w, qa_b, eps=1e-12):
    """Final layer: fused proj + residual + LayerNorm + QA head -> (M, P) logits."""
    M, K = x.shape
    _, N = w.shape
    P = qa_w.shape[1]
    tm = _tile_m(M)
    vmem = _vmem_limit(_nbytes((tm, K), x.dtype), _nbytes((K, N), w.dtype),
                       3 * _nbytes((1, N), jnp.float32),
                       _nbytes((tm, N), residual.dtype),
                       _nbytes((N, P), qa_w.dtype), _nbytes((1, P), jnp.float32),
                       _nbytes((tm, P), jnp.float32))
    return pl.pallas_call(
        partial(_linear_res_ln_qa_kernel, eps=eps),
        out_shape=jax.ShapeDtypeStruct((M, P), jnp.float32),
        grid=(M // tm,),
        in_specs=[pl.BlockSpec((tm, K), lambda i: (i, 0)),
                  pl.BlockSpec((K, N), lambda i: (0, 0)),
                  pl.BlockSpec((1, N), lambda i: (0, 0)),
                  pl.BlockSpec((tm, N), lambda i: (i, 0)),
                  pl.BlockSpec((1, N), lambda i: (0, 0)),
                  pl.BlockSpec((1, N), lambda i: (0, 0)),
                  pl.BlockSpec((N, P), lambda i: (0, 0)),
                  pl.BlockSpec((1, P), lambda i: (0, 0))],
        out_specs=pl.BlockSpec((tm, P), lambda i: (i, 0)),
        compiler_params=pltpu.CompilerParams(
            dimension_semantics=("parallel",),
            vmem_limit_bytes=vmem),
    )(x, w, b.reshape(1, N), residual, gamma.reshape(1, N), beta.reshape(1, N),
      qa_w, qa_b.reshape(1, P))


def _ln_kernel(x_ref, g_ref, b_ref, o_ref, *, eps):
    x = x_ref[...].astype(jnp.float32)
    mu = jnp.mean(x, axis=-1, keepdims=True)
    d = x - mu
    var = jnp.mean(d * d, axis=-1, keepdims=True)
    o_ref[...] = (d * jax.lax.rsqrt(var + eps) * g_ref[...] + b_ref[...]).astype(o_ref.dtype)


def layer_norm(x, gamma, beta, eps=1e-12):
    M, H = x.shape
    tm = _tile_m(M)
    vmem = _vmem_limit(2 * _nbytes((tm, H), jnp.float32), 2 * _nbytes((1, H), jnp.float32))
    return pl.pallas_call(
        partial(_ln_kernel, eps=eps),
        out_shape=jax.ShapeDtypeStruct((M, H), jnp.float32),
        grid=(M // tm,),
        in_specs=[pl.BlockSpec((tm, H), lambda i: (i, 0)),
                  pl.BlockSpec((1, H), lambda i: (0, 0)),
                  pl.BlockSpec((1, H), lambda i: (0, 0))],
        out_specs=pl.BlockSpec((tm, H), lambda i: (i, 0)),
        compiler_params=pltpu.CompilerParams(
            dimension_semantics=("parallel",),
            vmem_limit_bytes=vmem),
    )(x, gamma.reshape(1, H), beta.reshape(1, H))


def _qkv_attn_kernel(x_ref, w_ref, b_ref, bias_ref, o_ref, ctx_scratch,
                     *, num_heads, head_dim, hidden, scale):
    # One batch per grid step.  The QKV projection runs in-kernel on the
    # (S, H) activation block, so q/k/v never touch HBM.
    x = x_ref[...].astype(jnp.bfloat16)                                  # (S, H)
    qkv = (jnp.dot(x, w_ref[...], preferred_element_type=jnp.float32)
           + b_ref[...]).astype(jnp.bfloat16)                            # (S, 3H)
    q = qkv[:, :hidden]
    k = qkv[:, hidden:2 * hidden]
    v = qkv[:, 2 * hidden:]

    # Heads batched into one pair of MXU calls: operands shaped (nH, S, D).
    qh = jnp.stack([q[:, h * head_dim:(h + 1) * head_dim] for h in range(num_heads)])
    kh = jnp.stack([k[:, h * head_dim:(h + 1) * head_dim] for h in range(num_heads)])
    vh = jnp.stack([v[:, h * head_dim:(h + 1) * head_dim] for h in range(num_heads)])

    bias = bias_ref[...]                                                 # (1, S)
    s = jax.lax.dot_general(qh, kh, (((2,), (2,)), ((0,), (0,))),
                            preferred_element_type=jnp.float32)          # (nH, S, S)
    s = s * scale + bias[None, :, :]
    s = s - jnp.max(s, axis=-1, keepdims=True)
    p = jnp.exp(s)
    p = p * pl.reciprocal(jnp.sum(p, axis=-1, keepdims=True), approx=True)
    ctx = jax.lax.dot_general(p.astype(jnp.bfloat16), vh,
                              (((2,), (1,)), ((0,), (0,))),
                              preferred_element_type=jnp.float32)        # (nH, S, D)

    # Assemble the (S, H) context in VMEM scratch, then ONE lane-dense
    # unmasked store to the output block (no per-head masked partial stores).
    for h in range(num_heads):
        lo = h * head_dim
        ctx_scratch[:, lo:lo + head_dim] = ctx[h].astype(ctx_scratch.dtype)
    o_ref[...] = ctx_scratch[...]
    # TODO(synk): for S >= ~512 switch to a flash-style KV-tiled online softmax.


def qkv_attention(h, w_qkv, b_qkv, bias, num_heads):
    """Fused QKV projection + multi-head self-attention.

    h: (B, S, H) f32, w_qkv: (H, 3H) bf16, b_qkv: (3H,) f32, bias: (B, 1, S) f32
    -> (B, S, H) bf16 context.
    """
    B, S, H = h.shape
    D = H // num_heads
    scale = 1.0 / math.sqrt(D)
    vmem = _vmem_limit(_nbytes((S, H), h.dtype), _nbytes((H, 3 * H), w_qkv.dtype),
                       _nbytes((1, 3 * H), jnp.float32), _nbytes((1, S), jnp.float32),
                       _nbytes((S, H), jnp.bfloat16),          # output block
                       _nbytes((S, H), jnp.bfloat16),          # scratch
                       4 * _nbytes((S, 3 * H), jnp.float32),   # qkv / head temps
                       2 * num_heads * S * S * 4)              # scores + probs
    qkv_spec = pl.BlockSpec((pl.Squeezed(), S, H), lambda b: (b, 0, 0))
    return pl.pallas_call(
        partial(_qkv_attn_kernel, num_heads=num_heads, head_dim=D,
                hidden=H, scale=scale),
        out_shape=jax.ShapeDtypeStruct((B, S, H), jnp.bfloat16),
        grid=(B,),
        in_specs=[qkv_spec,
                  pl.BlockSpec((H, 3 * H), lambda b: (0, 0)),
                  pl.BlockSpec((1, 3 * H), lambda b: (0, 0)),
                  pl.BlockSpec((pl.Squeezed(), 1, S), lambda b: (b, 0, 0))],
        out_specs=pl.BlockSpec((pl.Squeezed(), S, H), lambda b: (b, 0, 0)),
        scratch_shapes=[pltpu.VMEM((S, H), jnp.bfloat16)],
        compiler_params=pltpu.CompilerParams(
            dimension_semantics=("parallel",),
            vmem_limit_bytes=vmem),
    )(h, w_qkv, b_qkv.reshape(1, 3 * H), bias)


# --------------------------- Model (glue + params) --------------------------

class Config:
    vocab_size = 100
    type_vocab_size = 2
    max_position_embeddings = 32
    hidden_size = 32
    num_attention_heads = 2
    intermediate_size = 64
    num_hidden_layers = 2


QA_PAD = 128  # lane-pad the (H -> 2) QA head to a full 128-lane output


def init_params(cfg, key):
    def nrm(k, shape):
        return 0.02 * jax.random.normal(k, shape, dtype=jnp.float32)

    keys = iter(jax.random.split(key, 64))
    H, I = cfg.hidden_size, cfg.intermediate_size

    qa_w = nrm(next(keys), (H, 2))
    qa_w_pad = jnp.pad(qa_w, ((0, 0), (0, QA_PAD - 2)))

    p = {
        "word_emb": nrm(next(keys), (cfg.vocab_size, H)),
        "pos_emb": nrm(next(keys), (cfg.max_position_embeddings, H)),
        "type_emb": nrm(next(keys), (cfg.type_vocab_size, H)),
        "emb_ln_g": jnp.ones((H,), jnp.float32),
        "emb_ln_b": jnp.zeros((H,), jnp.float32),
        "qa_w": qa_w_pad.astype(jnp.bfloat16),      # bf16 weights for the MXU
        "qa_b": jnp.zeros((QA_PAD,), jnp.float32),
        "layers": [],
    }
    for _ in range(cfg.num_hidden_layers):
        # Q, K, V projection weights fused into one (H, 3H) matmul.
        w_qkv = jnp.concatenate(
            [nrm(next(keys), (H, H)), nrm(next(keys), (H, H)), nrm(next(keys), (H, H))],
            axis=1)
        p["layers"].append({
            "w_qkv": w_qkv.astype(jnp.bfloat16),
            "b_qkv": jnp.zeros((3 * H,), jnp.float32),
            "wo": nrm(next(keys), (H, H)).astype(jnp.bfloat16),
            "bo": jnp.zeros((H,), jnp.float32),
            "ln1_g": jnp.ones((H,), jnp.float32), "ln1_b": jnp.zeros((H,), jnp.float32),
            "w1": nrm(next(keys), (H, I)).astype(jnp.bfloat16),
            "b1": jnp.zeros((I,), jnp.float32),
            "w2": nrm(next(keys), (I, H)).astype(jnp.bfloat16),
            "b2": jnp.zeros((H,), jnp.float32),
            "ln2_g": jnp.ones((H,), jnp.float32), "ln2_b": jnp.zeros((H,), jnp.float32),
        })
    return p


def qa_forward(params, cfg, input_ids, token_type_ids, attention_mask):
    B, S = input_ids.shape
    H = cfg.hidden_size
    nH = cfg.num_attention_heads
    M = B * S

    # --- embeddings (gathers are JAX glue, LayerNorm in Pallas) ---
    pos_ids = jnp.arange(S)
    emb = (params["word_emb"][input_ids]
           + params["pos_emb"][pos_ids][None, :, :]
           + params["type_emb"][token_type_ids]).reshape(M, H)
    h = layer_norm(emb, params["emb_ln_g"], params["emb_ln_b"])          # f32 (M, H)

    # --- additive attention-mask bias (BERT convention) ---
    bias = ((1.0 - attention_mask.astype(jnp.float32)) * -10000.0).reshape(B, 1, S)

    n_layers = len(params["layers"])
    logits = None
    for li, lp in enumerate(params["layers"]):
        # fused QKV projection + attention: one launch, qkv never hits HBM
        ctx = qkv_attention(h.reshape(B, S, H), lp["w_qkv"], lp["b_qkv"],
                            bias, nH).reshape(M, H)                       # bf16

        # fused: attn output proj + residual + LayerNorm  (f32 residual stream)
        h = linear_res_ln(ctx, lp["wo"], lp["bo"], h, lp["ln1_g"], lp["ln1_b"])

        # FFN: intermediate (GELU fused, bf16 storage), then fused epilogue
        ff = linear(h, lp["w1"], lp["b1"], activation="gelu", out_dtype=jnp.bfloat16)

        if li + 1 < n_layers:
            h = linear_res_ln(ff, lp["w2"], lp["b2"], h, lp["ln2_g"], lp["ln2_b"])
        else:
            # last layer: fold the lane-padded QA head into the LN epilogue
            logits = linear_res_ln_qa(ff, lp["w2"], lp["b2"], h,
                                      lp["ln2_g"], lp["ln2_b"],
                                      params["qa_w"], params["qa_b"])     # (M, 128)

    logits = logits[:, :2].reshape(B, S, 2)
    start_logits = logits[..., 0]
    end_logits = logits[..., 1]
    return start_logits, end_logits


# ------------------------------- main ----------------------------------------

if __name__ == "__main__":
    cfg = Config()
    B, S = 2, 16   # S=16 keeps M=B*S=32 so parallel grids get >=2 steps with 16-row tiles

    key = jax.random.PRNGKey(0)
    k_param, k_ids = jax.random.split(key, 2)

    params = init_params(cfg, k_param)

    input_ids = jax.random.randint(k_ids, (B, S), 0, cfg.vocab_size, dtype=jnp.int32)
    token_type_ids = jnp.concatenate(
        [jnp.zeros((B, S // 2), jnp.int32), jnp.ones((B, S // 2), jnp.int32)], axis=1)
    attention_mask = jnp.ones((B, S), jnp.int32).at[:, -2:].set(0)  # last 2 tokens padded

    forward = jax.jit(lambda p, ii, tt, am: qa_forward(p, cfg, ii, tt, am))

    start_logits, end_logits = forward(params, input_ids, token_type_ids, attention_mask)
    jax.block_until_ready((start_logits, end_logits))

    assert start_logits.shape == (B, S) and end_logits.shape == (B, S)
    assert bool(jnp.all(jnp.isfinite(start_logits))) and bool(jnp.all(jnp.isfinite(end_logits)))
    print("KERNEL_OK")
</pallas_src>

<mosaic_0001>
module attributes {stable_mosaic.version = 11 : i64} {
  func.func @_linear_kernel(%arg0: i32, %arg1: memref<16x32xf32, #tpu.memory_space<vmem>>, %arg2: memref<32x64xbf16, #tpu.memory_space<vmem>>, %arg3: memref<1x64xf32, #tpu.memory_space<vmem>>, %arg4: memref<16x64xbf16, #tpu.memory_space<vmem>>) attributes {dimension_semantics = [#tpu.dimension_semantics<parallel>], iteration_bounds = array<i64: 2>, scalar_prefetch = 0 : i64, scratch_operands = 0 : i64, tpu.core_type = #tpu.core_type<tc>, window_params = [{transform_indices = @transform_0, window_bounds = array<i64: 16, 32>}, {pipeline_mode = #tpu.pipeline_mode<synchronous>, transform_indices = @transform_1, window_bounds = array<i64: 32, 64>}, {pipeline_mode = #tpu.pipeline_mode<synchronous>, transform_indices = @transform_2, window_bounds = array<i64: 1, 64>}, {transform_indices = @transform_3, window_bounds = array<i64: 16, 64>}]} {
    %c0 = arith.constant 0 : index
    %c0_0 = arith.constant 0 : index
    %0 = vector.load %arg1[%c0, %c0_0] : memref<16x32xf32, #tpu.memory_space<vmem>>, vector<16x32xf32>
    %1 = arith.truncf %0 : vector<16x32xf32> to vector<16x32xbf16>
    %c0_1 = arith.constant 0 : index
    %c0_2 = arith.constant 0 : index
    %2 = vector.load %arg2[%c0_1, %c0_2] : memref<32x64xbf16, #tpu.memory_space<vmem>>, vector<32x64xbf16>
    %cst = arith.constant dense<0.000000e+00> : vector<16x64xf32>
    %3 = tpu.matmul %1, %2, %cst {dimension_numbers = #tpu.dot_dimension_numbers<[1], [0], [0], [1], [0, 0, 1, 1], [], []>} : vector<16x32xbf16>, vector<32x64xbf16>, vector<16x64xf32> -> vector<16x64xf32>
    %c0_3 = arith.constant 0 : index
    %c0_4 = arith.constant 0 : index
    %4 = vector.load %arg3[%c0_3, %c0_4] : memref<1x64xf32, #tpu.memory_space<vmem>>, vector<1x64xf32>
    %5 = vector.broadcast %4 : vector<1x64xf32> to vector<16x64xf32>
    %6 = arith.addf %3, %5 : vector<16x64xf32>
    %cst_5 = arith.constant 5.000000e-01 : f32
    %7 = vector.broadcast %cst_5 : f32 to vector<16x64xf32>
    %8 = arith.mulf %7, %6 : vector<16x64xf32>
    %cst_6 = arith.constant 4.471500e-02 : f32
    %9 = vector.broadcast %cst_6 : f32 to vector<16x64xf32>
    %10 = arith.mulf %9, %6 : vector<16x64xf32>
    %11 = arith.mulf %10, %6 : vector<16x64xf32>
    %12 = arith.mulf %11, %6 : vector<16x64xf32>
    %13 = arith.addf %6, %12 : vector<16x64xf32>
    %cst_7 = arith.constant 0.797884583 : f32
    %14 = vector.broadcast %cst_7 : f32 to vector<16x64xf32>
    %15 = arith.mulf %14, %13 : vector<16x64xf32>
    %16 = math.tanh %15 : vector<16x64xf32>
    %cst_8 = arith.constant 1.000000e+00 : f32
    %17 = vector.broadcast %cst_8 : f32 to vector<16x64xf32>
    %18 = arith.addf %17, %16 : vector<16x64xf32>
    %19 = arith.mulf %8, %18 : vector<16x64xf32>
    %20 = arith.truncf %19 : vector<16x64xf32> to vector<16x64xbf16>
    %c0_9 = arith.constant 0 : index
    %c0_10 = arith.constant 0 : index
    %21 = vector.load %arg4[%c0_9, %c0_10] : memref<16x64xbf16, #tpu.memory_space<vmem>>, vector<16x64xbf16>
    tpu.vector_store %arg4[%c0_9, %c0_10], %20 {strides = array<i32>} : memref<16x64xbf16, #tpu.memory_space<vmem>>, vector<16x64xbf16>,
    return
  }
  func.func @transform_0(%arg0: i32) -> (i32, i32) {
    %c0_i32 = arith.constant 0 : i32
    %c0_i32_0 = arith.constant 0 : i32
    return %arg0, %c0_i32 : i32, i32
  }
  func.func @transform_1(%arg0: i32) -> (i32, i32) {
    %c0_i32 = arith.constant 0 : i32
    %c0_i32_0 = arith.constant 0 : i32
    %c0_i32_1 = arith.constant 0 : i32
    return %c0_i32, %c0_i32_0 : i32, i32
  }
  func.func @transform_2(%arg0: i32) -> (i32, i32) {
    %c0_i32 = arith.constant 0 : i32
    %c0_i32_0 = arith.constant 0 : i32
    %c0_i32_1 = arith.constant 0 : i32
    return %c0_i32, %c0_i32_0 : i32, i32
  }
  func.func @transform_3(%arg0: i32) -> (i32, i32) {
    %c0_i32 = arith.constant 0 : i32
    %c0_i32_0 = arith.constant 0 : i32
    return %arg0, %c0_i32 : i32, i32
  }
}

module attributes {stable_mosaic.version = 11 : i64} {
  func.func @_qkv_attn_kernel(%arg0: i32, %arg1: memref<1x16x32xf32, #tpu.memory_space<vmem>>, %arg2: memref<32x96xbf16, #tpu.memory_space<vmem>>, %arg3: memref<1x96xf32, #tpu.memory_space<vmem>>, %arg4: memref<1x1x16xf32, #tpu.memory_space<vmem>>, %arg5: memref<1x16x32xbf16, #tpu.memory_space<vmem>>, %arg6: memref<16x32xbf16, #tpu.memory_space<vmem>>) attributes {dimension_semantics = [#tpu.dimension_semantics<parallel>], iteration_bounds = array<i64: 2>, scalar_prefetch = 0 : i64, scratch_operands = 1 : i64, tpu.core_type = #tpu.core_type<tc>, window_params = [{transform_indices = @transform_0, window_bounds = array<i64: 1, 16, 32>}, {pipeline_mode = #tpu.pipeline_mode<synchronous>, transform_indices = @transform_1, window_bounds = array<i64: 32, 96>}, {pipeline_mode = #tpu.pipeline_mode<synchronous>, transform_indices = @transform_2, window_bounds = array<i64: 1, 96>}, {transform_indices = @transform_3, window_bounds = array<i64: 1, 1, 16>}, {transform_indices = @transform_4, window_bounds = array<i64: 1, 16, 32>}]} {
    %c0 = arith.constant 0 : index
    %c0_0 = arith.constant 0 : index
    %c0_1 = arith.constant 0 : index
    %0 = vector.load %arg1[%c0, %c0_0, %c0_1] : memref<1x16x32xf32, #tpu.memory_space<vmem>>, vector<1x16x32xf32>
    %1 = vector.shape_cast %0 : vector<1x16x32xf32> to vector<16x32xf32>
    %2 = arith.truncf %1 : vector<16x32xf32> to vector<16x32xbf16>
    %c0_2 = arith.constant 0 : index
    %c0_3 = arith.constant 0 : index
    %3 = vector.load %arg2[%c0_2, %c0_3] : memref<32x96xbf16, #tpu.memory_space<vmem>>, vector<32x96xbf16>
    %cst = arith.constant dense<0.000000e+00> : vector<16x96xf32>
    %4 = tpu.matmul %2, %3, %cst {dimension_numbers = #tpu.dot_dimension_numbers<[1], [0], [0], [1], [0, 0, 1, 1], [], []>} : vector<16x32xbf16>, vector<32x96xbf16>, vector<16x96xf32> -> vector<16x96xf32>
    %c0_4 = arith.constant 0 : index
    %c0_5 = arith.constant 0 : index
    %5 = vector.load %arg3[%c0_4, %c0_5] : memref<1x96xf32, #tpu.memory_space<vmem>>, vector<1x96xf32>
    %6 = vector.broadcast %5 : vector<1x96xf32> to vector<16x96xf32>
    %7 = arith.addf %4, %6 : vector<16x96xf32>
    %8 = arith.truncf %7 : vector<16x96xf32> to vector<16x96xbf16>
    %9 = vector.extract_strided_slice %8 {offsets = [0, 0], sizes = [16, 32], strides = [1, 1]} : vector<16x96xbf16> to vector<16x32xbf16>
    %10 = vector.extract_strided_slice %8 {offsets = [0, 32], sizes = [16, 32], strides = [1, 1]} : vector<16x96xbf16> to vector<16x32xbf16>
    %11 = vector.extract_strided_slice %8 {offsets = [0, 64], sizes = [16, 32], strides = [1, 1]} : vector<16x96xbf16> to vector<16x32xbf16>
    %12 = vector.extract_strided_slice %9 {offsets = [0, 0], sizes = [16, 16], strides = [1, 1]} : vector<16x32xbf16> to vector<16x16xbf16>
    %13 = vector.extract_strided_slice %9 {offsets = [0, 16], sizes = [16, 16], strides = [1, 1]} : vector<16x32xbf16> to vector<16x16xbf16>
    %14 = vector.shape_cast %12 : vector<16x16xbf16> to vector<1x16x16xbf16>
    %15 = vector.shape_cast %13 : vector<16x16xbf16> to vector<1x16x16xbf16>
    %16 = tpu.concatenate %14, %15 in 0 : vector<1x16x16xbf16>, vector<1x16x16xbf16> -> vector<2x16x16xbf16>
    %17 = vector.extract_strided_slice %10 {offsets = [0, 0], sizes = [16, 16], strides = [1, 1]} : vector<16x32xbf16> to vector<16x16xbf16>
    %18 = vector.extract_strided_slice %10 {offsets = [0, 16], sizes = [16, 16], strides = [1, 1]} : vector<16x32xbf16> to vector<16x16xbf16>
    %19 = vector.shape_cast %17 : vector<16x16xbf16> to vector<1x16x16xbf16>
    %20 = vector.shape_cast %18 : vector<16x16xbf16> to vector<1x16x16xbf16>
    %21 = tpu.concatenate %19, %20 in 0 : vector<1x16x16xbf16>, vector<1x16x16xbf16> -> vector<2x16x16xbf16>
    %22 = vector.extract_strided_slice %11 {offsets = [0, 0], sizes = [16, 16], strides = [1, 1]} : vector<16x32xbf16> to vector<16x16xbf16>
    %23 = vector.extract_strided_slice %11 {offsets = [0, 16], sizes = [16, 16], strides = [1, 1]} : vector<16x32xbf16> to vector<16x16xbf16>
    %24 = vector.shape_cast %22 : vector<16x16xbf16> to vector<1x16x16xbf16>
    %25 = vector.shape_cast %23 : vector<16x16xbf16> to vector<1x16x16xbf16>
    %26 = tpu.concatenate %24, %25 in 0 : vector<1x16x16xbf16>, vector<1x16x16xbf16> -> vector<2x16x16xbf16>
    %c0_6 = arith.constant 0 : index
    %c0_7 = arith.constant 0 : index
    %c0_8 = arith.constant 0 : index
    %27 = vector.load %arg4[%c0_6, %c0_7, %c0_8] : memref<1x1x16xf32, #tpu.memory_space<vmem>>, vector<1x1x16xf32>
    %28 = vector.shape_cast %27 : vector<1x1x16xf32> to vector<1x16xf32>
    %cst_9 = arith.constant dense<0.000000e+00> : vector<2x16x16xf32>
    %29 = tpu.matmul %16, %21, %cst_9 {dimension_numbers = #tpu.dot_dimension_numbers<[2], [2], [1], [1], [0, 0, 0, 1, 1, 1], [0], [0]>} : vector<2x16x16xbf16>, vector<2x16x16xbf16>, vector<2x16x16xf32> -> vector<2x16x16xf32>
    %cst_10 = arith.constant 2.500000e-01 : f32
    %30 = vector.broadcast %cst_10 : f32 to vector<2x16x16xf32>
    %31 = arith.mulf %29, %30 : vector<2x16x16xf32>
    %32 = vector.shape_cast %28 : vector<1x16xf32> to vector<1x1x16xf32>
    %33 = vector.broadcast %32 : vector<1x1x16xf32> to vector<2x16x16xf32>
    %34 = arith.addf %31, %33 : vector<2x16x16xf32>
    %cst_11 = arith.constant dense<0xFF800000> : vector<2x16xf32>
    %35 = vector.multi_reduction <maximumf>, %34, %cst_11 [2] : vector<2x16x16xf32> to vector<2x16xf32>
    %36 = vector.shape_cast %35 : vector<2x16xf32> to vector<2x16x1xf32>
    %37 = vector.broadcast %36 : vector<2x16x1xf32> to vector<2x16x16xf32>
    %38 = arith.subf %34, %37 : vector<2x16x16xf32>
    %39 = math.exp %38 : vector<2x16x16xf32>
    %cst_12 = arith.constant dense<0.000000e+00> : vector<2x16xf32>
    %40 = vector.multi_reduction <add>, %39, %cst_12 [2] : vector<2x16x16xf32> to vector<2x16xf32>
    %41 = vector.shape_cast %40 : vector<2x16xf32> to vector<2x16x1xf32>
    %42 = tpu.reciprocal %41 {approx = true} : vector<2x16x1xf32> -> vector<2x16x1xf32>
    %43 = vector.broadcast %42 : vector<2x16x1xf32> to vector<2x16x16xf32>
    %44 = arith.mulf %39, %43 : vector<2x16x16xf32>
    %45 = arith.truncf %44 : vector<2x16x16xf32> to vector<2x16x16xbf16>
    %cst_13 = arith.constant dense<0.000000e+00> : vector<2x16x16xf32>
    %46 = tpu.matmul %45, %26, %cst_13 {dimension_numbers = #tpu.dot_dimension_numbers<[2], [1], [1], [2], [0, 0, 0, 1, 1, 2], [0], [0]>} : vector<2x16x16xbf16>, vector<2x16x16xbf16>, vector<2x16x16xf32> -> vector<2x16x16xf32>
    %47 = vector.extract_strided_slice %46 {offsets = [0, 0, 0], sizes = [1, 16, 16], strides = [1, 1, 1]} : vector<2x16x16xf32> to vector<1x16x16xf32>
    %48 = vector.shape_cast %47 : vector<1x16x16xf32> to vector<16x16xf32>
    %49 = arith.truncf %48 : vector<16x16xf32> to vector<16x16xbf16>
    %c0_14 = arith.constant 0 : index
    %c0_15 = arith.constant 0 : index
    %50 = vector.load %arg6[%c0_14, %c0_15] : memref<16x32xbf16, #tpu.memory_space<vmem>>, vector<16x16xbf16>
    tpu.vector_store %arg6[%c0_14, %c0_15], %49 {strides = array<i32>} : memref<16x32xbf16, #tpu.memory_space<vmem>>, vector<16x16xbf16>,
    %51 = vector.extract_strided_slice %46 {offsets = [1, 0, 0], sizes = [1, 16, 16], strides = [1, 1, 1]} : vector<2x16x16xf32> to vector<1x16x16xf32>
    %52 = vector.shape_cast %51 : vector<1x16x16xf32> to vector<16x16xf32>
    %53 = arith.truncf %52 : vector<16x16xf32> to vector<16x16xbf16>
    %c0_16 = arith.constant 0 : index
    %c16 = arith.constant 16 : index
    %54 = vector.load %arg6[%c0_16, %c16] : memref<16x32xbf16, #tpu.memory_space<vmem>>, vector<16x16xbf16>
    tpu.vector_store %arg6[%c0_16, %c16], %53 {strides = array<i32>} : memref<16x32xbf16, #tpu.memory_space<vmem>>, vector<16x16xbf16>,
    %c0_17 = arith.constant 0 : index
    %c0_18 = arith.constant 0 : index
    %55 = vector.load %arg6[%c0_17, %c0_18] : memref<16x32xbf16, #tpu.memory_space<vmem>>, vector<16x32xbf16>
    %c0_19 = arith.constant 0 : index
    %c0_20 = arith.constant 0 : index
    %c0_21 = arith.constant 0 : index
    %56 = vector.load %arg5[%c0_19, %c0_20, %c0_21] : memref<1x16x32xbf16, #tpu.memory_space<vmem>>, vector<1x16x32xbf16>
    %57 = vector.shape_cast %56 : vector<1x16x32xbf16> to vector<16x32xbf16>
    %58 = vector.shape_cast %55 : vector<16x32xbf16> to vector<1x16x32xbf16>
    tpu.vector_store %arg5[%c0_19, %c0_20, %c0_21], %58 {strides = array<i32>} : memref<1x16x32xbf16, #tpu.memory_space<vmem>>, vector<1x16x32xbf16>,
    return
  }
  func.func @transform_0(%arg0: i32) -> (i32, i32, i32) {
    %c0_i32 = arith.constant 0 : i32
    %c0_i32_0 = arith.constant 0 : i32
    %c0_i32_1 = arith.constant 0 : i32
    return %arg0, %c0_i32, %c0_i32_0 : i32, i32, i32
  }
  func.func @transform_1(%arg0: i32) -> (i32, i32) {
    %c0_i32 = arith.constant 0 : i32
    %c0_i32_0 = arith.constant 0 : i32
    %c0_i32_1 = arith.constant 0 : i32
    return %c0_i32, %c0_i32_0 : i32, i32
  }
  func.func @transform_2(%arg0: i32) -> (i32, i32) {
    %c0_i32 = arith.constant 0 : i32
    %c0_i32_0 = arith.constant 0 : i32
    %c0_i32_1 = arith.constant 0 : i32
    return %c0_i32, %c0_i32_0 : i32, i32
  }
  func.func @transform_3(%arg0: i32) -> (i32, i32, i32) {
    %c0_i32 = arith.constant 0 : i32
    %c0_i32_0 = arith.constant 0 : i32
    %c0_i32_1 = arith.constant 0 : i32
    return %arg0, %c0_i32, %c0_i32_0 : i32, i32, i32
  }
  func.func @transform_4(%arg0: i32) -> (i32, i32, i32) {
    %c0_i32 = arith.constant 0 : i32
    %c0_i32_0 = arith.constant 0 : i32
    %c0_i32_1 = arith.constant 0 : i32
    return %arg0, %c0_i32, %c0_i32_0 : i32, i32, i32
  }
}

module attributes {stable_mosaic.version = 11 : i64} {
  func.func @_ln_kernel(%arg0: i32, %arg1: memref<16x32xf32, #tpu.memory_space<vmem>>, %arg2: memref<1x32xf32, #tpu.memory_space<vmem>>, %arg3: memref<1x32xf32, #tpu.memory_space<vmem>>, %arg4: memref<16x32xf32, #tpu.memory_space<vmem>>) attributes {dimension_semantics = [#tpu.dimension_semantics<parallel>], iteration_bounds = array<i64: 2>, scalar_prefetch = 0 : i64, scratch_operands = 0 : i64, tpu.core_type = #tpu.core_type<tc>, window_params = [{transform_indices = @transform_0, window_bounds = array<i64: 16, 32>}, {pipeline_mode = #tpu.pipeline_mode<synchronous>, transform_indices = @transform_1, window_bounds = array<i64: 1, 32>}, {pipeline_mode = #tpu.pipeline_mode<synchronous>, transform_indices = @transform_2, window_bounds = array<i64: 1, 32>}, {transform_indices = @transform_3, window_bounds = array<i64: 16, 32>}]} {
    %c0 = arith.constant 0 : index
    %c0_0 = arith.constant 0 : index
    %0 = vector.load %arg1[%c0, %c0_0] : memref<16x32xf32, #tpu.memory_space<vmem>>, vector<16x32xf32>
    %cst = arith.constant dense<0.000000e+00> : vector<16xf32>
    %1 = vector.multi_reduction <add>, %0, %cst [1] : vector<16x32xf32> to vector<16xf32>
    %2 = vector.shape_cast %1 : vector<16xf32> to vector<16x1xf32>
    %cst_1 = arith.constant 3.200000e+01 : f32
    %3 = vector.broadcast %cst_1 : f32 to vector<16x1xf32>
    %4 = arith.divf %2, %3 : vector<16x1xf32>
    %5 = vector.broadcast %4 : vector<16x1xf32> to vector<16x32xf32>
    %6 = arith.subf %0, %5 : vector<16x32xf32>
    %7 = arith.mulf %6, %6 : vector<16x32xf32>
    %cst_2 = arith.constant dense<0.000000e+00> : vector<16xf32>
    %8 = vector.multi_reduction <add>, %7, %cst_2 [1] : vector<16x32xf32> to vector<16xf32>
    %9 = vector.shape_cast %8 : vector<16xf32> to vector<16x1xf32>
    %cst_3 = arith.constant 3.200000e+01 : f32
    %10 = vector.broadcast %cst_3 : f32 to vector<16x1xf32>
    %11 = arith.divf %9, %10 : vector<16x1xf32>
    %cst_4 = arith.constant 9.99999996E-13 : f32
    %12 = vector.broadcast %cst_4 : f32 to vector<16x1xf32>
    %13 = arith.addf %11, %12 : vector<16x1xf32>
    %14 = math.rsqrt %13 : vector<16x1xf32>
    %15 = vector.broadcast %14 : vector<16x1xf32> to vector<16x32xf32>
    %16 = arith.mulf %6, %15 : vector<16x32xf32>
    %c0_5 = arith.constant 0 : index
    %c0_6 = arith.constant 0 : index
    %17 = vector.load %arg2[%c0_5, %c0_6] : memref<1x32xf32, #tpu.memory_space<vmem>>, vector<1x32xf32>
    %18 = vector.broadcast %17 : vector<1x32xf32> to vector<16x32xf32>
    %19 = arith.mulf %16, %18 : vector<16x32xf32>
    %c0_7 = arith.constant 0 : index
    %c0_8 = arith.constant 0 : index
    %20 = vector.load %arg3[%c0_7, %c0_8] : memref<1x32xf32, #tpu.memory_space<vmem>>, vector<1x32xf32>
    %21 = vector.broadcast %20 : vector<1x32xf32> to vector<16x32xf32>
    %22 = arith.addf %19, %21 : vector<16x32xf32>
    %c0_9 = arith.constant 0 : index
    %c0_10 = arith.constant 0 : index
    %23 = vector.load %arg4[%c0_9, %c0_10] : memref<16x32xf32, #tpu.memory_space<vmem>>, vector<16x32xf32>
    tpu.vector_store %arg4[%c0_9, %c0_10], %22 {strides = array<i32>} : memref<16x32xf32, #tpu.memory_space<vmem>>, vector<16x32xf32>,
    return
  }
  func.func @transform_0(%arg0: i32) -> (i32, i32) {
    %c0_i32 = arith.constant 0 : i32
    %c0_i32_0 = arith.constant 0 : i32
    return %arg0, %c0_i32 : i32, i32
  }
  func.func @transform_1(%arg0: i32) -> (i32, i32) {
    %c0_i32 = arith.constant 0 : i32
    %c0_i32_0 = arith.constant 0 : i32
    %c0_i32_1 = arith.constant 0 : i32
    return %c0_i32, %c0_i32_0 : i32, i32
  }
  func.func @transform_2(%arg0: i32) -> (i32, i32) {
    %c0_i32 = arith.constant 0 : i32
    %c0_i32_0 = arith.constant 0 : i32
    %c0_i32_1 = arith.constant 0 : i32
    return %c0_i32, %c0_i32_0 : i32, i32
  }
  func.func @transform_3(%arg0: i32) -> (i32, i32) {
    %c0_i32 = arith.constant 0 : i32
    %c0_i32_0 = arith.constant 0 : i32
    return %arg0, %c0_i32 : i32, i32
  }
}

module attributes {stable_mosaic.version = 11 : i64} {
  func.func @_linear_res_ln_kernel(%arg0: i32, %arg1: memref<16x32xbf16, #tpu.memory_space<vmem>>, %arg2: memref<32x32xbf16, #tpu.memory_space<vmem>>, %arg3: memref<1x32xf32, #tpu.memory_space<vmem>>, %arg4: memref<16x32xf32, #tpu.memory_space<vmem>>, %arg5: memref<1x32xf32, #tpu.memory_space<vmem>>, %arg6: memref<1x32xf32, #tpu.memory_space<vmem>>, %arg7: memref<16x32xf32, #tpu.memory_space<vmem>>) attributes {dimension_semantics = [#tpu.dimension_semantics<parallel>], iteration_bounds = array<i64: 2>, scalar_prefetch = 0 : i64, scratch_operands = 0 : i64, tpu.core_type = #tpu.core_type<tc>, window_params = [{transform_indices = @transform_0, window_bounds = array<i64: 16, 32>}, {pipeline_mode = #tpu.pipeline_mode<synchronous>, transform_indices = @transform_1, window_bounds = array<i64: 32, 32>}, {pipeline_mode = #tpu.pipeline_mode<synchronous>, transform_indices = @transform_2, window_bounds = array<i64: 1, 32>}, {transform_indices = @transform_3, window_bounds = array<i64: 16, 32>}, {pipeline_mode = #tpu.pipeline_mode<synchronous>, transform_indices = @transform_4, window_bounds = array<i64: 1, 32>}, {pipeline_mode = #tpu.pipeline_mode<synchronous>, transform_indices = @transform_5, window_bounds = array<i64: 1, 32>}, {transform_indices = @transform_6, window_bounds = array<i64: 16, 32>}]} {
    %c0 = arith.constant 0 : index
    %c0_0 = arith.constant 0 : index
    %0 = vector.load %arg1[%c0, %c0_0] : memref<16x32xbf16, #tpu.memory_space<vmem>>, vector<16x32xbf16>
    %c0_1 = arith.constant 0 : index
    %c0_2 = arith.constant 0 : index
    %1 = vector.load %arg2[%c0_1, %c0_2] : memref<32x32xbf16, #tpu.memory_space<vmem>>, vector<32x32xbf16>
    %cst = arith.constant dense<0.000000e+00> : vector<16x32xf32>
    %2 = tpu.matmul %0, %1, %cst {dimension_numbers = #tpu.dot_dimension_numbers<[1], [0], [0], [1], [0, 0, 1, 1], [], []>} : vector<16x32xbf16>, vector<32x32xbf16>, vector<16x32xf32> -> vector<16x32xf32>
    %c0_3 = arith.constant 0 : index
    %c0_4 = arith.constant 0 : index
    %3 = vector.load %arg3[%c0_3, %c0_4] : memref<1x32xf32, #tpu.memory_space<vmem>>, vector<1x32xf32>
    %4 = vector.broadcast %3 : vector<1x32xf32> to vector<16x32xf32>
    %5 = arith.addf %2, %4 : vector<16x32xf32>
    %c0_5 = arith.constant 0 : index
    %c0_6 = arith.constant 0 : index
    %6 = vector.load %arg4[%c0_5, %c0_6] : memref<16x32xf32, #tpu.memory_space<vmem>>, vector<16x32xf32>
    %7 = arith.addf %5, %6 : vector<16x32xf32>
    %cst_7 = arith.constant dense<0.000000e+00> : vector<16xf32>
    %8 = vector.multi_reduction <add>, %7, %cst_7 [1] : vector<16x32xf32> to vector<16xf32>
    %9 = vector.shape_cast %8 : vector<16xf32> to vector<16x1xf32>
    %cst_8 = arith.constant 3.200000e+01 : f32
    %10 = vector.broadcast %cst_8 : f32 to vector<16x1xf32>
    %11 = arith.divf %9, %10 : vector<16x1xf32>
    %12 = vector.broadcast %11 : vector<16x1xf32> to vector<16x32xf32>
    %13 = arith.subf %7, %12 : vector<16x32xf32>
    %14 = arith.mulf %13, %13 : vector<16x32xf32>
    %cst_9 = arith.constant dense<0.000000e+00> : vector<16xf32>
    %15 = vector.multi_reduction <add>, %14, %cst_9 [1] : vector<16x32xf32> to vector<16xf32>
    %16 = vector.shape_cast %15 : vector<16xf32> to vector<16x1xf32>
    %cst_10 = arith.constant 3.200000e+01 : f32
    %17 = vector.broadcast %cst_10 : f32 to vector<16x1xf32>
    %18 = arith.divf %16, %17 : vector<16x1xf32>
    %cst_11 = arith.constant 9.99999996E-13 : f32
    %19 = vector.broadcast %cst_11 : f32 to vector<16x1xf32>
    %20 = arith.addf %18, %19 : vector<16x1xf32>
    %21 = math.rsqrt %20 : vector<16x1xf32>
    %22 = vector.broadcast %21 : vector<16x1xf32> to vector<16x32xf32>
    %23 = arith.mulf %13, %22 : vector<16x32xf32>
    %c0_12 = arith.constant 0 : index
    %c0_13 = arith.constant 0 : index
    %24 = vector.load %arg5[%c0_12, %c0_13] : memref<1x32xf32, #tpu.memory_space<vmem>>, vector<1x32xf32>
    %25 = vector.broadcast %24 : vector<1x32xf32> to vector<16x32xf32>
    %26 = arith.mulf %23, %25 : vector<16x32xf32>
    %c0_14 = arith.constant 0 : index
    %c0_15 = arith.constant 0 : index
    %27 = vector.load %arg6[%c0_14, %c0_15] : memref<1x32xf32, #tpu.memory_space<vmem>>, vector<1x32xf32>
    %28 = vector.broadcast %27 : vector<1x32xf32> to vector<16x32xf32>
    %29 = arith.addf %26, %28 : vector<16x32xf32>
    %c0_16 = arith.constant 0 : index
    %c0_17 = arith.constant 0 : index
    %30 = vector.load %arg7[%c0_16, %c0_17] : memref<16x32xf32, #tpu.memory_space<vmem>>, vector<16x32xf32>
    tpu.vector_store %arg7[%c0_16, %c0_17], %29 {strides = array<i32>} : memref<16x32xf32, #tpu.memory_space<vmem>>, vector<16x32xf32>,
    return
  }
  func.func @transform_0(%arg0: i32) -> (i32, i32) {
    %c0_i32 = arith.constant 0 : i32
    %c0_i32_0 = arith.constant 0 : i32
    return %arg0, %c0_i32 : i32, i32
  }
  func.func @transform_1(%arg0: i32) -> (i32, i32) {
    %c0_i32 = arith.constant 0 : i32
    %c0_i32_0 = arith.constant 0 : i32
    %c0_i32_1 = arith.constant 0 : i32
    return %c0_i32, %c0_i32_0 : i32, i32
  }
  func.func @transform_2(%arg0: i32) -> (i32, i32) {
    %c0_i32 = arith.constant 0 : i32
    %c0_i32_0 = arith.constant 0 : i32
    %c0_i32_1 = arith.constant 0 : i32
    return %c0_i32, %c0_i32_0 : i32, i32
  }
  func.func @transform_3(%arg0: i32) -> (i32, i32) {
    %c0_i32 = arith.constant 0 : i32
    %c0_i32_0 = arith.constant 0 : i32
    return %arg0, %c0_i32 : i32, i32
  }
  func.func @transform_4(%arg0: i32) -> (i32, i32) {
    %c0_i32 = arith.constant 0 : i32
    %c0_i32_0 = arith.constant 0 : i32
    %c0_i32_1 = arith.constant 0 : i32
    return %c0_i32, %c0_i32_0 : i32, i32
  }
  func.func @transform_5(%arg0: i32) -> (i32, i32) {
    %c0_i32 = arith.constant 0 : i32
    %c0_i32_0 = arith.constant 0 : i32
    %c0_i32_1 = arith.constant 0 : i32
    return %c0_i32, %c0_i32_0 : i32, i32
  }
  func.func @transform_6(%arg0: i32) -> (i32, i32) {
    %c0_i32 = arith.constant 0 : i32
    %c0_i32_0 = arith.constant 0 : i32
    return %arg0, %c0_i32 : i32, i32
  }
}

module attributes {stable_mosaic.version = 11 : i64} {
  func.func @_linear_res_ln_qa_kernel(%arg0: i32, %arg1: memref<16x64xbf16, #tpu.memory_space<vmem>>, %arg2: memref<64x32xbf16, #tpu.memory_space<vmem>>, %arg3: memref<1x32xf32, #tpu.memory_space<vmem>>, %arg4: memref<16x32xf32, #tpu.memory_space<vmem>>, %arg5: memref<1x32xf32, #tpu.memory_space<vmem>>, %arg6: memref<1x32xf32, #tpu.memory_space<vmem>>, %arg7: memref<32x128xbf16, #tpu.memory_space<vmem>>, %arg8: memref<1x128xf32, #tpu.memory_space<vmem>>, %arg9: memref<16x128xf32, #tpu.memory_space<vmem>>) attributes {dimension_semantics = [#tpu.dimension_semantics<parallel>], iteration_bounds = array<i64: 2>, scalar_prefetch = 0 : i64, scratch_operands = 0 : i64, tpu.core_type = #tpu.core_type<tc>, window_params = [{transform_indices = @transform_0, window_bounds = array<i64: 16, 64>}, {pipeline_mode = #tpu.pipeline_mode<synchronous>, transform_indices = @transform_1, window_bounds = array<i64: 64, 32>}, {pipeline_mode = #tpu.pipeline_mode<synchronous>, transform_indices = @transform_2, window_bounds = array<i64: 1, 32>}, {transform_indices = @transform_3, window_bounds = array<i64: 16, 32>}, {pipeline_mode = #tpu.pipeline_mode<synchronous>, transform_indices = @transform_4, window_bounds = array<i64: 1, 32>}, {pipeline_mode = #tpu.pipeline_mode<synchronous>, transform_indices = @transform_5, window_bounds = array<i64: 1, 32>}, {pipeline_mode = #tpu.pipeline_mode<synchronous>, transform_indices = @transform_6, window_bounds = array<i64: 32, 128>}, {pipeline_mode = #tpu.pipeline_mode<synchronous>, transform_indices = @transform_7, window_bounds = array<i64: 1, 128>}, {transform_indices = @transform_8, window_bounds = array<i64: 16, 128>}]} {
    %c0 = arith.constant 0 : index
    %c0_0 = arith.constant 0 : index
    %0 = vector.load %arg1[%c0, %c0_0] : memref<16x64xbf16, #tpu.memory_space<vmem>>, vector<16x64xbf16>
    %c0_1 = arith.constant 0 : index
    %c0_2 = arith.constant 0 : index
    %1 = vector.load %arg2[%c0_1, %c0_2] : memref<64x32xbf16, #tpu.memory_space<vmem>>, vector<64x32xbf16>
    %cst = arith.constant dense<0.000000e+00> : vector<16x32xf32>
    %2 = tpu.matmul %0, %1, %cst {dimension_numbers = #tpu.dot_dimension_numbers<[1], [0], [0], [1], [0, 0, 1, 1], [], []>} : vector<16x64xbf16>, vector<64x32xbf16>, vector<16x32xf32> -> vector<16x32xf32>
    %c0_3 = arith.constant 0 : index
    %c0_4 = arith.constant 0 : index
    %3 = vector.load %arg3[%c0_3, %c0_4] : memref<1x32xf32, #tpu.memory_space<vmem>>, vector<1x32xf32>
    %4 = vector.broadcast %3 : vector<1x32xf32> to vector<16x32xf32>
    %5 = arith.addf %2, %4 : vector<16x32xf32>
    %c0_5 = arith.constant 0 : index
    %c0_6 = arith.constant 0 : index
    %6 = vector.load %arg4[%c0_5, %c0_6] : memref<16x32xf32, #tpu.memory_space<vmem>>, vector<16x32xf32>
    %7 = arith.addf %5, %6 : vector<16x32xf32>
    %cst_7 = arith.constant dense<0.000000e+00> : vector<16xf32>
    %8 = vector.multi_reduction <add>, %7, %cst_7 [1] : vector<16x32xf32> to vector<16xf32>
    %9 = vector.shape_cast %8 : vector<16xf32> to vector<16x1xf32>
    %cst_8 = arith.constant 3.200000e+01 : f32
    %10 = vector.broadcast %cst_8 : f32 to vector<16x1xf32>
    %11 = arith.divf %9, %10 : vector<16x1xf32>
    %12 = vector.broadcast %11 : vector<16x1xf32> to vector<16x32xf32>
    %13 = arith.subf %7, %12 : vector<16x32xf32>
    %14 = arith.mulf %13, %13 : vector<16x32xf32>
    %cst_9 = arith.constant dense<0.000000e+00> : vector<16xf32>
    %15 = vector.multi_reduction <add>, %14, %cst_9 [1] : vector<16x32xf32> to vector<16xf32>
    %16 = vector.shape_cast %15 : vector<16xf32> to vector<16x1xf32>
    %cst_10 = arith.constant 3.200000e+01 : f32
    %17 = vector.broadcast %cst_10 : f32 to vector<16x1xf32>
    %18 = arith.divf %16, %17 : vector<16x1xf32>
    %cst_11 = arith.constant 9.99999996E-13 : f32
    %19 = vector.broadcast %cst_11 : f32 to vector<16x1xf32>
    %20 = arith.addf %18, %19 : vector<16x1xf32>
    %21 = math.rsqrt %20 : vector<16x1xf32>
    %22 = vector.broadcast %21 : vector<16x1xf32> to vector<16x32xf32>
    %23 = arith.mulf %13, %22 : vector<16x32xf32>
    %c0_12 = arith.constant 0 : index
    %c0_13 = arith.constant 0 : index
    %24 = vector.load %arg5[%c0_12, %c0_13] : memref<1x32xf32, #tpu.memory_space<vmem>>, vector<1x32xf32>
    %25 = vector.broadcast %24 : vector<1x32xf32> to vector<16x32xf32>
    %26 = arith.mulf %23, %25 : vector<16x32xf32>
    %c0_14 = arith.constant 0 : index
    %c0_15 = arith.constant 0 : index
    %27 = vector.load %arg6[%c0_14, %c0_15] : memref<1x32xf32, #tpu.memory_space<vmem>>, vector<1x32xf32>
    %28 = vector.broadcast %27 : vector<1x32xf32> to vector<16x32xf32>
    %29 = arith.addf %26, %28 : vector<16x32xf32>
    %30 = arith.truncf %29 : vector<16x32xf32> to vector<16x32xbf16>
    %c0_16 = arith.constant 0 : index
    %c0_17 = arith.constant 0 : index
    %31 = vector.load %arg7[%c0_16, %c0_17] : memref<32x128xbf16, #tpu.memory_space<vmem>>, vector<32x128xbf16>
    %cst_18 = arith.constant dense<0.000000e+00> : vector<16x128xf32>
    %32 = tpu.matmul %30, %31, %cst_18 {dimension_numbers = #tpu.dot_dimension_numbers<[1], [0], [0], [1], [0, 0, 1, 1], [], []>} : vector<16x32xbf16>, vector<32x128xbf16>, vector<16x128xf32> -> vector<16x128xf32>
    %c0_19 = arith.constant 0 : index
    %c0_20 = arith.constant 0 : index
    %33 = vector.load %arg8[%c0_19, %c0_20] : memref<1x128xf32, #tpu.memory_space<vmem>>, vector<1x128xf32>
    %34 = vector.broadcast %33 : vector<1x128xf32> to vector<16x128xf32>
    %35 = arith.addf %32, %34 : vector<16x128xf32>
    %c0_21 = arith.constant 0 : index
    %c0_22 = arith.constant 0 : index
    %36 = vector.load %arg9[%c0_21, %c0_22] : memref<16x128xf32, #tpu.memory_space<vmem>>, vector<16x128xf32>
    tpu.vector_store %arg9[%c0_21, %c0_22], %35 {strides = array<i32>} : memref<16x128xf32, #tpu.memory_space<vmem>>, vector<16x128xf32>,
    return
  }
  func.func @transform_0(%arg0: i32) -> (i32, i32) {
    %c0_i32 = arith.constant 0 : i32
    %c0_i32_0 = arith.constant 0 : i32
    return %arg0, %c0_i32 : i32, i32
  }
  func.func @transform_1(%arg0: i32) -> (i32, i32) {
    %c0_i32 = arith.constant 0 : i32
    %c0_i32_0 = arith.constant 0 : i32
    %c0_i32_1 = arith.constant 0 : i32
    return %c0_i32, %c0_i32_0 : i32, i32
  }
  func.func @transform_2(%arg0: i32) -> (i32, i32) {
    %c0_i32 = arith.constant 0 : i32
    %c0_i32_0 = arith.constant 0 : i32
    %c0_i32_1 = arith.constant 0 : i32
    return %c0_i32, %c0_i32_0 : i32, i32
  }
  func.func @transform_3(%arg0: i32) -> (i32, i32) {
    %c0_i32 = arith.constant 0 : i32
    %c0_i32_0 = arith.constant 0 : i32
    return %arg0, %c0_i32 : i32, i32
  }
  func.func @transform_4(%arg0: i32) -> (i32, i32) {
    %c0_i32 = arith.constant 0 : i32
    %c0_i32_0 = arith.constant 0 : i32
    %c0_i32_1 = arith.constant 0 : i32
    return %c0_i32, %c0_i32_0 : i32, i32
  }
  func.func @transform_5(%arg0: i32) -> (i32, i32) {
    %c0_i32 = arith.constant 0 : i32
    %c0_i32_0 = arith.constant 0 : i32
    %c0_i32_1 = arith.constant 0 : i32
    return %c0_i32, %c0_i32_0 : i32, i32
  }
  func.func @transform_6(%arg0: i32) -> (i32, i32) {
    %c0_i32 = arith.constant 0 : i32
    %c0_i32_0 = arith.constant 0 : i32
    %c0_i32_1 = arith.constant 0 : i32
    return %c0_i32, %c0_i32_0 : i32, i32
  }
  func.func @transform_7(%arg0: i32) -> (i32, i32) {
    %c0_i32 = arith.constant 0 : i32
    %c0_i32_0 = arith.constant 0 : i32
    %c0_i32_1 = arith.constant 0 : i32
    return %c0_i32, %c0_i32_0 : i32, i32
  }
  func.func @transform_8(%arg0: i32) -> (i32, i32) {
    %c0_i32 = arith.constant 0 : i32
    %c0_i32_0 = arith.constant 0 : i32
    return %arg0, %c0_i32 : i32, i32
  }
}

module attributes {stable_mosaic.version = 11 : i64} {
  func.func @_linear_res_ln_kernel(%arg0: i32, %arg1: memref<16x64xbf16, #tpu.memory_space<vmem>>, %arg2: memref<64x32xbf16, #tpu.memory_space<vmem>>, %arg3: memref<1x32xf32, #tpu.memory_space<vmem>>, %arg4: memref<16x32xf32, #tpu.memory_space<vmem>>, %arg5: memref<1x32xf32, #tpu.memory_space<vmem>>, %arg6: memref<1x32xf32, #tpu.memory_space<vmem>>, %arg7: memref<16x32xf32, #tpu.memory_space<vmem>>) attributes {dimension_semantics = [#tpu.dimension_semantics<parallel>], iteration_bounds = array<i64: 2>, scalar_prefetch = 0 : i64, scratch_operands = 0 : i64, tpu.core_type = #tpu.core_type<tc>, window_params = [{transform_indices = @transform_0, window_bounds = array<i64: 16, 64>}, {pipeline_mode = #tpu.pipeline_mode<synchronous>, transform_indices = @transform_1, window_bounds = array<i64: 64, 32>}, {pipeline_mode = #tpu.pipeline_mode<synchronous>, transform_indices = @transform_2, window_bounds = array<i64: 1, 32>}, {transform_indices = @transform_3, window_bounds = array<i64: 16, 32>}, {pipeline_mode = #tpu.pipeline_mode<synchronous>, transform_indices = @transform_4, window_bounds = array<i64: 1, 32>}, {pipeline_mode = #tpu.pipeline_mode<synchronous>, transform_indices = @transform_5, window_bounds = array<i64: 1, 32>}, {transform_indices = @transform_6, window_bounds = array<i64: 16, 32>}]} {
    %c0 = arith.constant 0 : index
    %c0_0 = arith.constant 0 : index
    %0 = vector.load %arg1[%c0, %c0_0] : memref<16x64xbf16, #tpu.memory_space<vmem>>, vector<16x64xbf16>
    %c0_1 = arith.constant 0 : index
    %c0_2 = arith.constant 0 : index
    %1 = vector.load %arg2[%c0_1, %c0_2] : memref<64x32xbf16, #tpu.memory_space<vmem>>, vector<64x32xbf16>
    %cst = arith.constant dense<0.000000e+00> : vector<16x32xf32>
    %2 = tpu.matmul %0, %1, %cst {dimension_numbers = #tpu.dot_dimension_numbers<[1], [0], [0], [1], [0, 0, 1, 1], [], []>} : vector<16x64xbf16>, vector<64x32xbf16>, vector<16x32xf32> -> vector<16x32xf32>
    %c0_3 = arith.constant 0 : index
    %c0_4 = arith.constant 0 : index
    %3 = vector.load %arg3[%c0_3, %c0_4] : memref<1x32xf32, #tpu.memory_space<vmem>>, vector<1x32xf32>
    %4 = vector.broadcast %3 : vector<1x32xf32> to vector<16x32xf32>
    %5 = arith.addf %2, %4 : vector<16x32xf32>
    %c0_5 = arith.constant 0 : index
    %c0_6 = arith.constant 0 : index
    %6 = vector.load %arg4[%c0_5, %c0_6] : memref<16x32xf32, #tpu.memory_space<vmem>>, vector<16x32xf32>
    %7 = arith.addf %5, %6 : vector<16x32xf32>
    %cst_7 = arith.constant dense<0.000000e+00> : vector<16xf32>
    %8 = vector.multi_reduction <add>, %7, %cst_7 [1] : vector<16x32xf32> to vector<16xf32>
    %9 = vector.shape_cast %8 : vector<16xf32> to vector<16x1xf32>
    %cst_8 = arith.constant 3.200000e+01 : f32
    %10 = vector.broadcast %cst_8 : f32 to vector<16x1xf32>
    %11 = arith.divf %9, %10 : vector<16x1xf32>
    %12 = vector.broadcast %11 : vector<16x1xf32> to vector<16x32xf32>
    %13 = arith.subf %7, %12 : vector<16x32xf32>
    %14 = arith.mulf %13, %13 : vector<16x32xf32>
    %cst_9 = arith.constant dense<0.000000e+00> : vector<16xf32>
    %15 = vector.multi_reduction <add>, %14, %cst_9 [1] : vector<16x32xf32> to vector<16xf32>
    %16 = vector.shape_cast %15 : vector<16xf32> to vector<16x1xf32>
    %cst_10 = arith.constant 3.200000e+01 : f32
    %17 = vector.broadcast %cst_10 : f32 to vector<16x1xf32>
    %18 = arith.divf %16, %17 : vector<16x1xf32>
    %cst_11 = arith.constant 9.99999996E-13 : f32
    %19 = vector.broadcast %cst_11 : f32 to vector<16x1xf32>
    %20 = arith.addf %18, %19 : vector<16x1xf32>
    %21 = math.rsqrt %20 : vector<16x1xf32>
    %22 = vector.broadcast %21 : vector<16x1xf32> to vector<16x32xf32>
    %23 = arith.mulf %13, %22 : vector<16x32xf32>
    %c0_12 = arith.constant 0 : index
    %c0_13 = arith.constant 0 : index
    %24 = vector.load %arg5[%c0_12, %c0_13] : memref<1x32xf32, #tpu.memory_space<vmem>>, vector<1x32xf32>
    %25 = vector.broadcast %24 : vector<1x32xf32> to vector<16x32xf32>
    %26 = arith.mulf %23, %25 : vector<16x32xf32>
    %c0_14 = arith.constant 0 : index
    %c0_15 = arith.constant 0 : index
    %27 = vector.load %arg6[%c0_14, %c0_15] : memref<1x32xf32, #tpu.memory_space<vmem>>, vector<1x32xf32>
    %28 = vector.broadcast %27 : vector<1x32xf32> to vector<16x32xf32>
    %29 = arith.addf %26, %28 : vector<16x32xf32>
    %c0_16 = arith.constant 0 : index
    %c0_17 = arith.constant 0 : index
    %30 = vector.load %arg7[%c0_16, %c0_17] : memref<16x32xf32, #tpu.memory_space<vmem>>, vector<16x32xf32>
    tpu.vector_store %arg7[%c0_16, %c0_17], %29 {strides = array<i32>} : memref<16x32xf32, #tpu.memory_space<vmem>>, vector<16x32xf32>,
    return
  }
  func.func @transform_0(%arg0: i32) -> (i32, i32) {
    %c0_i32 = arith.constant 0 : i32
    %c0_i32_0 = arith.constant 0 : i32
    return %arg0, %c0_i32 : i32, i32
  }
  func.func @transform_1(%arg0: i32) -> (i32, i32) {
    %c0_i32 = arith.constant 0 : i32
    %c0_i32_0 = arith.constant 0 : i32
    %c0_i32_1 = arith.constant 0 : i32
    return %c0_i32, %c0_i32_0 : i32, i32
  }
  func.func @transform_2(%arg0: i32) -> (i32, i32) {
    %c0_i32 = arith.constant 0 : i32
    %c0_i32_0 = arith.constant 0 : i32
    %c0_i32_1 = arith.constant 0 : i32
    return %c0_i32, %c0_i32_0 : i32, i32
  }
  func.func @transform_3(%arg0: i32) -> (i32, i32) {
    %c0_i32 = arith.constant 0 : i32
    %c0_i32_0 = arith.constant 0 : i32
    return %arg0, %c0_i32 : i32, i32
  }
  func.func @transform_4(%arg0: i32) -> (i32, i32) {
    %c0_i32 = arith.constant 0 : i32
    %c0_i32_0 = arith.constant 0 : i32
    %c0_i32_1 = arith.constant 0 : i32
    return %c0_i32, %c0_i32_0 : i32, i32
  }
  func.func @transform_5(%arg0: i32) -> (i32, i32) {
    %c0_i32 = arith.constant 0 : i32
    %c0_i32_0 = arith.constant 0 : i32
    %c0_i32_1 = arith.constant 0 : i32
    return %c0_i32, %c0_i32_0 : i32, i32
  }
  func.func @transform_6(%arg0: i32) -> (i32, i32) {
    %c0_i32 = arith.constant 0 : i32
    %c0_i32_0 = arith.constant 0 : i32
    return %arg0, %c0_i32 : i32, i32
  }
}

</mosaic_0001>

<llo_original>
// kernel: _lambda_.10
$region0: #{_lambda_.10}
  #allocation0 [shape = 'u32[]', space=smem, size = 0x4, offset = 0x4, fixed_abs, tag = 'smem constant byte address 0x4 - core index']
  #allocation1 [shape = 'u32[72,128]{1,0:T(1,128)}', space=vmem, size = 0x9000, scoped, tag = 'internal scratch']
  #allocation2 [shape = 'bf16[16,32]{1,0:T(8,128)(2,1)}', space=vmem, size = 0x1000, scoped, tag = 'scratch operand']
  %s0 = inlined_call_operand.vmem [shape: f32[2,16,32], index: 0, kind: input, shape index: {}]
  %s1 = inlined_call_operand.vmem [shape: bf16[32,96], index: 1, kind: input, shape index: {}]
  %s2 = inlined_call_operand.vmem [shape: f32[1,96], index: 2, kind: input, shape index: {}]
  %s3 = inlined_call_operand.vmem [shape: f32[2,1,16], index: 3, kind: input, shape index: {}]
  %s4 = inlined_call_operand.vmem [shape: bf16[2,16,32], index: 4, kind: output, shape index: {}]
  %s5 = sld [smem:[#allocation0]]
  $region49: #{_lambda_.10} parent=0
    _
  %s7 = ssub.s32 1, %s5
  %s8 = scalar_select 0, %s7, %s5
  loop: start=0, step=1, limit=4
  $region2: #{_lambda_.10} parent=0 // loop_pre_header
    _
  $region3: #{_lambda_.10} parent=0 // loop_header
    %s10 = sphi 0, %s14
    %p11 = scmp.ge.s32.totalorder %s10, 4
    %s20 = sphi 0, %s22
    %s23 = sphi 0, %s20
    %s24 = sphi 0, %s23
    %s40 = sphi 0, %s24
    %s44 = sphi 0, %s44
    %s46 = sphi 0, %s44
    %s47 = sphi 0, %s46
    %s61 = sphi 0, %s47
    %s65 = sphi 0, %s65
    %s67 = sphi 0, %s65
    %s68 = sphi 0, %s67
    %s82 = sphi 0, %s68
    %s88 = sphi 0, %s90
    %s91 = sphi 0, %s88
    %s92 = sphi 0, %s91
    %s108 = sphi 0, %s92
    %s114 = sphi 0, %s116
    %s117 = sphi 0, %s114
    %s118 = sphi 0, %s117
    %s134 = sphi 0, %s118
  $region4: #{_lambda_.10} parent=0 // loop_header_branch
    %13 = sbr.rel (%p11) target = $region8
  $region5: #{_lambda_.10} parent=0 // loop_body
    %s15 = ssub.s32 %s10, 1
    %s16 = ssub.s32 %s10, 2
    %s17 = sadd.s32 %s10, 1
    %s18 = ssub.s32 %s10, %s17
    %p19 = scmp.eq.s32.totalorder %s18, 0
    %s21 = sadd.s32 %s20, 1
    %s22 = scalar_select %p19, %s20, %s21
    %p25 = pneg %p19
    %p26 = scmp.eq.s32.totalorder %s10, 1
    %p27 = por %p25, %p26
    %p28 = scmp.ne.s32.totalorder %s20, %s23
    %p29 = scmp.eq.s32.totalorder %s10, 0
    %p30 = por %p28, %p29
    %p31 = scmp.ne.s32.totalorder %s20, %s23
    %p32 = scmp.eq.s32.totalorder %s15, 1
    %p33 = por %p31, %p32
    %p34 = scmp.ne.s32.totalorder %s23, %s24
    %p35 = scmp.eq.s32.totalorder %s15, 0
    %p36 = por %p34, %p35
    %p37 = scmp.ne.s32.totalorder %s23, %s24
    %p38 = scmp.eq.s32.totalorder %s16, 1
    %p39 = por %p37, %p38
    %p41 = scmp.ne.s32.totalorder %s24, %s40
    %p42 = scmp.eq.s32.totalorder %s16, 0
    %p43 = por %p41, %p42
    %s45 = sadd.s32 %s44, 1
    %p48 = scmp.eq.s32.totalorder %s10, 1
    %p49 = scmp.ne.s32.totalorder %s44, %s46
    %p50 = scmp.eq.s32.totalorder %s10, 0
    %p51 = por %p49, %p50
    %p52 = scmp.ne.s32.totalorder %s44, %s46
    %p53 = scmp.eq.s32.totalorder %s15, 1
    %p54 = por %p52, %p53
    %p55 = scmp.ne.s32.totalorder %s46, %s47
    %p56 = scmp.eq.s32.totalorder %s15, 0
    %p57 = por %p55, %p56
    %p58 = scmp.ne.s32.totalorder %s46, %s47
    %p59 = scmp.eq.s32.totalorder %s16, 1
    %p60 = por %p58, %p59
    %p62 = scmp.ne.s32.totalorder %s47, %s61
    %p63 = scmp.eq.s32.totalorder %s16, 0
    %p64 = por %p62, %p63
    %s66 = sadd.s32 %s65, 1
    %p69 = scmp.eq.s32.totalorder %s10, 1
    %p70 = scmp.ne.s32.totalorder %s65, %s67
    %p71 = scmp.eq.s32.totalorder %s10, 0
    %p72 = por %p70, %p71
    %p73 = scmp.ne.s32.totalorder %s65, %s67
    %p74 = scmp.eq.s32.totalorder %s15, 1
    %p75 = por %p73, %p74
    %p76 = scmp.ne.s32.totalorder %s67, %s68
    %p77 = scmp.eq.s32.totalorder %s15, 0
    %p78 = por %p76, %p77
    %p79 = scmp.ne.s32.totalorder %s67, %s68
    %p80 = scmp.eq.s32.totalorder %s16, 1
    %p81 = por %p79, %p80
    %p83 = scmp.ne.s32.totalorder %s68, %s82
    %p84 = scmp.eq.s32.totalorder %s16, 0
    %p85 = por %p83, %p84
    %s86 = ssub.s32 %s10, %s17
    %p87 = scmp.eq.s32.totalorder %s86, 0
    %s89 = sadd.s32 %s88, 1
    %s90 = scalar_select %p87, %s88, %s89
    %p93 = pneg %p87
    %p94 = scmp.eq.s32.totalorder %s10, 1
    %p95 = por %p93, %p94
    %p96 = scmp.ne.s32.totalorder %s88, %s91
    %p97 = scmp.eq.s32.totalorder %s10, 0
    %p98 = por %p96, %p97
    %p99 = scmp.ne.s32.totalorder %s88, %s91
    %p100 = scmp.eq.s32.totalorder %s15, 1
    %p101 = por %p99, %p100
    %p102 = scmp.ne.s32.totalorder %s91, %s92
    %p103 = scmp.eq.s32.totalorder %s15, 0
    %p104 = por %p102, %p103
    %p105 = scmp.ne.s32.totalorder %s91, %s92
    %p106 = scmp.eq.s32.totalorder %s16, 1
    %p107 = por %p105, %p106
    %p109 = scmp.ne.s32.totalorder %s92, %s108
    %p110 = scmp.eq.s32.totalorder %s16, 0
    %p111 = por %p109, %p110
    %s112 = ssub.s32 %s10, %s17
    %p113 = scmp.eq.s32.totalorder %s112, 0
    %s115 = sadd.s32 %s114, 1
    %s116 = scalar_select %p113, %s114, %s115
    %p119 = pneg %p113
    %p120 = scmp.eq.s32.totalorder %s10, 1
    %p121 = por %p119, %p120
    %p122 = scmp.ne.s32.totalorder %s114, %s117
    %p123 = scmp.eq.s32.totalorder %s10, 0
    %p124 = por %p122, %p123
    %p125 = scmp.ne.s32.totalorder %s114, %s117
    %p126 = scmp.eq.s32.totalorder %s15, 1
    %p127 = por %p125, %p126
    %p128 = scmp.ne.s32.totalorder %s117, %s118
    %p129 = scmp.eq.s32.totalorder %s15, 0
    %p130 = por %p128, %p129
    %p131 = scmp.ne.s32.totalorder %s117, %s118
    %p132 = scmp.eq.s32.totalorder %s16, 1
    %p133 = por %p131, %p132
    %p135 = scmp.ne.s32.totalorder %s118, %s134
    %p136 = scmp.eq.s32.totalorder %s16, 0
    %p137 = por %p135, %p136
    %p138 = scmp.le.s32.totalorder 1, %s10
    %p139 = scmp.lt.s32.totalorder %s10, 3
    %p140 = pnand %p138, %p139
    %p141 = pneg %p140
    // Predicated region
    $region9: #{_lambda_.10} parent=5 // pred_check
      _
    $region10: #{_lambda_.10} parent=5 // pred_check_branch
      %143 = sbr.rel (%p140) target = $region12
    $region11: #{_lambda_.10} parent=5 // pred_region
      %s144 = ssub.s32 %s10, 1
      // Predicated region
      $region13: #{_lambda_.10} parent=11 // pred_check
        %p145 = pneg %p57
      $region14: #{_lambda_.10} parent=11 // pred_check_branch
        %147 = sbr.rel (%p145) target = $region16
      $region15: #{_lambda_.10} parent=11 // pred_region
        _
      $region16: #{_lambda_.10} parent=11 // pred_fallthru
        _
      // Predicated region
      $region17: #{_lambda_.10} parent=11 // pred_check
        %p148 = pneg %p78
      $region18: #{_lambda_.10} parent=11 // pred_check_branch
        %150 = sbr.rel (%p148) target = $region20
      $region19: #{_lambda_.10} parent=11 // pred_region
        _
      $region20: #{_lambda_.10} parent=11 // pred_fallthru
        _
    $region12: #{_lambda_.10} parent=5 // pred_fallthru
      _
    %p151 = scmp.lt.s32.totalorder %s10, 2
    // Predicated region
    $region21: #{_lambda_.10} parent=5 // pred_check
      %p152 = pneg %p151
    $region22: #{_lambda_.10} parent=5 // pred_check_branch
      %154 = sbr.rel (%p152) target = $region24
    $region23: #{_lambda_.10} parent=5 // pred_region
      // Predicated region
      $region25: #{_lambda_.10} parent=23 // pred_check
        %p155 = pneg %p30
      $region26: #{_lambda_.10} parent=23 // pred_check_branch
        %157 = sbr.rel (%p155) target = $region28
      $region27: #{_lambda_.10} parent=23 // pred_region
        %p158 = scmp.lt.s32.totalorder %s10, 1
        %s159 = scalar_select %p158, %s10, 1
        %s160 = smul.addr %s159, 2
        %s161 = smul.addr %s160, 8
        %s162 = scalar_lea.vmem %s0, %s161
      $region28: #{_lambda_.10} parent=23 // pred_fallthru
        _
      // Predicated region
      $region29: #{_lambda_.10} parent=23 // pred_check
        %p163 = pneg %p98
      $region30: #{_lambda_.10} parent=23 // pred_check_branch
        %165 = sbr.rel (%p163) target = $region32
      $region31: #{_lambda_.10} parent=23 // pred_region
        %p166 = scmp.lt.s32.totalorder %s10, 1
        %s167 = scalar_select %p166, %s10, 1
        %s168 = scalar_lea.vmem %s3, %s167
      $region32: #{_lambda_.10} parent=23 // pred_fallthru
        _
    $region24: #{_lambda_.10} parent=5 // pred_fallthru
      _
    %p169 = scmp.le.s32.totalorder 1, %s10
    %p170 = scmp.lt.s32.totalorder %s10, 3
    %p171 = pnand %p169, %p170
    %p172 = pneg %p171
    // Predicated region
    $region33: #{_lambda_.10} parent=5 // pred_check
      _
    $region34: #{_lambda_.10} parent=5 // pred_check_branch
      %174 = sbr.rel (%p171) target = $region36
    $region35: #{_lambda_.10} parent=5 // pred_region
      %s175 = ssub.s32 %s10, 1
      %p176 = scmp.lt.s32.totalorder %s15, 1
      %s177 = scalar_select %p176, %s15, 1
      %s178 = smul.addr %s177, 2
      %s179 = smul.addr %s178, 8
      %s180 = scalar_lea.vmem %s0, %s179
      %p181 = pneg %p36
      %p182 = pneg %p33
      %p183 = pneg %p57
      %p184 = pneg %p54
      %p185 = pneg %p78
      %p186 = pneg %p75
      %p187 = scmp.lt.s32.totalorder %s15, 1
      %s188 = scalar_select %p187, %s15, 1
      %s189 = scalar_lea.vmem %s3, %s188
      %p190 = pneg %p104
      %p191 = pneg %p101
      %p192 = pneg %p130
      %p193 = pneg %p127
      %p194 = scmp.lt.s32.totalorder %s15, 1
      %s195 = scalar_select %p194, %s15, 1
      %s196 = smul.addr %s195, 2
      %s197 = smul.addr %s196, 4
      %s198 = scalar_lea.vmem %s4, %s197
      %p199 = scmp.lt.s32.totalorder %s15, 1
      %s200 = scalar_select %p199, %s15, 1
      %s201 = smul.addr %s200, 2
      %s202 = smul.addr %s201, 8
      %s203 = scalar_lea.vmem %s0, %s202
      %p204 = scmp.lt.s32.totalorder %s15, 1
      %s205 = scalar_select %p204, %s15, 1
      %s206 = scalar_lea.vmem %s3, %s205
      %p207 = scmp.lt.s32.totalorder %s15, 1
      %s208 = scalar_select %p207, %s15, 1
      %s209 = smul.addr %s208, 2
      %s210 = smul.addr %s209, 4
      %s211 = scalar_lea.vmem %s4, %s210
      %v213 = vld [vmem:[%s203] sm:$0xff]
      %v214 = vld [vmem:[%s203 + $0x8] sm:$0xff]
      %v215 = vpack.c.bf16 %v214, %v213
      %v216 = vld [vmem:[%s1] sm:$0xf]
      %v217 = vld [vmem:[%s1 + $0x4] sm:$0xf]
      %v218 = vld [vmem:[%s1 + $0x8] sm:$0xf]
      %v219 = vld [vmem:[%s1 + $0xc] sm:$0xf]
      %v220 = vld [vmem:[%s2] sm:$0x1]
      %v222 = vperm.slane %v220, 0
      %v228 = vunpack.c.l.b16 %v216
      %v229 = vunpack.c.l.b16 %v217
      %v230 = vunpack.c.l.b16 %v218
      %v231 = vunpack.c.l.b16 %v219
      %v232 = vpack.c.b16 %v229, %v228
      %v233 = vpack.c.b16 %v231, %v230
      %vm236 = vcmask 261120
      %v238 = vsel %vm236, %v215, 0
      %240 = vmatpush.bf16.msra.mxu0 0
      %241 = vmatpush.bf16.msra.mxu0 0
      %242 = vmatpush.bf16.msra.mxu0 0
      %243 = vmatpush.bf16.msra.mxu0 0
      %244 = vmatpush.bf16.msra.mxu0 0
      %245 = vmatpush.bf16.msra.mxu0 0
      %246 = vmatpush.bf16.msra.mxu0 %v233
      %247 = vmatpush.bf16.msra.mxu0 %v232
      %248 = vmatmul.bf16.gmra.mxu0 %v238
      %v249 = vpop.f32.mrf.mxu0
      %v250 = vadd.f32 %v222, %v249
      %v251 = vpop.f32.mrf.mxu0
      %v252 = vadd.f32 %v222, %v251
      %253 = vdwg.mxu0
      %v254 = vpack.c.bf16 %v250, %v250
      %v255 = vpack.c.bf16 %v252, %v252
      %258 = vrot.lane.b32.xlu0 %v254, 112
      %v259 = vpop.permute.xlu0 %258
      %260 = vrot.lane.b32.xlu0 %v255, 112
      %v261 = vpop.permute.xlu0 %260
      %v262 = vld [vmem:[%s206] sm:$0x1]
      %v263 = vunpack.c.l.b16 %v254
      %v264 = vunpack.c.l.b16 %v255
      %v265 = vpack.c.b16 %v264, %v263
      %266 = vrot.lane.b32.xlu0 %v265, 96
      %v267 = vpop.permute.xlu0 %266
      %vm268 = vcmask 130048
      %v270 = vsel %vm268, %v265, 0
      %v273 = vsel %vm268, %v267, 0
      %275 = vmatpush.bf16.xpose.msra.mxu0 0
      %276 = vmatpush.bf16.xpose.msra.mxu0 0
      %277 = vmatpush.bf16.xpose.msra.mxu0 0
      %278 = vmatpush.bf16.xpose.msra.mxu0 0
      %279 = vmatpush.bf16.xpose.msra.mxu0 0
      %280 = vmatpush.bf16.xpose.msra.mxu0 0
      %281 = vmatpush.bf16.xpose.msra.mxu0 0
      %282 = vmatpush.bf16.xpose.msra.mxu0 %v273
      %283 = vmatmul.bf16.gmra.mxu0 %v270
      %v284 = vpop.f32.mrf.mxu0
      %v285 = vadd.f32 0.0, %v284
      %v286 = vpop.f32.mrf.mxu0
      %v287 = vadd.f32 0.0, %v286
      %288 = vdwg.mxu0
      %v289 = vunpack.c.l.b16 %v259
      %v290 = vunpack.c.l.b16 %v261
      %v291 = vpack.c.b16 %v290, %v289
      %292 = vrot.lane.b32.xlu0 %v291, 96
      %v293 = vpop.permute.xlu0 %292
      %v295 = vsel %vm268, %v291, 0
      %v298 = vsel %vm268, %v293, 0
      %300 = vmatpush.bf16.xpose.msra.mxu0 0
      %301 = vmatpush.bf16.xpose.msra.mxu0 0
      %302 = vmatpush.bf16.xpose.msra.mxu0 0
      %303 = vmatpush.bf16.xpose.msra.mxu0 0
      %304 = vmatpush.bf16.xpose.msra.mxu0 0
      %305 = vmatpush.bf16.xpose.msra.mxu0 0
      %306 = vmatpush.bf16.xpose.msra.mxu0 0
      %307 = vmatpush.bf16.xpose.msra.mxu0 %v298
      %308 = vmatmul.bf16.gmra.mxu0 %v295
      %v309 = vpop.f32.mrf.mxu0
      %v310 = vadd.f32 0.0, %v309
      %v311 = vpop.f32.mrf.mxu0
      %v312 = vadd.f32 0.0, %v311
      %313 = vdwg.mxu0
      %v314 = vmul.f32 %v285, 0.25
      %v315 = vmul.f32 %v287, 0.25
      %v316 = vmul.f32 %v310, 0.25
      %v317 = vmul.f32 %v312, 0.25
      %v319 = vperm.slane %v262, 0
      %v321 = vadd.f32 %v314, %v319
      %v322 = vadd.f32 %v315, %v319
      %v323 = vadd.f32 %v316, %v319
      %v324 = vadd.f32 %v317, %v319
      %v325 = vsel %vm268, %v321, -inf
      %326 = vmax.xlane.f32.xlu0 %v325
      %v327 = vpop.xlane.xlu0 %326
      %v328 = vsel %vm268, %v322, -inf
      %329 = vmax.xlane.f32.xlu0 %v328
      %v330 = vpop.xlane.xlu0 %329
      %v331 = vsel %vm268, %v323, -inf
      %332 = vmax.xlane.f32.xlu0 %v331
      %v333 = vpop.xlane.xlu0 %332
      %v334 = vsel %vm268, %v324, -inf
      %335 = vmax.xlane.f32.xlu0 %v334
      %v336 = vpop.xlane.xlu0 %335
      %v337 = vsub.f32 %v321, %v327
      %v338 = vsub.f32 %v322, %v330
      %v339 = vsub.f32 %v323, %v333
      %v340 = vsub.f32 %v324, %v336
      %v341 = vmul.f32 %v337, 1.442695
      %v342 = vpow.pop %v341
      %v343 = vmul.f32 %v338, 1.442695
      %v344 = vpow.pop %v343
      %v345 = vmul.f32 %v339, 1.442695
      %v346 = vpow.pop %v345
      %v347 = vmul.f32 %v340, 1.442695
      %v348 = vpow.pop %v347
      %v349 = vsel %vm268, %v342, 0.0
      %350 = vadd.xlane.f32.xlu0 %v349
      %v351 = vpop.xlane.xlu0 %350
      %v352 = vsel %vm268, %v344, 0.0
      %353 = vadd.xlane.f32.xlu0 %v352
      %v354 = vpop.xlane.xlu0 %353
      %v355 = vsel %vm268, %v346, 0.0
      %356 = vadd.xlane.f32.xlu0 %v355
      %v357 = vpop.xlane.xlu0 %356
      %v358 = vsel %vm268, %v348, 0.0
      %359 = vadd.xlane.f32.xlu0 %v358
      %v360 = vpop.xlane.xlu0 %359
      %v361 = vrcp.pop %v351
      %v362 = vrcp.pop %v354
      %v363 = vrcp.pop %v357
      %v364 = vrcp.pop %v360
      %v365 = vmul.f32 %v342, %v361
      %v366 = vmul.f32 %v344, %v362
      %v367 = vmul.f32 %v346, %v363
      %v368 = vmul.f32 %v348, %v364
      %v369 = vpack.c.bf16 %v365, %v365
      %v370 = vpack.c.bf16 %v366, %v366
      %v371 = vpack.c.bf16 %v367, %v367
      %v372 = vpack.c.bf16 %v368, %v368
      %v375 = vunpack.c.l.b16 %v369
      %v376 = vunpack.c.l.b16 %v370
      %v377 = vpack.c.b16 %v376, %v375
      %378 = vrot.lane.b32.xlu0 %v265, 64
      %v379 = vpop.permute.xlu0 %378
      %v382 = vsel %vm268, %v377, 0
      %384 = vmatpush.bf16.msra.mxu0 0
      %385 = vmatpush.bf16.msra.mxu0 0
      %386 = vmatpush.bf16.msra.mxu0 0
      %387 = vmatpush.bf16.msra.mxu0 0
      %388 = vmatpush.bf16.msra.mxu0 0
      %389 = vmatpush.bf16.msra.mxu0 0
      %390 = vmatpush.bf16.msra.mxu0 0
      %391 = vmatpush.bf16.msra.mxu0 %v379
      %392 = vmatmul.bf16.gmra.mxu0 %v382
      %v393 = vpop.f32.mrf.mxu0
      %v394 = vadd.f32 0.0, %v393
      %v395 = vpop.f32.mrf.mxu0
      %v396 = vadd.f32 0.0, %v395
      %397 = vdwg.mxu0
      %v400 = vunpack.c.l.b16 %v371
      %v401 = vunpack.c.l.b16 %v372
      %v402 = vpack.c.b16 %v401, %v400
      %403 = vrot.lane.b32.xlu0 %v291, 64
      %v404 = vpop.permute.xlu0 %403
      %v407 = vsel %vm268, %v402, 0
      %409 = vmatpush.bf16.msra.mxu0 0
      %410 = vmatpush.bf16.msra.mxu0 0
      %411 = vmatpush.bf16.msra.mxu0 0
      %412 = vmatpush.bf16.msra.mxu0 0
      %413 = vmatpush.bf16.msra.mxu0 0
      %414 = vmatpush.bf16.msra.mxu0 0
      %415 = vmatpush.bf16.msra.mxu0 0
      %416 = vmatpush.bf16.msra.mxu0 %v404
      %417 = vmatmul.bf16.gmra.mxu0 %v407
      %v418 = vpop.f32.mrf.mxu0
      %v419 = vadd.f32 0.0, %v418
      %v420 = vpop.f32.mrf.mxu0
      %v421 = vadd.f32 0.0, %v420
      %422 = vdwg.mxu0
      %v423 = vpack.c.bf16 %v394, %v394
      %v424 = vpack.c.bf16 %v396, %v396
      %vm425 = vcmask 125952
      %426 = vst.msk [vmem:[#allocation2] sm:$0xf] %vm425, %v423
      %427 = vst.msk [vmem:[#allocation2 + $0x4] sm:$0xf] %vm425, %v424
      %v428 = vpack.c.bf16 %v419, %v419
      %v429 = vpack.c.bf16 %v421, %v421
      %432 = vrot.lane.b32.xlu0 %v428, 16
      %v433 = vpop.permute.xlu0 %432
      %434 = vrot.lane.b32.xlu0 %v429, 16
      %v435 = vpop.permute.xlu0 %434
      %vm438 = vcmask 257152
      %439 = vst.msk [vmem:[#allocation2] sm:$0xf] %vm438, %v433
      %440 = vst.msk [vmem:[#allocation2 + $0x4] sm:$0xf] %vm438, %v435
      %v441 = vld [vmem:[#allocation2] sm:$0xf]
      %v442 = vld [vmem:[#allocation2 + $0x4] sm:$0xf]
      %vm443 = vcmask 257024
      %444 = vst.msk [vmem:[%s211] sm:$0xf] %vm443, %v441
      %445 = vst.msk [vmem:[%s211 + $0x4] sm:$0xf] %vm443, %v442
      %p446 = scmp.lt.s32.totalorder %s15, 1
      %s447 = scalar_select %p446, %s15, 1
      %s448 = smul.addr %s447, 2
      %s449 = smul.addr %s448, 4
      %s450 = scalar_lea.vmem %s4, %s449
      // Predicated region
      $region37: #{_lambda_.10} parent=35 // pred_check
        %p451 = pneg %p127
      $region38: #{_lambda_.10} parent=35 // pred_check_branch
        %453 = sbr.rel (%p451) target = $region40
      $region39: #{_lambda_.10} parent=35 // pred_region
        _
      $region40: #{_lambda_.10} parent=35 // pred_fallthru
        _
    $region36: #{_lambda_.10} parent=5 // pred_fallthru
      _
    %p454 = scmp.le.s32.totalorder 2, %s10
    // Predicated region
    $region41: #{_lambda_.10} parent=5 // pred_check
      %p455 = pneg %p454
    $region42: #{_lambda_.10} parent=5 // pred_check_branch
      %457 = sbr.rel (%p455) target = $region44
    $region43: #{_lambda_.10} parent=5 // pred_region
      %s458 = ssub.s32 %s10, 2
      // Predicated region
      $region45: #{_lambda_.10} parent=43 // pred_check
        %p459 = pneg %p133
      $region46: #{_lambda_.10} parent=43 // pred_check_branch
        %461 = sbr.rel (%p459) target = $region48
      $region47: #{_lambda_.10} parent=43 // pred_region
        %p462 = scmp.lt.s32.totalorder %s16, 1
        %s463 = scalar_select %p462, %s16, 1
        %s464 = smul.addr %s463, 2
        %s465 = smul.addr %s464, 4
        %s466 = scalar_lea.vmem %s4, %s465
      $region48: #{_lambda_.10} parent=43 // pred_fallthru
        _
    $region44: #{_lambda_.10} parent=5 // pred_fallthru
      _
  $region6: #{_lambda_.10} parent=0 // loop_footer
    %s14 = sadd.s32 1, %s10
  $region7: #{_lambda_.10} parent=0 // loop_footer_branch
    %9 = sbr.rel target = $region3
  $region8: #{_lambda_.10} parent=0 // loop_exit
    _

// kernel: _lambda_.12
$region0: #{_lambda_.12}
  #allocation0 [shape = 'u32[]', space=smem, size = 0x4, offset = 0x4, fixed_abs, tag = 'smem constant byte address 0x4 - core index']
  #allocation1 [shape = 'u32[72,128]{1,0:T(1,128)}', space=vmem, size = 0x9000, scoped, tag = 'internal scratch']
  %s0 = inlined_call_operand.vmem [shape: f32[32,32], index: 0, kind: input, shape index: {}]
  %s1 = inlined_call_operand.vmem [shape: bf16[32,64], index: 1, kind: input, shape index: {}]
  %s2 = inlined_call_operand.vmem [shape: f32[1,64], index: 2, kind: input, shape index: {}]
  %s3 = inlined_call_operand.vmem [shape: bf16[32,64], index: 3, kind: output, shape index: {}]
  %s4 = sld [smem:[#allocation0]]
  $region45: #{_lambda_.12} parent=0
    _
  %s6 = ssub.s32 1, %s4
  %s7 = scalar_select 0, %s6, %s4
  loop: start=0, step=1, limit=4
  $region2: #{_lambda_.12} parent=0 // loop_pre_header
    _
  $region3: #{_lambda_.12} parent=0 // loop_header
    %s9 = sphi 0, %s13
    %p10 = scmp.ge.s32.totalorder %s9, 4
    %s19 = sphi 0, %s21
    %s22 = sphi 0, %s19
    %s23 = sphi 0, %s22
    %s39 = sphi 0, %s23
    %s43 = sphi 0, %s43
    %s45 = sphi 0, %s43
    %s46 = sphi 0, %s45
    %s60 = sphi 0, %s46
    %s64 = sphi 0, %s64
    %s66 = sphi 0, %s64
    %s67 = sphi 0, %s66
    %s81 = sphi 0, %s67
    %s87 = sphi 0, %s89
    %s90 = sphi 0, %s87
    %s91 = sphi 0, %s90
    %s107 = sphi 0, %s91
  $region4: #{_lambda_.12} parent=0 // loop_header_branch
    %12 = sbr.rel (%p10) target = $region8
  $region5: #{_lambda_.12} parent=0 // loop_body
    %s14 = ssub.s32 %s9, 1
    %s15 = ssub.s32 %s9, 2
    %s16 = sadd.s32 %s9, 1
    %s17 = ssub.s32 %s9, %s16
    %p18 = scmp.eq.s32.totalorder %s17, 0
    %s20 = sadd.s32 %s19, 1
    %s21 = scalar_select %p18, %s19, %s20
    %p24 = pneg %p18
    %p25 = scmp.eq.s32.totalorder %s9, 1
    %p26 = por %p24, %p25
    %p27 = scmp.ne.s32.totalorder %s19, %s22
    %p28 = scmp.eq.s32.totalorder %s9, 0
    %p29 = por %p27, %p28
    %p30 = scmp.ne.s32.totalorder %s19, %s22
    %p31 = scmp.eq.s32.totalorder %s14, 1
    %p32 = por %p30, %p31
    %p33 = scmp.ne.s32.totalorder %s22, %s23
    %p34 = scmp.eq.s32.totalorder %s14, 0
    %p35 = por %p33, %p34
    %p36 = scmp.ne.s32.totalorder %s22, %s23
    %p37 = scmp.eq.s32.totalorder %s15, 1
    %p38 = por %p36, %p37
    %p40 = scmp.ne.s32.totalorder %s23, %s39
    %p41 = scmp.eq.s32.totalorder %s15, 0
    %p42 = por %p40, %p41
    %s44 = sadd.s32 %s43, 1
    %p47 = scmp.eq.s32.totalorder %s9, 1
    %p48 = scmp.ne.s32.totalorder %s43, %s45
    %p49 = scmp.eq.s32.totalorder %s9, 0
    %p50 = por %p48, %p49
    %p51 = scmp.ne.s32.totalorder %s43, %s45
    %p52 = scmp.eq.s32.totalorder %s14, 1
    %p53 = por %p51, %p52
    %p54 = scmp.ne.s32.totalorder %s45, %s46
    %p55 = scmp.eq.s32.totalorder %s14, 0
    %p56 = por %p54, %p55
    %p57 = scmp.ne.s32.totalorder %s45, %s46
    %p58 = scmp.eq.s32.totalorder %s15, 1
    %p59 = por %p57, %p58
    %p61 = scmp.ne.s32.totalorder %s46, %s60
    %p62 = scmp.eq.s32.totalorder %s15, 0
    %p63 = por %p61, %p62
    %s65 = sadd.s32 %s64, 1
    %p68 = scmp.eq.s32.totalorder %s9, 1
    %p69 = scmp.ne.s32.totalorder %s64, %s66
    %p70 = scmp.eq.s32.totalorder %s9, 0
    %p71 = por %p69, %p70
    %p72 = scmp.ne.s32.totalorder %s64, %s66
    %p73 = scmp.eq.s32.totalorder %s14, 1
    %p74 = por %p72, %p73
    %p75 = scmp.ne.s32.totalorder %s66, %s67
    %p76 = scmp.eq.s32.totalorder %s14, 0
    %p77 = por %p75, %p76
    %p78 = scmp.ne.s32.totalorder %s66, %s67
    %p79 = scmp.eq.s32.totalorder %s15, 1
    %p80 = por %p78, %p79
    %p82 = scmp.ne.s32.totalorder %s67, %s81
    %p83 = scmp.eq.s32.totalorder %s15, 0
    %p84 = por %p82, %p83
    %s85 = ssub.s32 %s9, %s16
    %p86 = scmp.eq.s32.totalorder %s85, 0
    %s88 = sadd.s32 %s87, 1
    %s89 = scalar_select %p86, %s87, %s88
    %p92 = pneg %p86
    %p93 = scmp.eq.s32.totalorder %s9, 1
    %p94 = por %p92, %p93
    %p95 = scmp.ne.s32.totalorder %s87, %s90
    %p96 = scmp.eq.s32.totalorder %s9, 0
    %p97 = por %p95, %p96
    %p98 = scmp.ne.s32.totalorder %s87, %s90
    %p99 = scmp.eq.s32.totalorder %s14, 1
    %p100 = por %p98, %p99
    %p101 = scmp.ne.s32.totalorder %s90, %s91
    %p102 = scmp.eq.s32.totalorder %s14, 0
    %p103 = por %p101, %p102
    %p104 = scmp.ne.s32.totalorder %s90, %s91
    %p105 = scmp.eq.s32.totalorder %s15, 1
    %p106 = por %p104, %p105
    %p108 = scmp.ne.s32.totalorder %s91, %s107
    %p109 = scmp.eq.s32.totalorder %s15, 0
    %p110 = por %p108, %p109
    %p111 = scmp.le.s32.totalorder 1, %s9
    %p112 = scmp.lt.s32.totalorder %s9, 3
    %p113 = pnand %p111, %p112
    %p114 = pneg %p113
    // Predicated region
    $region9: #{_lambda_.12} parent=5 // pred_check
      _
    $region10: #{_lambda_.12} parent=5 // pred_check_branch
      %116 = sbr.rel (%p113) target = $region12
    $region11: #{_lambda_.12} parent=5 // pred_region
      %s117 = ssub.s32 %s9, 1
      // Predicated region
      $region13: #{_lambda_.12} parent=11 // pred_check
        %p118 = pneg %p56
      $region14: #{_lambda_.12} parent=11 // pred_check_branch
        %120 = sbr.rel (%p118) target = $region16
      $region15: #{_lambda_.12} parent=11 // pred_region
        _
      $region16: #{_lambda_.12} parent=11 // pred_fallthru
        _
      // Predicated region
      $region17: #{_lambda_.12} parent=11 // pred_check
        %p121 = pneg %p77
      $region18: #{_lambda_.12} parent=11 // pred_check_branch
        %123 = sbr.rel (%p121) target = $region20
      $region19: #{_lambda_.12} parent=11 // pred_region
        _
      $region20: #{_lambda_.12} parent=11 // pred_fallthru
        _
    $region12: #{_lambda_.12} parent=5 // pred_fallthru
      _
    %p124 = scmp.lt.s32.totalorder %s9, 2
    // Predicated region
    $region21: #{_lambda_.12} parent=5 // pred_check
      %p125 = pneg %p124
    $region22: #{_lambda_.12} parent=5 // pred_check_branch
      %127 = sbr.rel (%p125) target = $region24
    $region23: #{_lambda_.12} parent=5 // pred_region
      // Predicated region
      $region25: #{_lambda_.12} parent=23 // pred_check
        %p128 = pneg %p29
      $region26: #{_lambda_.12} parent=23 // pred_check_branch
        %130 = sbr.rel (%p128) target = $region28
      $region27: #{_lambda_.12} parent=23 // pred_region
        %s131 = smul.u32 2, %s9
        %p132 = scmp.lt.s32.totalorder %s131, 3
        %s133 = scalar_select %p132, %s131, 3
        %s134 = smul.addr %s133, 8
        %s135 = scalar_lea.vmem %s0, %s134
        %s136 = smul.u32 2, %s9
      $region28: #{_lambda_.12} parent=23 // pred_fallthru
        _
    $region24: #{_lambda_.12} parent=5 // pred_fallthru
      _
    %p137 = scmp.le.s32.totalorder 1, %s9
    %p138 = scmp.lt.s32.totalorder %s9, 3
    %p139 = pnand %p137, %p138
    %p140 = pneg %p139
    // Predicated region
    $region29: #{_lambda_.12} parent=5 // pred_check
      _
    $region30: #{_lambda_.12} parent=5 // pred_check_branch
      %142 = sbr.rel (%p139) target = $region32
    $region31: #{_lambda_.12} parent=5 // pred_region
      %s143 = ssub.s32 %s9, 1
      %s144 = smul.u32 2, %s14
      %p145 = scmp.lt.s32.totalorder %s144, 3
      %s146 = scalar_select %p145, %s144, 3
      %s147 = smul.addr %s146, 8
      %s148 = scalar_lea.vmem %s0, %s147
      %p149 = pneg %p35
      %p150 = pneg %p32
      %p151 = pneg %p56
      %p152 = pneg %p53
      %p153 = pneg %p77
      %p154 = pneg %p74
      %p155 = pneg %p103
      %p156 = pneg %p100
      %s157 = smul.u32 2, %s14
      %p158 = scmp.lt.s32.totalorder %s157, 3
      %s159 = scalar_select %p158, %s157, 3
      %s160 = smul.addr %s159, 4
      %s161 = scalar_lea.vmem %s3, %s160
      %s162 = smul.u32 2, %s14
      %p163 = scmp.lt.s32.totalorder %s162, 3
      %s164 = scalar_select %p163, %s162, 3
      %s165 = smul.addr %s164, 8
      %s166 = scalar_lea.vmem %s0, %s165
      %s167 = smul.u32 2, %s14
      %s168 = smul.u32 2, %s14
      %p169 = scmp.lt.s32.totalorder %s168, 3
      %s170 = scalar_select %p169, %s168, 3
      %s171 = smul.addr %s170, 4
      %s172 = scalar_lea.vmem %s3, %s171
      %s173 = smul.u32 2, %s14
      %v175 = vld [vmem:[%s166] sm:$0xff]
      %v176 = vld [vmem:[%s166 + $0x8] sm:$0xff]
      %v177 = vpack.c.bf16 %v176, %v175
      %v178 = vld [vmem:[%s1] sm:$0xf]
      %v179 = vld [vmem:[%s1 + $0x4] sm:$0xf]
      %v180 = vld [vmem:[%s1 + $0x8] sm:$0xf]
      %v181 = vld [vmem:[%s1 + $0xc] sm:$0xf]
      %v182 = vld [vmem:[%s2] sm:$0x1]
      %v184 = vperm.slane %v182, 0
      %v190 = vunpack.c.l.b16 %v178
      %v191 = vunpack.c.l.b16 %v179
      %v192 = vunpack.c.l.b16 %v180
      %v193 = vunpack.c.l.b16 %v181
      %v194 = vpack.c.b16 %v191, %v190
      %v195 = vpack.c.b16 %v193, %v192
      %vm198 = vcmask 261120
      %v200 = vsel %vm198, %v177, 0
      %202 = vmatpush.bf16.msra.mxu0 0
      %203 = vmatpush.bf16.msra.mxu0 0
      %204 = vmatpush.bf16.msra.mxu0 0
      %205 = vmatpush.bf16.msra.mxu0 0
      %206 = vmatpush.bf16.msra.mxu0 0
      %207 = vmatpush.bf16.msra.mxu0 0
      %208 = vmatpush.bf16.msra.mxu0 %v195
      %209 = vmatpush.bf16.msra.mxu0 %v194
      %210 = vmatmul.bf16.gmra.mxu0 %v200
      %v211 = vpop.f32.mrf.mxu0
      %v212 = vadd.f32 %v184, %v211
      %v213 = vpop.f32.mrf.mxu0
      %v214 = vadd.f32 %v184, %v213
      %215 = vdwg.mxu0
      %v216 = vmul.f32 %v212, 0.5
      %v217 = vmul.f32 %v214, 0.5
      %v218 = vmul.f32 %v212, 0.044715
      %v219 = vmul.f32 %v214, 0.044715
      %v220 = vmul.f32 %v218, %v212
      %v221 = vmul.f32 %v219, %v214
      %v222 = vmul.f32 %v220, %v212
      %v223 = vmul.f32 %v221, %v214
      %v224 = vadd.f32 %v212, %v222
      %v225 = vadd.f32 %v214, %v223
      %v226 = vmul.f32 %v224, 0.7978846
      %v227 = vmul.f32 %v225, 0.7978846
      %v228 = vtanh.pop %v226
      %v229 = vtanh.pop %v227
      %v230 = vadd.f32 %v228, 1.0
      %v231 = vadd.f32 %v229, 1.0
      %v232 = vmul.f32 %v216, %v230
      %v233 = vmul.f32 %v217, %v231
      %v234 = vpack.c.bf16 %v232, %v232
      %v235 = vpack.c.bf16 %v233, %v233
      %vm236 = vcmask 519168
      %237 = vst.msk [vmem:[%s172] sm:$0xf] %vm236, %v234
      %238 = vst.msk [vmem:[%s172 + $0x4] sm:$0xf] %vm236, %v235
      %s239 = smul.u32 2, %s14
      %p240 = scmp.lt.s32.totalorder %s239, 3
      %s241 = scalar_select %p240, %s239, 3
      %s242 = smul.addr %s241, 4
      %s243 = scalar_lea.vmem %s3, %s242
      // Predicated region
      $region33: #{_lambda_.12} parent=31 // pred_check
        %p244 = pneg %p100
      $region34: #{_lambda_.12} parent=31 // pred_check_branch
        %246 = sbr.rel (%p244) target = $region36
      $region35: #{_lambda_.12} parent=31 // pred_region
        %s247 = smul.u32 2, %s14
      $region36: #{_lambda_.12} parent=31 // pred_fallthru
        _
    $region32: #{_lambda_.12} parent=5 // pred_fallthru
      _
    %p248 = scmp.le.s32.totalorder 2, %s9
    // Predicated region
    $region37: #{_lambda_.12} parent=5 // pred_check
      %p249 = pneg %p248
    $region38: #{_lambda_.12} parent=5 // pred_check_branch
      %251 = sbr.rel (%p249) target = $region40
    $region39: #{_lambda_.12} parent=5 // pred_region
      %s252 = ssub.s32 %s9, 2
      // Predicated region
      $region41: #{_lambda_.12} parent=39 // pred_check
        %p253 = pneg %p106
      $region42: #{_lambda_.12} parent=39 // pred_check_branch
        %255 = sbr.rel (%p253) target = $region44
      $region43: #{_lambda_.12} parent=39 // pred_region
        %s256 = smul.u32 2, %s15
        %p257 = scmp.lt.s32.totalorder %s256, 3
        %s258 = scalar_select %p257, %s256, 3
        %s259 = smul.addr %s258, 4
        %s260 = scalar_lea.vmem %s3, %s259
      $region44: #{_lambda_.12} parent=39 // pred_fallthru
        _
    $region40: #{_lambda_.12} parent=5 // pred_fallthru
      _
  $region6: #{_lambda_.12} parent=0 // loop_footer
    %s13 = sadd.s32 1, %s9
  $region7: #{_lambda_.12} parent=0 // loop_footer_branch
    %8 = sbr.rel target = $region3
  $region8: #{_lambda_.12} parent=0 // loop_exit
    _

// kernel: _lambda_.9
$region0: #{_lambda_.9}
  #allocation0 [shape = 'u32[]', space=smem, size = 0x4, offset = 0x4, fixed_abs, tag = 'smem constant byte address 0x4 - core index']
  #allocation1 [shape = 'u32[72,128]{1,0:T(1,128)}', space=vmem, size = 0x9000, scoped, tag = 'internal scratch']
  %s0 = inlined_call_operand.vmem [shape: f32[32,32], index: 0, kind: input, shape index: {}]
  %s1 = inlined_call_operand.vmem [shape: f32[1,32], index: 1, kind: input, shape index: {}]
  %s2 = inlined_call_operand.vmem [shape: f32[1,32], index: 2, kind: input, shape index: {}]
  %s3 = inlined_call_operand.vmem [shape: f32[32,32], index: 3, kind: output, shape index: {}]
  %s4 = sld [smem:[#allocation0]]
  $region45: #{_lambda_.9} parent=0
    _
  %s6 = ssub.s32 1, %s4
  %s7 = scalar_select 0, %s6, %s4
  loop: start=0, step=1, limit=4
  $region2: #{_lambda_.9} parent=0 // loop_pre_header
    _
  $region3: #{_lambda_.9} parent=0 // loop_header
    %s9 = sphi 0, %s13
    %p10 = scmp.ge.s32.totalorder %s9, 4
    %s19 = sphi 0, %s21
    %s22 = sphi 0, %s19
    %s23 = sphi 0, %s22
    %s39 = sphi 0, %s23
    %s43 = sphi 0, %s43
    %s45 = sphi 0, %s43
    %s46 = sphi 0, %s45
    %s60 = sphi 0, %s46
    %s64 = sphi 0, %s64
    %s66 = sphi 0, %s64
    %s67 = sphi 0, %s66
    %s81 = sphi 0, %s67
    %s87 = sphi 0, %s89
    %s90 = sphi 0, %s87
    %s91 = sphi 0, %s90
    %s107 = sphi 0, %s91
  $region4: #{_lambda_.9} parent=0 // loop_header_branch
    %12 = sbr.rel (%p10) target = $region8
  $region5: #{_lambda_.9} parent=0 // loop_body
    %s14 = ssub.s32 %s9, 1
    %s15 = ssub.s32 %s9, 2
    %s16 = sadd.s32 %s9, 1
    %s17 = ssub.s32 %s9, %s16
    %p18 = scmp.eq.s32.totalorder %s17, 0
    %s20 = sadd.s32 %s19, 1
    %s21 = scalar_select %p18, %s19, %s20
    %p24 = pneg %p18
    %p25 = scmp.eq.s32.totalorder %s9, 1
    %p26 = por %p24, %p25
    %p27 = scmp.ne.s32.totalorder %s19, %s22
    %p28 = scmp.eq.s32.totalorder %s9, 0
    %p29 = por %p27, %p28
    %p30 = scmp.ne.s32.totalorder %s19, %s22
    %p31 = scmp.eq.s32.totalorder %s14, 1
    %p32 = por %p30, %p31
    %p33 = scmp.ne.s32.totalorder %s22, %s23
    %p34 = scmp.eq.s32.totalorder %s14, 0
    %p35 = por %p33, %p34
    %p36 = scmp.ne.s32.totalorder %s22, %s23
    %p37 = scmp.eq.s32.totalorder %s15, 1
    %p38 = por %p36, %p37
    %p40 = scmp.ne.s32.totalorder %s23, %s39
    %p41 = scmp.eq.s32.totalorder %s15, 0
    %p42 = por %p40, %p41
    %s44 = sadd.s32 %s43, 1
    %p47 = scmp.eq.s32.totalorder %s9, 1
    %p48 = scmp.ne.s32.totalorder %s43, %s45
    %p49 = scmp.eq.s32.totalorder %s9, 0
    %p50 = por %p48, %p49
    %p51 = scmp.ne.s32.totalorder %s43, %s45
    %p52 = scmp.eq.s32.totalorder %s14, 1
    %p53 = por %p51, %p52
    %p54 = scmp.ne.s32.totalorder %s45, %s46
    %p55 = scmp.eq.s32.totalorder %s14, 0
    %p56 = por %p54, %p55
    %p57 = scmp.ne.s32.totalorder %s45, %s46
    %p58 = scmp.eq.s32.totalorder %s15, 1
    %p59 = por %p57, %p58
    %p61 = scmp.ne.s32.totalorder %s46, %s60
    %p62 = scmp.eq.s32.totalorder %s15, 0
    %p63 = por %p61, %p62
    %s65 = sadd.s32 %s64, 1
    %p68 = scmp.eq.s32.totalorder %s9, 1
    %p69 = scmp.ne.s32.totalorder %s64, %s66
    %p70 = scmp.eq.s32.totalorder %s9, 0
    %p71 = por %p69, %p70
    %p72 = scmp.ne.s32.totalorder %s64, %s66
    %p73 = scmp.eq.s32.totalorder %s14, 1
    %p74 = por %p72, %p73
    %p75 = scmp.ne.s32.totalorder %s66, %s67
    %p76 = scmp.eq.s32.totalorder %s14, 0
    %p77 = por %p75, %p76
    %p78 = scmp.ne.s32.totalorder %s66, %s67
    %p79 = scmp.eq.s32.totalorder %s15, 1
    %p80 = por %p78, %p79
    %p82 = scmp.ne.s32.totalorder %s67, %s81
    %p83 = scmp.eq.s32.totalorder %s15, 0
    %p84 = por %p82, %p83
    %s85 = ssub.s32 %s9, %s16
    %p86 = scmp.eq.s32.totalorder %s85, 0
    %s88 = sadd.s32 %s87, 1
    %s89 = scalar_select %p86, %s87, %s88
    %p92 = pneg %p86
    %p93 = scmp.eq.s32.totalorder %s9, 1
    %p94 = por %p92, %p93
    %p95 = scmp.ne.s32.totalorder %s87, %s90
    %p96 = scmp.eq.s32.totalorder %s9, 0
    %p97 = por %p95, %p96
    %p98 = scmp.ne.s32.totalorder %s87, %s90
    %p99 = scmp.eq.s32.totalorder %s14, 1
    %p100 = por %p98, %p99
    %p101 = scmp.ne.s32.totalorder %s90, %s91
    %p102 = scmp.eq.s32.totalorder %s14, 0
    %p103 = por %p101, %p102
    %p104 = scmp.ne.s32.totalorder %s90, %s91
    %p105 = scmp.eq.s32.totalorder %s15, 1
    %p106 = por %p104, %p105
    %p108 = scmp.ne.s32.totalorder %s91, %s107
    %p109 = scmp.eq.s32.totalorder %s15, 0
    %p110 = por %p108, %p109
    %p111 = scmp.le.s32.totalorder 1, %s9
    %p112 = scmp.lt.s32.totalorder %s9, 3
    %p113 = pnand %p111, %p112
    %p114 = pneg %p113
    // Predicated region
    $region9: #{_lambda_.9} parent=5 // pred_check
      _
    $region10: #{_lambda_.9} parent=5 // pred_check_branch
      %116 = sbr.rel (%p113) target = $region12
    $region11: #{_lambda_.9} parent=5 // pred_region
      %s117 = ssub.s32 %s9, 1
      // Predicated region
      $region13: #{_lambda_.9} parent=11 // pred_check
        %p118 = pneg %p56
      $region14: #{_lambda_.9} parent=11 // pred_check_branch
        %120 = sbr.rel (%p118) target = $region16
      $region15: #{_lambda_.9} parent=11 // pred_region
        _
      $region16: #{_lambda_.9} parent=11 // pred_fallthru
        _
      // Predicated region
      $region17: #{_lambda_.9} parent=11 // pred_check
        %p121 = pneg %p77
      $region18: #{_lambda_.9} parent=11 // pred_check_branch
        %123 = sbr.rel (%p121) target = $region20
      $region19: #{_lambda_.9} parent=11 // pred_region
        _
      $region20: #{_lambda_.9} parent=11 // pred_fallthru
        _
    $region12: #{_lambda_.9} parent=5 // pred_fallthru
      _
    %p124 = scmp.lt.s32.totalorder %s9, 2
    // Predicated region
    $region21: #{_lambda_.9} parent=5 // pred_check
      %p125 = pneg %p124
    $region22: #{_lambda_.9} parent=5 // pred_check_branch
      %127 = sbr.rel (%p125) target = $region24
    $region23: #{_lambda_.9} parent=5 // pred_region
      // Predicated region
      $region25: #{_lambda_.9} parent=23 // pred_check
        %p128 = pneg %p29
      $region26: #{_lambda_.9} parent=23 // pred_check_branch
        %130 = sbr.rel (%p128) target = $region28
      $region27: #{_lambda_.9} parent=23 // pred_region
        %s131 = smul.u32 2, %s9
        %p132 = scmp.lt.s32.totalorder %s131, 3
        %s133 = scalar_select %p132, %s131, 3
        %s134 = smul.addr %s133, 8
        %s135 = scalar_lea.vmem %s0, %s134
        %s136 = smul.u32 2, %s9
      $region28: #{_lambda_.9} parent=23 // pred_fallthru
        _
    $region24: #{_lambda_.9} parent=5 // pred_fallthru
      _
    %p137 = scmp.le.s32.totalorder 1, %s9
    %p138 = scmp.lt.s32.totalorder %s9, 3
    %p139 = pnand %p137, %p138
    %p140 = pneg %p139
    // Predicated region
    $region29: #{_lambda_.9} parent=5 // pred_check
      _
    $region30: #{_lambda_.9} parent=5 // pred_check_branch
      %142 = sbr.rel (%p139) target = $region32
    $region31: #{_lambda_.9} parent=5 // pred_region
      %s143 = ssub.s32 %s9, 1
      %s144 = smul.u32 2, %s14
      %p145 = scmp.lt.s32.totalorder %s144, 3
      %s146 = scalar_select %p145, %s144, 3
      %s147 = smul.addr %s146, 8
      %s148 = scalar_lea.vmem %s0, %s147
      %p149 = pneg %p35
      %p150 = pneg %p32
      %p151 = pneg %p56
      %p152 = pneg %p53
      %p153 = pneg %p77
      %p154 = pneg %p74
      %p155 = pneg %p103
      %p156 = pneg %p100
      %s157 = smul.u32 2, %s14
      %p158 = scmp.lt.s32.totalorder %s157, 3
      %s159 = scalar_select %p158, %s157, 3
      %s160 = smul.addr %s159, 8
      %s161 = scalar_lea.vmem %s3, %s160
      %s162 = smul.u32 2, %s14
      %p163 = scmp.lt.s32.totalorder %s162, 3
      %s164 = scalar_select %p163, %s162, 3
      %s165 = smul.addr %s164, 8
      %s166 = scalar_lea.vmem %s0, %s165
      %s167 = smul.u32 2, %s14
      %s168 = smul.u32 2, %s14
      %p169 = scmp.lt.s32.totalorder %s168, 3
      %s170 = scalar_select %p169, %s168, 3
      %s171 = smul.addr %s170, 8
      %s172 = scalar_lea.vmem %s3, %s171
      %s173 = smul.u32 2, %s14
      %v174 = vld [vmem:[%s166] sm:$0xff]
      %v175 = vld [vmem:[%s166 + $0x8] sm:$0xff]
      %vm176 = vcmask 261120
      %v177 = vsel %vm176, %v174, 0.0
      %178 = vadd.xlane.f32.xlu0 %v177
      %v179 = vpop.xlane.xlu0 %178
      %v180 = vsel %vm176, %v175, 0.0
      %181 = vadd.xlane.f32.xlu0 %v180
      %v182 = vpop.xlane.xlu0 %181
      %v183 = vrcp.pop 32.0
      %v184 = vmul.f32 32.0, %v183
      %v185 = vsub.f32 1.0, %v184
      %v186 = vmul.f32 %v183, %v185
      %v187 = vadd.f32 %v183, %v186
      %vm188 = vweird.f32 %v183
      %v189 = vsel %vm188, %v183, %v187
      %v190 = vmul.f32 %v179, %v189
      %v191 = vmul.f32 %v182, %v189
      %v192 = vsub.f32 %v174, %v190
      %v193 = vsub.f32 %v175, %v191
      %v194 = vmul.f32 %v192, %v192
      %v195 = vmul.f32 %v193, %v193
      %v196 = vsel %vm176, %v194, 0.0
      %197 = vadd.xlane.f32.xlu0 %v196
      %v198 = vpop.xlane.xlu0 %197
      %v199 = vsel %vm176, %v195, 0.0
      %200 = vadd.xlane.f32.xlu0 %v199
      %v201 = vpop.xlane.xlu0 %200
      %v202 = vmul.f32 %v198, %v189
      %v203 = vmul.f32 %v201, %v189
      %v204 = vadd.f32 %v202, 1e-12
      %v205 = vadd.f32 %v203, 1e-12
      %v206 = vrsqrt.pop %v204
      %v207 = vmul.f32 %v206, %v204
      %v208 = vmul.f32 %v207, %v206
      %v209 = vmul.f32 0.5, %v208
      %v210 = vsub.f32 1.5, %v209
      %v211 = vmul.f32 %v206, %v210
      %vm212 = vweird.f32 %v204
      %vm213 = vweird.f32 %v206
      %vm214 = vmor %vm212, %vm213
      %v215 = vsel %vm214, %v206, %v211
      %v216 = vrsqrt.pop %v205
      %v217 = vmul.f32 %v216, %v205
      %v218 = vmul.f32 %v217, %v216
      %v219 = vmul.f32 0.5, %v218
      %v220 = vsub.f32 1.5, %v219
      %v221 = vmul.f32 %v216, %v220
      %vm222 = vweird.f32 %v205
      %vm223 = vweird.f32 %v216
      %vm224 = vmor %vm222, %vm223
      %v225 = vsel %vm224, %v216, %v221
      %v226 = vmul.f32 %v192, %v215
      %v227 = vmul.f32 %v193, %v225
      %v228 = vld [vmem:[%s1] sm:$0x1]
      %v230 = vperm.slane %v228, 0
      %v232 = vmul.f32 %v226, %v230
      %v233 = vmul.f32 %v227, %v230
      %v234 = vld [vmem:[%s2] sm:$0x1]
      %v236 = vperm.slane %v234, 0
      %v238 = vadd.f32 %v232, %v236
      %v239 = vadd.f32 %v233, %v236
      %240 = vst.msk [vmem:[%s172] sm:$0xff] %vm176, %v238
      %241 = vst.msk [vmem:[%s172 + $0x8] sm:$0xff] %vm176, %v239
      %s242 = smul.u32 2, %s14
      %p243 = scmp.lt.s32.totalorder %s242, 3
      %s244 = scalar_select %p243, %s242, 3
      %s245 = smul.addr %s244, 8
      %s246 = scalar_lea.vmem %s3, %s245
      // Predicated region
      $region33: #{_lambda_.9} parent=31 // pred_check
        %p247 = pneg %p100
      $region34: #{_lambda_.9} parent=31 // pred_check_branch
        %249 = sbr.rel (%p247) target = $region36
      $region35: #{_lambda_.9} parent=31 // pred_region
        %s250 = smul.u32 2, %s14
      $region36: #{_lambda_.9} parent=31 // pred_fallthru
        _
    $region32: #{_lambda_.9} parent=5 // pred_fallthru
      _
    %p251 = scmp.le.s32.totalorder 2, %s9
    // Predicated region
    $region37: #{_lambda_.9} parent=5 // pred_check
      %p252 = pneg %p251
    $region38: #{_lambda_.9} parent=5 // pred_check_branch
      %254 = sbr.rel (%p252) target = $region40
    $region39: #{_lambda_.9} parent=5 // pred_region
      %s255 = ssub.s32 %s9, 2
      // Predicated region
      $region41: #{_lambda_.9} parent=39 // pred_check
        %p256 = pneg %p106
      $region42: #{_lambda_.9} parent=39 // pred_check_branch
        %258 = sbr.rel (%p256) target = $region44
      $region43: #{_lambda_.9} parent=39 // pred_region
        %s259 = smul.u32 2, %s15
        %p260 = scmp.lt.s32.totalorder %s259, 3
        %s261 = scalar_select %p260, %s259, 3
        %s262 = smul.addr %s261, 8
        %s263 = scalar_lea.vmem %s3, %s262
      $region44: #{_lambda_.9} parent=39 // pred_fallthru
        _
    $region40: #{_lambda_.9} parent=5 // pred_fallthru
      _
  $region6: #{_lambda_.9} parent=0 // loop_footer
    %s13 = sadd.s32 1, %s9
  $region7: #{_lambda_.9} parent=0 // loop_footer_branch
    %8 = sbr.rel target = $region3
  $region8: #{_lambda_.9} parent=0 // loop_exit
    _

// kernel: _lambda_.11
$region0: #{_lambda_.11}
  #allocation0 [shape = 'u32[]', space=smem, size = 0x4, offset = 0x4, fixed_abs, tag = 'smem constant byte address 0x4 - core index']
  #allocation1 [shape = 'u32[72,128]{1,0:T(1,128)}', space=vmem, size = 0x9000, scoped, tag = 'internal scratch']
  %s0 = inlined_call_operand.vmem [shape: bf16[32,32], index: 0, kind: input, shape index: {}]
  %s1 = inlined_call_operand.vmem [shape: bf16[32,32], index: 1, kind: input, shape index: {}]
  %s2 = inlined_call_operand.vmem [shape: f32[1,32], index: 2, kind: input, shape index: {}]
  %s3 = inlined_call_operand.vmem [shape: f32[32,32], index: 3, kind: input, shape index: {}]
  %s4 = inlined_call_operand.vmem [shape: f32[1,32], index: 4, kind: input, shape index: {}]
  %s5 = inlined_call_operand.vmem [shape: f32[1,32], index: 5, kind: input, shape index: {}]
  %s6 = inlined_call_operand.vmem [shape: f32[32,32], index: 6, kind: output, shape index: {}]
  %s7 = sld [smem:[#allocation0]]
  $region57: #{_lambda_.11} parent=0
    _
  %s9 = ssub.s32 1, %s7
  %s10 = scalar_select 0, %s9, %s7
  loop: start=0, step=1, limit=4
  $region2: #{_lambda_.11} parent=0 // loop_pre_header
    _
  $region3: #{_lambda_.11} parent=0 // loop_header
    %s12 = sphi 0, %s16
    %p13 = scmp.ge.s32.totalorder %s12, 4
    %s22 = sphi 0, %s24
    %s25 = sphi 0, %s22
    %s26 = sphi 0, %s25
    %s42 = sphi 0, %s26
    %s46 = sphi 0, %s46
    %s48 = sphi 0, %s46
    %s49 = sphi 0, %s48
    %s63 = sphi 0, %s49
    %s67 = sphi 0, %s67
    %s69 = sphi 0, %s67
    %s70 = sphi 0, %s69
    %s84 = sphi 0, %s70
    %s90 = sphi 0, %s92
    %s93 = sphi 0, %s90
    %s94 = sphi 0, %s93
    %s110 = sphi 0, %s94
    %s114 = sphi 0, %s114
    %s116 = sphi 0, %s114
    %s117 = sphi 0, %s116
    %s131 = sphi 0, %s117
    %s135 = sphi 0, %s135
    %s137 = sphi 0, %s135
    %s138 = sphi 0, %s137
    %s152 = sphi 0, %s138
    %s158 = sphi 0, %s160
    %s161 = sphi 0, %s158
    %s162 = sphi 0, %s161
    %s178 = sphi 0, %s162
  $region4: #{_lambda_.11} parent=0 // loop_header_branch
    %15 = sbr.rel (%p13) target = $region8
  $region5: #{_lambda_.11} parent=0 // loop_body
    %s17 = ssub.s32 %s12, 1
    %s18 = ssub.s32 %s12, 2
    %s19 = sadd.s32 %s12, 1
    %s20 = ssub.s32 %s12, %s19
    %p21 = scmp.eq.s32.totalorder %s20, 0
    %s23 = sadd.s32 %s22, 1
    %s24 = scalar_select %p21, %s22, %s23
    %p27 = pneg %p21
    %p28 = scmp.eq.s32.totalorder %s12, 1
    %p29 = por %p27, %p28
    %p30 = scmp.ne.s32.totalorder %s22, %s25
    %p31 = scmp.eq.s32.totalorder %s12, 0
    %p32 = por %p30, %p31
    %p33 = scmp.ne.s32.totalorder %s22, %s25
    %p34 = scmp.eq.s32.totalorder %s17, 1
    %p35 = por %p33, %p34
    %p36 = scmp.ne.s32.totalorder %s25, %s26
    %p37 = scmp.eq.s32.totalorder %s17, 0
    %p38 = por %p36, %p37
    %p39 = scmp.ne.s32.totalorder %s25, %s26
    %p40 = scmp.eq.s32.totalorder %s18, 1
    %p41 = por %p39, %p40
    %p43 = scmp.ne.s32.totalorder %s26, %s42
    %p44 = scmp.eq.s32.totalorder %s18, 0
    %p45 = por %p43, %p44
    %s47 = sadd.s32 %s46, 1
    %p50 = scmp.eq.s32.totalorder %s12, 1
    %p51 = scmp.ne.s32.totalorder %s46, %s48
    %p52 = scmp.eq.s32.totalorder %s12, 0
    %p53 = por %p51, %p52
    %p54 = scmp.ne.s32.totalorder %s46, %s48
    %p55 = scmp.eq.s32.totalorder %s17, 1
    %p56 = por %p54, %p55
    %p57 = scmp.ne.s32.totalorder %s48, %s49
    %p58 = scmp.eq.s32.totalorder %s17, 0
    %p59 = por %p57, %p58
    %p60 = scmp.ne.s32.totalorder %s48, %s49
    %p61 = scmp.eq.s32.totalorder %s18, 1
    %p62 = por %p60, %p61
    %p64 = scmp.ne.s32.totalorder %s49, %s63
    %p65 = scmp.eq.s32.totalorder %s18, 0
    %p66 = por %p64, %p65
    %s68 = sadd.s32 %s67, 1
    %p71 = scmp.eq.s32.totalorder %s12, 1
    %p72 = scmp.ne.s32.totalorder %s67, %s69
    %p73 = scmp.eq.s32.totalorder %s12, 0
    %p74 = por %p72, %p73
    %p75 = scmp.ne.s32.totalorder %s67, %s69
    %p76 = scmp.eq.s32.totalorder %s17, 1
    %p77 = por %p75, %p76
    %p78 = scmp.ne.s32.totalorder %s69, %s70
    %p79 = scmp.eq.s32.totalorder %s17, 0
    %p80 = por %p78, %p79
    %p81 = scmp.ne.s32.totalorder %s69, %s70
    %p82 = scmp.eq.s32.totalorder %s18, 1
    %p83 = por %p81, %p82
    %p85 = scmp.ne.s32.totalorder %s70, %s84
    %p86 = scmp.eq.s32.totalorder %s18, 0
    %p87 = por %p85, %p86
    %s88 = ssub.s32 %s12, %s19
    %p89 = scmp.eq.s32.totalorder %s88, 0
    %s91 = sadd.s32 %s90, 1
    %s92 = scalar_select %p89, %s90, %s91
    %p95 = pneg %p89
    %p96 = scmp.eq.s32.totalorder %s12, 1
    %p97 = por %p95, %p96
    %p98 = scmp.ne.s32.totalorder %s90, %s93
    %p99 = scmp.eq.s32.totalorder %s12, 0
    %p100 = por %p98, %p99
    %p101 = scmp.ne.s32.totalorder %s90, %s93
    %p102 = scmp.eq.s32.totalorder %s17, 1
    %p103 = por %p101, %p102
    %p104 = scmp.ne.s32.totalorder %s93, %s94
    %p105 = scmp.eq.s32.totalorder %s17, 0
    %p106 = por %p104, %p105
    %p107 = scmp.ne.s32.totalorder %s93, %s94
    %p108 = scmp.eq.s32.totalorder %s18, 1
    %p109 = por %p107, %p108
    %p111 = scmp.ne.s32.totalorder %s94, %s110
    %p112 = scmp.eq.s32.totalorder %s18, 0
    %p113 = por %p111, %p112
    %s115 = sadd.s32 %s114, 1
    %p118 = scmp.eq.s32.totalorder %s12, 1
    %p119 = scmp.ne.s32.totalorder %s114, %s116
    %p120 = scmp.eq.s32.totalorder %s12, 0
    %p121 = por %p119, %p120
    %p122 = scmp.ne.s32.totalorder %s114, %s116
    %p123 = scmp.eq.s32.totalorder %s17, 1
    %p124 = por %p122, %p123
    %p125 = scmp.ne.s32.totalorder %s116, %s117
    %p126 = scmp.eq.s32.totalorder %s17, 0
    %p127 = por %p125, %p126
    %p128 = scmp.ne.s32.totalorder %s116, %s117
    %p129 = scmp.eq.s32.totalorder %s18, 1
    %p130 = por %p128, %p129
    %p132 = scmp.ne.s32.totalorder %s117, %s131
    %p133 = scmp.eq.s32.totalorder %s18, 0
    %p134 = por %p132, %p133
    %s136 = sadd.s32 %s135, 1
    %p139 = scmp.eq.s32.totalorder %s12, 1
    %p140 = scmp.ne.s32.totalorder %s135, %s137
    %p141 = scmp.eq.s32.totalorder %s12, 0
    %p142 = por %p140, %p141
    %p143 = scmp.ne.s32.totalorder %s135, %s137
    %p144 = scmp.eq.s32.totalorder %s17, 1
    %p145 = por %p143, %p144
    %p146 = scmp.ne.s32.totalorder %s137, %s138
    %p147 = scmp.eq.s32.totalorder %s17, 0
    %p148 = por %p146, %p147
    %p149 = scmp.ne.s32.totalorder %s137, %s138
    %p150 = scmp.eq.s32.totalorder %s18, 1
    %p151 = por %p149, %p150
    %p153 = scmp.ne.s32.totalorder %s138, %s152
    %p154 = scmp.eq.s32.totalorder %s18, 0
    %p155 = por %p153, %p154
    %s156 = ssub.s32 %s12, %s19
    %p157 = scmp.eq.s32.totalorder %s156, 0
    %s159 = sadd.s32 %s158, 1
    %s160 = scalar_select %p157, %s158, %s159
    %p163 = pneg %p157
    %p164 = scmp.eq.s32.totalorder %s12, 1
    %p165 = por %p163, %p164
    %p166 = scmp.ne.s32.totalorder %s158, %s161
    %p167 = scmp.eq.s32.totalorder %s12, 0
    %p168 = por %p166, %p167
    %p169 = scmp.ne.s32.totalorder %s158, %s161
    %p170 = scmp.eq.s32.totalorder %s17, 1
    %p171 = por %p169, %p170
    %p172 = scmp.ne.s32.totalorder %s161, %s162
    %p173 = scmp.eq.s32.totalorder %s17, 0
    %p174 = por %p172, %p173
    %p175 = scmp.ne.s32.totalorder %s161, %s162
    %p176 = scmp.eq.s32.totalorder %s18, 1
    %p177 = por %p175, %p176
    %p179 = scmp.ne.s32.totalorder %s162, %s178
    %p180 = scmp.eq.s32.totalorder %s18, 0
    %p181 = por %p179, %p180
    %p182 = scmp.le.s32.totalorder 1, %s12
    %p183 = scmp.lt.s32.totalorder %s12, 3
    %p184 = pnand %p182, %p183
    %p185 = pneg %p184
    // Predicated region
    $region9: #{_lambda_.11} parent=5 // pred_check
      _
    $region10: #{_lambda_.11} parent=5 // pred_check_branch
      %187 = sbr.rel (%p184) target = $region12
    $region11: #{_lambda_.11} parent=5 // pred_region
      %s188 = ssub.s32 %s12, 1
      // Predicated region
      $region13: #{_lambda_.11} parent=11 // pred_check
        %p189 = pneg %p59
      $region14: #{_lambda_.11} parent=11 // pred_check_branch
        %191 = sbr.rel (%p189) target = $region16
      $region15: #{_lambda_.11} parent=11 // pred_region
        _
      $region16: #{_lambda_.11} parent=11 // pred_fallthru
        _
      // Predicated region
      $region17: #{_lambda_.11} parent=11 // pred_check
        %p192 = pneg %p80
      $region18: #{_lambda_.11} parent=11 // pred_check_branch
        %194 = sbr.rel (%p192) target = $region20
      $region19: #{_lambda_.11} parent=11 // pred_region
        _
      $region20: #{_lambda_.11} parent=11 // pred_fallthru
        _
      // Predicated region
      $region21: #{_lambda_.11} parent=11 // pred_check
        %p195 = pneg %p127
      $region22: #{_lambda_.11} parent=11 // pred_check_branch
        %197 = sbr.rel (%p195) target = $region24
      $region23: #{_lambda_.11} parent=11 // pred_region
        _
      $region24: #{_lambda_.11} parent=11 // pred_fallthru
        _
      // Predicated region
      $region25: #{_lambda_.11} parent=11 // pred_check
        %p198 = pneg %p148
      $region26: #{_lambda_.11} parent=11 // pred_check_branch
        %200 = sbr.rel (%p198) target = $region28
      $region27: #{_lambda_.11} parent=11 // pred_region
        _
      $region28: #{_lambda_.11} parent=11 // pred_fallthru
        _
    $region12: #{_lambda_.11} parent=5 // pred_fallthru
      _
    %p201 = scmp.lt.s32.totalorder %s12, 2
    // Predicated region
    $region29: #{_lambda_.11} parent=5 // pred_check
      %p202 = pneg %p201
    $region30: #{_lambda_.11} parent=5 // pred_check_branch
      %204 = sbr.rel (%p202) target = $region32
    $region31: #{_lambda_.11} parent=5 // pred_region
      // Predicated region
      $region33: #{_lambda_.11} parent=31 // pred_check
        %p205 = pneg %p32
      $region34: #{_lambda_.11} parent=31 // pred_check_branch
        %207 = sbr.rel (%p205) target = $region36
      $region35: #{_lambda_.11} parent=31 // pred_region
        %s208 = smul.u32 2, %s12
        %p209 = scmp.lt.s32.totalorder %s208, 3
        %s210 = scalar_select %p209, %s208, 3
        %s211 = smul.addr %s210, 4
        %s212 = scalar_lea.vmem %s0, %s211
        %s213 = smul.u32 2, %s12
      $region36: #{_lambda_.11} parent=31 // pred_fallthru
        _
      // Predicated region
      $region37: #{_lambda_.11} parent=31 // pred_check
        %p214 = pneg %p100
      $region38: #{_lambda_.11} parent=31 // pred_check_branch
        %216 = sbr.rel (%p214) target = $region40
      $region39: #{_lambda_.11} parent=31 // pred_region
        %s217 = smul.u32 2, %s12
        %p218 = scmp.lt.s32.totalorder %s217, 3
        %s219 = scalar_select %p218, %s217, 3
        %s220 = smul.addr %s219, 8
        %s221 = scalar_lea.vmem %s3, %s220
        %s222 = smul.u32 2, %s12
      $region40: #{_lambda_.11} parent=31 // pred_fallthru
        _
    $region32: #{_lambda_.11} parent=5 // pred_fallthru
      _
    %p223 = scmp.le.s32.totalorder 1, %s12
    %p224 = scmp.lt.s32.totalorder %s12, 3
    %p225 = pnand %p223, %p224
    %p226 = pneg %p225
    // Predicated region
    $region41: #{_lambda_.11} parent=5 // pred_check
      _
    $region42: #{_lambda_.11} parent=5 // pred_check_branch
      %228 = sbr.rel (%p225) target = $region44
    $region43: #{_lambda_.11} parent=5 // pred_region
      %s229 = ssub.s32 %s12, 1
      %s230 = smul.u32 2, %s17
      %p231 = scmp.lt.s32.totalorder %s230, 3
      %s232 = scalar_select %p231, %s230, 3
      %s233 = smul.addr %s232, 4
      %s234 = scalar_lea.vmem %s0, %s233
      %p235 = pneg %p38
      %p236 = pneg %p35
      %p237 = pneg %p59
      %p238 = pneg %p56
      %p239 = pneg %p80
      %p240 = pneg %p77
      %s241 = smul.u32 2, %s17
      %p242 = scmp.lt.s32.totalorder %s241, 3
      %s243 = scalar_select %p242, %s241, 3
      %s244 = smul.addr %s243, 8
      %s245 = scalar_lea.vmem %s3, %s244
      %p246 = pneg %p106
      %p247 = pneg %p103
      %p248 = pneg %p127
      %p249 = pneg %p124
      %p250 = pneg %p148
      %p251 = pneg %p145
      %p252 = pneg %p174
      %p253 = pneg %p171
      %s254 = smul.u32 2, %s17
      %p255 = scmp.lt.s32.totalorder %s254, 3
      %s256 = scalar_select %p255, %s254, 3
      %s257 = smul.addr %s256, 8
      %s258 = scalar_lea.vmem %s6, %s257
      %s259 = smul.u32 2, %s17
      %p260 = scmp.lt.s32.totalorder %s259, 3
      %s261 = scalar_select %p260, %s259, 3
      %s262 = smul.addr %s261, 4
      %s263 = scalar_lea.vmem %s0, %s262
      %s264 = smul.u32 2, %s17
      %s265 = smul.u32 2, %s17
      %p266 = scmp.lt.s32.totalorder %s265, 3
      %s267 = scalar_select %p266, %s265, 3
      %s268 = smul.addr %s267, 8
      %s269 = scalar_lea.vmem %s3, %s268
      %s270 = smul.u32 2, %s17
      %s271 = smul.u32 2, %s17
      %p272 = scmp.lt.s32.totalorder %s271, 3
      %s273 = scalar_select %p272, %s271, 3
      %s274 = smul.addr %s273, 8
      %s275 = scalar_lea.vmem %s6, %s274
      %s276 = smul.u32 2, %s17
      %v278 = vld [vmem:[%s263] sm:$0xf]
      %v279 = vld [vmem:[%s263 + $0x4] sm:$0xf]
      %v280 = vld [vmem:[%s1] sm:$0xf]
      %v281 = vld [vmem:[%s1 + $0x4] sm:$0xf]
      %v282 = vld [vmem:[%s1 + $0x8] sm:$0xf]
      %v283 = vld [vmem:[%s1 + $0xc] sm:$0xf]
      %v284 = vld [vmem:[%s2] sm:$0x1]
      %v286 = vperm.slane %v284, 0
      %v290 = vunpack.c.l.b16 %v278
      %v291 = vunpack.c.l.b16 %v279
      %v292 = vpack.c.b16 %v291, %v290
      %v297 = vunpack.c.l.b16 %v280
      %v298 = vunpack.c.l.b16 %v281
      %v299 = vunpack.c.l.b16 %v282
      %v300 = vunpack.c.l.b16 %v283
      %v301 = vpack.c.b16 %v298, %v297
      %v302 = vpack.c.b16 %v300, %v299
      %vm305 = vcmask 261120
      %v307 = vsel %vm305, %v292, 0
      %309 = vmatpush.bf16.msra.mxu0 0
      %310 = vmatpush.bf16.msra.mxu0 0
      %311 = vmatpush.bf16.msra.mxu0 0
      %312 = vmatpush.bf16.msra.mxu0 0
      %313 = vmatpush.bf16.msra.mxu0 0
      %314 = vmatpush.bf16.msra.mxu0 0
      %315 = vmatpush.bf16.msra.mxu0 %v302
      %316 = vmatpush.bf16.msra.mxu0 %v301
      %317 = vmatmul.bf16.gmra.mxu0 %v307
      %v318 = vpop.f32.mrf.mxu0
      %v319 = vadd.f32 %v286, %v318
      %v320 = vpop.f32.mrf.mxu0
      %v321 = vadd.f32 %v286, %v320
      %322 = vdwg.mxu0
      %v323 = vld [vmem:[%s269] sm:$0xff]
      %v324 = vld [vmem:[%s269 + $0x8] sm:$0xff]
      %v325 = vadd.f32 %v319, %v323
      %v326 = vadd.f32 %v321, %v324
      %v327 = vsel %vm305, %v325, 0.0
      %328 = vadd.xlane.f32.xlu0 %v327
      %v329 = vpop.xlane.xlu0 %328
      %v330 = vsel %vm305, %v326, 0.0
      %331 = vadd.xlane.f32.xlu0 %v330
      %v332 = vpop.xlane.xlu0 %331
      %v333 = vrcp.pop 32.0
      %v334 = vmul.f32 32.0, %v333
      %v335 = vsub.f32 1.0, %v334
      %v336 = vmul.f32 %v333, %v335
      %v337 = vadd.f32 %v333, %v336
      %vm338 = vweird.f32 %v333
      %v339 = vsel %vm338, %v333, %v337
      %v340 = vmul.f32 %v329, %v339
      %v341 = vmul.f32 %v332, %v339
      %v342 = vsub.f32 %v325, %v340
      %v343 = vsub.f32 %v326, %v341
      %v344 = vmul.f32 %v342, %v342
      %v345 = vmul.f32 %v343, %v343
      %v346 = vsel %vm305, %v344, 0.0
      %347 = vadd.xlane.f32.xlu0 %v346
      %v348 = vpop.xlane.xlu0 %347
      %v349 = vsel %vm305, %v345, 0.0
      %350 = vadd.xlane.f32.xlu0 %v349
      %v351 = vpop.xlane.xlu0 %350
      %v352 = vmul.f32 %v348, %v339
      %v353 = vmul.f32 %v351, %v339
      %v354 = vadd.f32 %v352, 1e-12
      %v355 = vadd.f32 %v353, 1e-12
      %v356 = vrsqrt.pop %v354
      %v357 = vmul.f32 %v356, %v354
      %v358 = vmul.f32 %v357, %v356
      %v359 = vmul.f32 0.5, %v358
      %v360 = vsub.f32 1.5, %v359
      %v361 = vmul.f32 %v356, %v360
      %vm362 = vweird.f32 %v354
      %vm363 = vweird.f32 %v356
      %vm364 = vmor %vm362, %vm363
      %v365 = vsel %vm364, %v356, %v361
      %v366 = vrsqrt.pop %v355
      %v367 = vmul.f32 %v366, %v355
      %v368 = vmul.f32 %v367, %v366
      %v369 = vmul.f32 0.5, %v368
      %v370 = vsub.f32 1.5, %v369
      %v371 = vmul.f32 %v366, %v370
      %vm372 = vweird.f32 %v355
      %vm373 = vweird.f32 %v366
      %vm374 = vmor %vm372, %vm373
      %v375 = vsel %vm374, %v366, %v371
      %v376 = vmul.f32 %v342, %v365
      %v377 = vmul.f32 %v343, %v375
      %v378 = vld [vmem:[%s4] sm:$0x1]
      %v380 = vperm.slane %v378, 0
      %v382 = vmul.f32 %v376, %v380
      %v383 = vmul.f32 %v377, %v380
      %v384 = vld [vmem:[%s5] sm:$0x1]
      %v386 = vperm.slane %v384, 0
      %v388 = vadd.f32 %v382, %v386
      %v389 = vadd.f32 %v383, %v386
      %390 = vst.msk [vmem:[%s275] sm:$0xff] %vm305, %v388
      %391 = vst.msk [vmem:[%s275 + $0x8] sm:$0xff] %vm305, %v389
      %s392 = smul.u32 2, %s17
      %p393 = scmp.lt.s32.totalorder %s392, 3
      %s394 = scalar_select %p393, %s392, 3
      %s395 = smul.addr %s394, 8
      %s396 = scalar_lea.vmem %s6, %s395
      // Predicated region
      $region45: #{_lambda_.11} parent=43 // pred_check
        %p397 = pneg %p171
      $region46: #{_lambda_.11} parent=43 // pred_check_branch
        %399 = sbr.rel (%p397) target = $region48
      $region47: #{_lambda_.11} parent=43 // pred_region
        %s400 = smul.u32 2, %s17
      $region48: #{_lambda_.11} parent=43 // pred_fallthru
        _
    $region44: #{_lambda_.11} parent=5 // pred_fallthru
      _
    %p401 = scmp.le.s32.totalorder 2, %s12
    // Predicated region
    $region49: #{_lambda_.11} parent=5 // pred_check
      %p402 = pneg %p401
    $region50: #{_lambda_.11} parent=5 // pred_check_branch
      %404 = sbr.rel (%p402) target = $region52
    $region51: #{_lambda_.11} parent=5 // pred_region
      %s405 = ssub.s32 %s12, 2
      // Predicated region
      $region53: #{_lambda_.11} parent=51 // pred_check
        %p406 = pneg %p177
      $region54: #{_lambda_.11} parent=51 // pred_check_branch
        %408 = sbr.rel (%p406) target = $region56
      $region55: #{_lambda_.11} parent=51 // pred_region
        %s409 = smul.u32 2, %s18
        %p410 = scmp.lt.s32.totalorder %s409, 3
        %s411 = scalar_select %p410, %s409, 3
        %s412 = smul.addr %s411, 8
        %s413 = scalar_lea.vmem %s6, %s412
      $region56: #{_lambda_.11} parent=51 // pred_fallthru
        _
    $region52: #{_lambda_.11} parent=5 // pred_fallthru
      _
  $region6: #{_lambda_.11} parent=0 // loop_footer
    %s16 = sadd.s32 1, %s12
  $region7: #{_lambda_.11} parent=0 // loop_footer_branch
    %11 = sbr.rel target = $region3
  $region8: #{_lambda_.11} parent=0 // loop_exit
    _

// kernel: _lambda_.13
$region0: #{_lambda_.13}
  #allocation0 [shape = 'u32[]', space=smem, size = 0x4, offset = 0x4, fixed_abs, tag = 'smem constant byte address 0x4 - core index']
  #allocation1 [shape = 'u32[72,128]{1,0:T(1,128)}', space=vmem, size = 0x9000, scoped, tag = 'internal scratch']
  %s0 = inlined_call_operand.vmem [shape: bf16[32,64], index: 0, kind: input, shape index: {}]
  %s1 = inlined_call_operand.vmem [shape: bf16[64,32], index: 1, kind: input, shape index: {}]
  %s2 = inlined_call_operand.vmem [shape: f32[1,32], index: 2, kind: input, shape index: {}]
  %s3 = inlined_call_operand.vmem [shape: f32[32,32], index: 3, kind: input, shape index: {}]
  %s4 = inlined_call_operand.vmem [shape: f32[1,32], index: 4, kind: input, shape index: {}]
  %s5 = inlined_call_operand.vmem [shape: f32[1,32], index: 5, kind: input, shape index: {}]
  %s6 = inlined_call_operand.vmem [shape: f32[32,32], index: 6, kind: output, shape index: {}]
  %s7 = sld [smem:[#allocation0]]
  $region57: #{_lambda_.13} parent=0
    _
  %s9 = ssub.s32 1, %s7
  %s10 = scalar_select 0, %s9, %s7
  loop: start=0, step=1, limit=4
  $region2: #{_lambda_.13} parent=0 // loop_pre_header
    _
  $region3: #{_lambda_.13} parent=0 // loop_header
    %s12 = sphi 0, %s16
    %p13 = scmp.ge.s32.totalorder %s12, 4
    %s22 = sphi 0, %s24
    %s25 = sphi 0, %s22
    %s26 = sphi 0, %s25
    %s42 = sphi 0, %s26
    %s46 = sphi 0, %s46
    %s48 = sphi 0, %s46
    %s49 = sphi 0, %s48
    %s63 = sphi 0, %s49
    %s67 = sphi 0, %s67
    %s69 = sphi 0, %s67
    %s70 = sphi 0, %s69
    %s84 = sphi 0, %s70
    %s90 = sphi 0, %s92
    %s93 = sphi 0, %s90
    %s94 = sphi 0, %s93
    %s110 = sphi 0, %s94
    %s114 = sphi 0, %s114
    %s116 = sphi 0, %s114
    %s117 = sphi 0, %s116
    %s131 = sphi 0, %s117
    %s135 = sphi 0, %s135
    %s137 = sphi 0, %s135
    %s138 = sphi 0, %s137
    %s152 = sphi 0, %s138
    %s158 = sphi 0, %s160
    %s161 = sphi 0, %s158
    %s162 = sphi 0, %s161
    %s178 = sphi 0, %s162
  $region4: #{_lambda_.13} parent=0 // loop_header_branch
    %15 = sbr.rel (%p13) target = $region8
  $region5: #{_lambda_.13} parent=0 // loop_body
    %s17 = ssub.s32 %s12, 1
    %s18 = ssub.s32 %s12, 2
    %s19 = sadd.s32 %s12, 1
    %s20 = ssub.s32 %s12, %s19
    %p21 = scmp.eq.s32.totalorder %s20, 0
    %s23 = sadd.s32 %s22, 1
    %s24 = scalar_select %p21, %s22, %s23
    %p27 = pneg %p21
    %p28 = scmp.eq.s32.totalorder %s12, 1
    %p29 = por %p27, %p28
    %p30 = scmp.ne.s32.totalorder %s22, %s25
    %p31 = scmp.eq.s32.totalorder %s12, 0
    %p32 = por %p30, %p31
    %p33 = scmp.ne.s32.totalorder %s22, %s25
    %p34 = scmp.eq.s32.totalorder %s17, 1
    %p35 = por %p33, %p34
    %p36 = scmp.ne.s32.totalorder %s25, %s26
    %p37 = scmp.eq.s32.totalorder %s17, 0
    %p38 = por %p36, %p37
    %p39 = scmp.ne.s32.totalorder %s25, %s26
    %p40 = scmp.eq.s32.totalorder %s18, 1
    %p41 = por %p39, %p40
    %p43 = scmp.ne.s32.totalorder %s26, %s42
    %p44 = scmp.eq.s32.totalorder %s18, 0
    %p45 = por %p43, %p44
    %s47 = sadd.s32 %s46, 1
    %p50 = scmp.eq.s32.totalorder %s12, 1
    %p51 = scmp.ne.s32.totalorder %s46, %s48
    %p52 = scmp.eq.s32.totalorder %s12, 0
    %p53 = por %p51, %p52
    %p54 = scmp.ne.s32.totalorder %s46, %s48
    %p55 = scmp.eq.s32.totalorder %s17, 1
    %p56 = por %p54, %p55
    %p57 = scmp.ne.s32.totalorder %s48, %s49
    %p58 = scmp.eq.s32.totalorder %s17, 0
    %p59 = por %p57, %p58
    %p60 = scmp.ne.s32.totalorder %s48, %s49
    %p61 = scmp.eq.s32.totalorder %s18, 1
    %p62 = por %p60, %p61
    %p64 = scmp.ne.s32.totalorder %s49, %s63
    %p65 = scmp.eq.s32.totalorder %s18, 0
    %p66 = por %p64, %p65
    %s68 = sadd.s32 %s67, 1
    %p71 = scmp.eq.s32.totalorder %s12, 1
    %p72 = scmp.ne.s32.totalorder %s67, %s69
    %p73 = scmp.eq.s32.totalorder %s12, 0
    %p74 = por %p72, %p73
    %p75 = scmp.ne.s32.totalorder %s67, %s69
    %p76 = scmp.eq.s32.totalorder %s17, 1
    %p77 = por %p75, %p76
    %p78 = scmp.ne.s32.totalorder %s69, %s70
    %p79 = scmp.eq.s32.totalorder %s17, 0
    %p80 = por %p78, %p79
    %p81 = scmp.ne.s32.totalorder %s69, %s70
    %p82 = scmp.eq.s32.totalorder %s18, 1
    %p83 = por %p81, %p82
    %p85 = scmp.ne.s32.totalorder %s70, %s84
    %p86 = scmp.eq.s32.totalorder %s18, 0
    %p87 = por %p85, %p86
    %s88 = ssub.s32 %s12, %s19
    %p89 = scmp.eq.s32.totalorder %s88, 0
    %s91 = sadd.s32 %s90, 1
    %s92 = scalar_select %p89, %s90, %s91
    %p95 = pneg %p89
    %p96 = scmp.eq.s32.totalorder %s12, 1
    %p97 = por %p95, %p96
    %p98 = scmp.ne.s32.totalorder %s90, %s93
    %p99 = scmp.eq.s32.totalorder %s12, 0
    %p100 = por %p98, %p99
    %p101 = scmp.ne.s32.totalorder %s90, %s93
    %p102 = scmp.eq.s32.totalorder %s17, 1
    %p103 = por %p101, %p102
    %p104 = scmp.ne.s32.totalorder %s93, %s94
    %p105 = scmp.eq.s32.totalorder %s17, 0
    %p106 = por %p104, %p105
    %p107 = scmp.ne.s32.totalorder %s93, %s94
    %p108 = scmp.eq.s32.totalorder %s18, 1
    %p109 = por %p107, %p108
    %p111 = scmp.ne.s32.totalorder %s94, %s110
    %p112 = scmp.eq.s32.totalorder %s18, 0
    %p113 = por %p111, %p112
    %s115 = sadd.s32 %s114, 1
    %p118 = scmp.eq.s32.totalorder %s12, 1
    %p119 = scmp.ne.s32.totalorder %s114, %s116
    %p120 = scmp.eq.s32.totalorder %s12, 0
    %p121 = por %p119, %p120
    %p122 = scmp.ne.s32.totalorder %s114, %s116
    %p123 = scmp.eq.s32.totalorder %s17, 1
    %p124 = por %p122, %p123
    %p125 = scmp.ne.s32.totalorder %s116, %s117
    %p126 = scmp.eq.s32.totalorder %s17, 0
    %p127 = por %p125, %p126
    %p128 = scmp.ne.s32.totalorder %s116, %s117
    %p129 = scmp.eq.s32.totalorder %s18, 1
    %p130 = por %p128, %p129
    %p132 = scmp.ne.s32.totalorder %s117, %s131
    %p133 = scmp.eq.s32.totalorder %s18, 0
    %p134 = por %p132, %p133
    %s136 = sadd.s32 %s135, 1
    %p139 = scmp.eq.s32.totalorder %s12, 1
    %p140 = scmp.ne.s32.totalorder %s135, %s137
    %p141 = scmp.eq.s32.totalorder %s12, 0
    %p142 = por %p140, %p141
    %p143 = scmp.ne.s32.totalorder %s135, %s137
    %p144 = scmp.eq.s32.totalorder %s17, 1
    %p145 = por %p143, %p144
    %p146 = scmp.ne.s32.totalorder %s137, %s138
    %p147 = scmp.eq.s32.totalorder %s17, 0
    %p148 = por %p146, %p147
    %p149 = scmp.ne.s32.totalorder %s137, %s138
    %p150 = scmp.eq.s32.totalorder %s18, 1
    %p151 = por %p149, %p150
    %p153 = scmp.ne.s32.totalorder %s138, %s152
    %p154 = scmp.eq.s32.totalorder %s18, 0
    %p155 = por %p153, %p154
    %s156 = ssub.s32 %s12, %s19
    %p157 = scmp.eq.s32.totalorder %s156, 0
    %s159 = sadd.s32 %s158, 1
    %s160 = scalar_select %p157, %s158, %s159
    %p163 = pneg %p157
    %p164 = scmp.eq.s32.totalorder %s12, 1
    %p165 = por %p163, %p164
    %p166 = scmp.ne.s32.totalorder %s158, %s161
    %p167 = scmp.eq.s32.totalorder %s12, 0
    %p168 = por %p166, %p167
    %p169 = scmp.ne.s32.totalorder %s158, %s161
    %p170 = scmp.eq.s32.totalorder %s17, 1
    %p171 = por %p169, %p170
    %p172 = scmp.ne.s32.totalorder %s161, %s162
    %p173 = scmp.eq.s32.totalorder %s17, 0
    %p174 = por %p172, %p173
    %p175 = scmp.ne.s32.totalorder %s161, %s162
    %p176 = scmp.eq.s32.totalorder %s18, 1
    %p177 = por %p175, %p176
    %p179 = scmp.ne.s32.totalorder %s162, %s178
    %p180 = scmp.eq.s32.totalorder %s18, 0
    %p181 = por %p179, %p180
    %p182 = scmp.le.s32.totalorder 1, %s12
    %p183 = scmp.lt.s32.totalorder %s12, 3
    %p184 = pnand %p182, %p183
    %p185 = pneg %p184
    // Predicated region
    $region9: #{_lambda_.13} parent=5 // pred_check
      _
    $region10: #{_lambda_.13} parent=5 // pred_check_branch
      %187 = sbr.rel (%p184) target = $region12
    $region11: #{_lambda_.13} parent=5 // pred_region
      %s188 = ssub.s32 %s12, 1
      // Predicated region
      $region13: #{_lambda_.13} parent=11 // pred_check
        %p189 = pneg %p59
      $region14: #{_lambda_.13} parent=11 // pred_check_branch
        %191 = sbr.rel (%p189) target = $region16
      $region15: #{_lambda_.13} parent=11 // pred_region
        _
      $region16: #{_lambda_.13} parent=11 // pred_fallthru
        _
      // Predicated region
      $region17: #{_lambda_.13} parent=11 // pred_check
        %p192 = pneg %p80
      $region18: #{_lambda_.13} parent=11 // pred_check_branch
        %194 = sbr.rel (%p192) target = $region20
      $region19: #{_lambda_.13} parent=11 // pred_region
        _
      $region20: #{_lambda_.13} parent=11 // pred_fallthru
        _
      // Predicated region
      $region21: #{_lambda_.13} parent=11 // pred_check
        %p195 = pneg %p127
      $region22: #{_lambda_.13} parent=11 // pred_check_branch
        %197 = sbr.rel (%p195) target = $region24
      $region23: #{_lambda_.13} parent=11 // pred_region
        _
      $region24: #{_lambda_.13} parent=11 // pred_fallthru
        _
      // Predicated region
      $region25: #{_lambda_.13} parent=11 // pred_check
        %p198 = pneg %p148
      $region26: #{_lambda_.13} parent=11 // pred_check_branch
        %200 = sbr.rel (%p198) target = $region28
      $region27: #{_lambda_.13} parent=11 // pred_region
        _
      $region28: #{_lambda_.13} parent=11 // pred_fallthru
        _
    $region12: #{_lambda_.13} parent=5 // pred_fallthru
      _
    %p201 = scmp.lt.s32.totalorder %s12, 2
    // Predicated region
    $region29: #{_lambda_.13} parent=5 // pred_check
      %p202 = pneg %p201
    $region30: #{_lambda_.13} parent=5 // pred_check_branch
      %204 = sbr.rel (%p202) target = $region32
    $region31: #{_lambda_.13} parent=5 // pred_region
      // Predicated region
      $region33: #{_lambda_.13} parent=31 // pred_check
        %p205 = pneg %p32
      $region34: #{_lambda_.13} parent=31 // pred_check_branch
        %207 = sbr.rel (%p205) target = $region36
      $region35: #{_lambda_.13} parent=31 // pred_region
        %s208 = smul.u32 2, %s12
        %p209 = scmp.lt.s32.totalorder %s208, 3
        %s210 = scalar_select %p209, %s208, 3
        %s211 = smul.addr %s210, 4
        %s212 = scalar_lea.vmem %s0, %s211
        %s213 = smul.u32 2, %s12
      $region36: #{_lambda_.13} parent=31 // pred_fallthru
        _
      // Predicated region
      $region37: #{_lambda_.13} parent=31 // pred_check
        %p214 = pneg %p100
      $region38: #{_lambda_.13} parent=31 // pred_check_branch
        %216 = sbr.rel (%p214) target = $region40
      $region39: #{_lambda_.13} parent=31 // pred_region
        %s217 = smul.u32 2, %s12
        %p218 = scmp.lt.s32.totalorder %s217, 3
        %s219 = scalar_select %p218, %s217, 3
        %s220 = smul.addr %s219, 8
        %s221 = scalar_lea.vmem %s3, %s220
        %s222 = smul.u32 2, %s12
      $region40: #{_lambda_.13} parent=31 // pred_fallthru
        _
    $region32: #{_lambda_.13} parent=5 // pred_fallthru
      _
    %p223 = scmp.le.s32.totalorder 1, %s12
    %p224 = scmp.lt.s32.totalorder %s12, 3
    %p225 = pnand %p223, %p224
    %p226 = pneg %p225
    // Predicated region
    $region41: #{_lambda_.13} parent=5 // pred_check
      _
    $region42: #{_lambda_.13} parent=5 // pred_check_branch
      %228 = sbr.rel (%p225) target = $region44
    $region43: #{_lambda_.13} parent=5 // pred_region
      %s229 = ssub.s32 %s12, 1
      %s230 = smul.u32 2, %s17
      %p231 = scmp.lt.s32.totalorder %s230, 3
      %s232 = scalar_select %p231, %s230, 3
      %s233 = smul.addr %s232, 4
      %s234 = scalar_lea.vmem %s0, %s233
      %p235 = pneg %p38
      %p236 = pneg %p35
      %p237 = pneg %p59
      %p238 = pneg %p56
      %p239 = pneg %p80
      %p240 = pneg %p77
      %s241 = smul.u32 2, %s17
      %p242 = scmp.lt.s32.totalorder %s241, 3
      %s243 = scalar_select %p242, %s241, 3
      %s244 = smul.addr %s243, 8
      %s245 = scalar_lea.vmem %s3, %s244
      %p246 = pneg %p106
      %p247 = pneg %p103
      %p248 = pneg %p127
      %p249 = pneg %p124
      %p250 = pneg %p148
      %p251 = pneg %p145
      %p252 = pneg %p174
      %p253 = pneg %p171
      %s254 = smul.u32 2, %s17
      %p255 = scmp.lt.s32.totalorder %s254, 3
      %s256 = scalar_select %p255, %s254, 3
      %s257 = smul.addr %s256, 8
      %s258 = scalar_lea.vmem %s6, %s257
      %s259 = smul.u32 2, %s17
      %p260 = scmp.lt.s32.totalorder %s259, 3
      %s261 = scalar_select %p260, %s259, 3
      %s262 = smul.addr %s261, 4
      %s263 = scalar_lea.vmem %s0, %s262
      %s264 = smul.u32 2, %s17
      %s265 = smul.u32 2, %s17
      %p266 = scmp.lt.s32.totalorder %s265, 3
      %s267 = scalar_select %p266, %s265, 3
      %s268 = smul.addr %s267, 8
      %s269 = scalar_lea.vmem %s3, %s268
      %s270 = smul.u32 2, %s17
      %s271 = smul.u32 2, %s17
      %p272 = scmp.lt.s32.totalorder %s271, 3
      %s273 = scalar_select %p272, %s271, 3
      %s274 = smul.addr %s273, 8
      %s275 = scalar_lea.vmem %s6, %s274
      %s276 = smul.u32 2, %s17
      %v278 = vld [vmem:[%s263] sm:$0xf]
      %v279 = vld [vmem:[%s263 + $0x4] sm:$0xf]
      %v280 = vld [vmem:[%s1] sm:$0xf]
      %v281 = vld [vmem:[%s1 + $0x4] sm:$0xf]
      %v282 = vld [vmem:[%s1 + $0x8] sm:$0xf]
      %v283 = vld [vmem:[%s1 + $0xc] sm:$0xf]
      %v284 = vld [vmem:[%s1 + $0x10] sm:$0xf]
      %v285 = vld [vmem:[%s1 + $0x14] sm:$0xf]
      %v286 = vld [vmem:[%s1 + $0x18] sm:$0xf]
      %v287 = vld [vmem:[%s1 + $0x1c] sm:$0xf]
      %v288 = vld [vmem:[%s2] sm:$0x1]
      %v290 = vperm.slane %v288, 0
      %v294 = vunpack.c.l.b16 %v278
      %v295 = vunpack.c.l.b16 %v279
      %v296 = vpack.c.b16 %v295, %v294
      %v305 = vunpack.c.l.b16 %v280
      %v306 = vunpack.c.l.b16 %v281
      %v307 = vunpack.c.l.b16 %v282
      %v308 = vunpack.c.l.b16 %v283
      %v309 = vunpack.c.l.b16 %v284
      %v310 = vunpack.c.l.b16 %v285
      %v311 = vunpack.c.l.b16 %v286
      %v312 = vunpack.c.l.b16 %v287
      %v313 = vpack.c.b16 %v306, %v305
      %v314 = vpack.c.b16 %v308, %v307
      %v315 = vpack.c.b16 %v310, %v309
      %v316 = vpack.c.b16 %v312, %v311
      %vm321 = vcmask 523264
      %v323 = vsel %vm321, %v296, 0
      %325 = vmatpush.bf16.msra.mxu0 0
      %326 = vmatpush.bf16.msra.mxu0 0
      %327 = vmatpush.bf16.msra.mxu0 0
      %328 = vmatpush.bf16.msra.mxu0 0
      %329 = vmatpush.bf16.msra.mxu0 %v316
      %330 = vmatpush.bf16.msra.mxu0 %v315
      %331 = vmatpush.bf16.msra.mxu0 %v314
      %332 = vmatpush.bf16.msra.mxu0 %v313
      %333 = vmatmul.bf16.gmra.mxu0 %v323
      %v334 = vpop.f32.mrf.mxu0
      %v335 = vadd.f32 %v290, %v334
      %v336 = vpop.f32.mrf.mxu0
      %v337 = vadd.f32 %v290, %v336
      %338 = vdwg.mxu0
      %v339 = vld [vmem:[%s269] sm:$0xff]
      %v340 = vld [vmem:[%s269 + $0x8] sm:$0xff]
      %v341 = vadd.f32 %v335, %v339
      %v342 = vadd.f32 %v337, %v340
      %vm343 = vcmask 261120
      %v344 = vsel %vm343, %v341, 0.0
      %345 = vadd.xlane.f32.xlu0 %v344
      %v346 = vpop.xlane.xlu0 %345
      %v347 = vsel %vm343, %v342, 0.0
      %348 = vadd.xlane.f32.xlu0 %v347
      %v349 = vpop.xlane.xlu0 %348
      %v350 = vrcp.pop 32.0
      %v351 = vmul.f32 32.0, %v350
      %v352 = vsub.f32 1.0, %v351
      %v353 = vmul.f32 %v350, %v352
      %v354 = vadd.f32 %v350, %v353
      %vm355 = vweird.f32 %v350
      %v356 = vsel %vm355, %v350, %v354
      %v357 = vmul.f32 %v346, %v356
      %v358 = vmul.f32 %v349, %v356
      %v359 = vsub.f32 %v341, %v357
      %v360 = vsub.f32 %v342, %v358
      %v361 = vmul.f32 %v359, %v359
      %v362 = vmul.f32 %v360, %v360
      %v363 = vsel %vm343, %v361, 0.0
      %364 = vadd.xlane.f32.xlu0 %v363
      %v365 = vpop.xlane.xlu0 %364
      %v366 = vsel %vm343, %v362, 0.0
      %367 = vadd.xlane.f32.xlu0 %v366
      %v368 = vpop.xlane.xlu0 %367
      %v369 = vmul.f32 %v365, %v356
      %v370 = vmul.f32 %v368, %v356
      %v371 = vadd.f32 %v369, 1e-12
      %v372 = vadd.f32 %v370, 1e-12
      %v373 = vrsqrt.pop %v371
      %v374 = vmul.f32 %v373, %v371
      %v375 = vmul.f32 %v374, %v373
      %v376 = vmul.f32 0.5, %v375
      %v377 = vsub.f32 1.5, %v376
      %v378 = vmul.f32 %v373, %v377
      %vm379 = vweird.f32 %v371
      %vm380 = vweird.f32 %v373
      %vm381 = vmor %vm379, %vm380
      %v382 = vsel %vm381, %v373, %v378
      %v383 = vrsqrt.pop %v372
      %v384 = vmul.f32 %v383, %v372
      %v385 = vmul.f32 %v384, %v383
      %v386 = vmul.f32 0.5, %v385
      %v387 = vsub.f32 1.5, %v386
      %v388 = vmul.f32 %v383, %v387
      %vm389 = vweird.f32 %v372
      %vm390 = vweird.f32 %v383
      %vm391 = vmor %vm389, %vm390
      %v392 = vsel %vm391, %v383, %v388
      %v393 = vmul.f32 %v359, %v382
      %v394 = vmul.f32 %v360, %v392
      %v395 = vld [vmem:[%s4] sm:$0x1]
      %v397 = vperm.slane %v395, 0
      %v399 = vmul.f32 %v393, %v397
      %v400 = vmul.f32 %v394, %v397
      %v401 = vld [vmem:[%s5] sm:$0x1]
      %v403 = vperm.slane %v401, 0
      %v405 = vadd.f32 %v399, %v403
      %v406 = vadd.f32 %v400, %v403
      %407 = vst.msk [vmem:[%s275] sm:$0xff] %vm343, %v405
      %408 = vst.msk [vmem:[%s275 + $0x8] sm:$0xff] %vm343, %v406
      %s409 = smul.u32 2, %s17
      %p410 = scmp.lt.s32.totalorder %s409, 3
      %s411 = scalar_select %p410, %s409, 3
      %s412 = smul.addr %s411, 8
      %s413 = scalar_lea.vmem %s6, %s412
      // Predicated region
      $region45: #{_lambda_.13} parent=43 // pred_check
        %p414 = pneg %p171
      $region46: #{_lambda_.13} parent=43 // pred_check_branch
        %416 = sbr.rel (%p414) target = $region48
      $region47: #{_lambda_.13} parent=43 // pred_region
        %s417 = smul.u32 2, %s17
      $region48: #{_lambda_.13} parent=43 // pred_fallthru
        _
    $region44: #{_lambda_.13} parent=5 // pred_fallthru
      _
    %p418 = scmp.le.s32.totalorder 2, %s12
    // Predicated region
    $region49: #{_lambda_.13} parent=5 // pred_check
      %p419 = pneg %p418
    $region50: #{_lambda_.13} parent=5 // pred_check_branch
      %421 = sbr.rel (%p419) target = $region52
    $region51: #{_lambda_.13} parent=5 // pred_region
      %s422 = ssub.s32 %s12, 2
      // Predicated region
      $region53: #{_lambda_.13} parent=51 // pred_check
        %p423 = pneg %p177
      $region54: #{_lambda_.13} parent=51 // pred_check_branch
        %425 = sbr.rel (%p423) target = $region56
      $region55: #{_lambda_.13} parent=51 // pred_region
        %s426 = smul.u32 2, %s18
        %p427 = scmp.lt.s32.totalorder %s426, 3
        %s428 = scalar_select %p427, %s426, 3
        %s429 = smul.addr %s428, 8
        %s430 = scalar_lea.vmem %s6, %s429
      $region56: #{_lambda_.13} parent=51 // pred_fallthru
        _
    $region52: #{_lambda_.13} parent=5 // pred_fallthru
      _
  $region6: #{_lambda_.13} parent=0 // loop_footer
    %s16 = sadd.s32 1, %s12
  $region7: #{_lambda_.13} parent=0 // loop_footer_branch
    %11 = sbr.rel target = $region3
  $region8: #{_lambda_.13} parent=0 // loop_exit
    _

// kernel: _lambda_.17
$region0: #{_lambda_.17}
  #allocation0 [shape = 'u32[]', space=smem, size = 0x4, offset = 0x4, fixed_abs, tag = 'smem constant byte address 0x4 - core index']
  #allocation1 [shape = 'u32[72,128]{1,0:T(1,128)}', space=vmem, size = 0x9000, scoped, tag = 'internal scratch']
  %s0 = inlined_call_operand.vmem [shape: bf16[32,64], index: 0, kind: input, shape index: {}]
  %s1 = inlined_call_operand.vmem [shape: bf16[64,32], index: 1, kind: input, shape index: {}]
  %s2 = inlined_call_operand.vmem [shape: f32[1,32], index: 2, kind: input, shape index: {}]
  %s3 = inlined_call_operand.vmem [shape: f32[32,32], index: 3, kind: input, shape index: {}]
  %s4 = inlined_call_operand.vmem [shape: f32[1,32], index: 4, kind: input, shape index: {}]
  %s5 = inlined_call_operand.vmem [shape: f32[1,32], index: 5, kind: input, shape index: {}]
  %s6 = inlined_call_operand.vmem [shape: bf16[32,128], index: 6, kind: input, shape index: {}]
  %s7 = inlined_call_operand.vmem [shape: f32[1,128], index: 7, kind: input, shape index: {}]
  %s8 = inlined_call_operand.vmem [shape: f32[32,128], index: 8, kind: output, shape index: {}]
  %s9 = sld [smem:[#allocation0]]
  $region65: #{_lambda_.17} parent=0
    _
  %s11 = ssub.s32 1, %s9
  %s12 = scalar_select 0, %s11, %s9
  loop: start=0, step=1, limit=4
  $region2: #{_lambda_.17} parent=0 // loop_pre_header
    _
  $region3: #{_lambda_.17} parent=0 // loop_header
    %s14 = sphi 0, %s18
    %p15 = scmp.ge.s32.totalorder %s14, 4
    %s24 = sphi 0, %s26
    %s27 = sphi 0, %s24
    %s28 = sphi 0, %s27
    %s44 = sphi 0, %s28
    %s48 = sphi 0, %s48
    %s50 = sphi 0, %s48
    %s51 = sphi 0, %s50
    %s65 = sphi 0, %s51
    %s69 = sphi 0, %s69
    %s71 = sphi 0, %s69
    %s72 = sphi 0, %s71
    %s86 = sphi 0, %s72
    %s92 = sphi 0, %s94
    %s95 = sphi 0, %s92
    %s96 = sphi 0, %s95
    %s112 = sphi 0, %s96
    %s116 = sphi 0, %s116
    %s118 = sphi 0, %s116
    %s119 = sphi 0, %s118
    %s133 = sphi 0, %s119
    %s137 = sphi 0, %s137
    %s139 = sphi 0, %s137
    %s140 = sphi 0, %s139
    %s154 = sphi 0, %s140
    %s158 = sphi 0, %s158
    %s160 = sphi 0, %s158
    %s161 = sphi 0, %s160
    %s175 = sphi 0, %s161
    %s179 = sphi 0, %s179
    %s181 = sphi 0, %s179
    %s182 = sphi 0, %s181
    %s196 = sphi 0, %s182
    %s202 = sphi 0, %s204
    %s205 = sphi 0, %s202
    %s206 = sphi 0, %s205
    %s222 = sphi 0, %s206
  $region4: #{_lambda_.17} parent=0 // loop_header_branch
    %17 = sbr.rel (%p15) target = $region8
  $region5: #{_lambda_.17} parent=0 // loop_body
    %s19 = ssub.s32 %s14, 1
    %s20 = ssub.s32 %s14, 2
    %s21 = sadd.s32 %s14, 1
    %s22 = ssub.s32 %s14, %s21
    %p23 = scmp.eq.s32.totalorder %s22, 0
    %s25 = sadd.s32 %s24, 1
    %s26 = scalar_select %p23, %s24, %s25
    %p29 = pneg %p23
    %p30 = scmp.eq.s32.totalorder %s14, 1
    %p31 = por %p29, %p30
    %p32 = scmp.ne.s32.totalorder %s24, %s27
    %p33 = scmp.eq.s32.totalorder %s14, 0
    %p34 = por %p32, %p33
    %p35 = scmp.ne.s32.totalorder %s24, %s27
    %p36 = scmp.eq.s32.totalorder %s19, 1
    %p37 = por %p35, %p36
    %p38 = scmp.ne.s32.totalorder %s27, %s28
    %p39 = scmp.eq.s32.totalorder %s19, 0
    %p40 = por %p38, %p39
    %p41 = scmp.ne.s32.totalorder %s27, %s28
    %p42 = scmp.eq.s32.totalorder %s20, 1
    %p43 = por %p41, %p42
    %p45 = scmp.ne.s32.totalorder %s28, %s44
    %p46 = scmp.eq.s32.totalorder %s20, 0
    %p47 = por %p45, %p46
    %s49 = sadd.s32 %s48, 1
    %p52 = scmp.eq.s32.totalorder %s14, 1
    %p53 = scmp.ne.s32.totalorder %s48, %s50
    %p54 = scmp.eq.s32.totalorder %s14, 0
    %p55 = por %p53, %p54
    %p56 = scmp.ne.s32.totalorder %s48, %s50
    %p57 = scmp.eq.s32.totalorder %s19, 1
    %p58 = por %p56, %p57
    %p59 = scmp.ne.s32.totalorder %s50, %s51
    %p60 = scmp.eq.s32.totalorder %s19, 0
    %p61 = por %p59, %p60
    %p62 = scmp.ne.s32.totalorder %s50, %s51
    %p63 = scmp.eq.s32.totalorder %s20, 1
    %p64 = por %p62, %p63
    %p66 = scmp.ne.s32.totalorder %s51, %s65
    %p67 = scmp.eq.s32.totalorder %s20, 0
    %p68 = por %p66, %p67
    %s70 = sadd.s32 %s69, 1
    %p73 = scmp.eq.s32.totalorder %s14, 1
    %p74 = scmp.ne.s32.totalorder %s69, %s71
    %p75 = scmp.eq.s32.totalorder %s14, 0
    %p76 = por %p74, %p75
    %p77 = scmp.ne.s32.totalorder %s69, %s71
    %p78 = scmp.eq.s32.totalorder %s19, 1
    %p79 = por %p77, %p78
    %p80 = scmp.ne.s32.totalorder %s71, %s72
    %p81 = scmp.eq.s32.totalorder %s19, 0
    %p82 = por %p80, %p81
    %p83 = scmp.ne.s32.totalorder %s71, %s72
    %p84 = scmp.eq.s32.totalorder %s20, 1
    %p85 = por %p83, %p84
    %p87 = scmp.ne.s32.totalorder %s72, %s86
    %p88 = scmp.eq.s32.totalorder %s20, 0
    %p89 = por %p87, %p88
    %s90 = ssub.s32 %s14, %s21
    %p91 = scmp.eq.s32.totalorder %s90, 0
    %s93 = sadd.s32 %s92, 1
    %s94 = scalar_select %p91, %s92, %s93
    %p97 = pneg %p91
    %p98 = scmp.eq.s32.totalorder %s14, 1
    %p99 = por %p97, %p98
    %p100 = scmp.ne.s32.totalorder %s92, %s95
    %p101 = scmp.eq.s32.totalorder %s14, 0
    %p102 = por %p100, %p101
    %p103 = scmp.ne.s32.totalorder %s92, %s95
    %p104 = scmp.eq.s32.totalorder %s19, 1
    %p105 = por %p103, %p104
    %p106 = scmp.ne.s32.totalorder %s95, %s96
    %p107 = scmp.eq.s32.totalorder %s19, 0
    %p108 = por %p106, %p107
    %p109 = scmp.ne.s32.totalorder %s95, %s96
    %p110 = scmp.eq.s32.totalorder %s20, 1
    %p111 = por %p109, %p110
    %p113 = scmp.ne.s32.totalorder %s96, %s112
    %p114 = scmp.eq.s32.totalorder %s20, 0
    %p115 = por %p113, %p114
    %s117 = sadd.s32 %s116, 1
    %p120 = scmp.eq.s32.totalorder %s14, 1
    %p121 = scmp.ne.s32.totalorder %s116, %s118
    %p122 = scmp.eq.s32.totalorder %s14, 0
    %p123 = por %p121, %p122
    %p124 = scmp.ne.s32.totalorder %s116, %s118
    %p125 = scmp.eq.s32.totalorder %s19, 1
    %p126 = por %p124, %p125
    %p127 = scmp.ne.s32.totalorder %s118, %s119
    %p128 = scmp.eq.s32.totalorder %s19, 0
    %p129 = por %p127, %p128
    %p130 = scmp.ne.s32.totalorder %s118, %s119
    %p131 = scmp.eq.s32.totalorder %s20, 1
    %p132 = por %p130, %p131
    %p134 = scmp.ne.s32.totalorder %s119, %s133
    %p135 = scmp.eq.s32.totalorder %s20, 0
    %p136 = por %p134, %p135
    %s138 = sadd.s32 %s137, 1
    %p141 = scmp.eq.s32.totalorder %s14, 1
    %p142 = scmp.ne.s32.totalorder %s137, %s139
    %p143 = scmp.eq.s32.totalorder %s14, 0
    %p144 = por %p142, %p143
    %p145 = scmp.ne.s32.totalorder %s137, %s139
    %p146 = scmp.eq.s32.totalorder %s19, 1
    %p147 = por %p145, %p146
    %p148 = scmp.ne.s32.totalorder %s139, %s140
    %p149 = scmp.eq.s32.totalorder %s19, 0
    %p150 = por %p148, %p149
    %p151 = scmp.ne.s32.totalorder %s139, %s140
    %p152 = scmp.eq.s32.totalorder %s20, 1
    %p153 = por %p151, %p152
    %p155 = scmp.ne.s32.totalorder %s140, %s154
    %p156 = scmp.eq.s32.totalorder %s20, 0
    %p157 = por %p155, %p156
    %s159 = sadd.s32 %s158, 1
    %p162 = scmp.eq.s32.totalorder %s14, 1
    %p163 = scmp.ne.s32.totalorder %s158, %s160
    %p164 = scmp.eq.s32.totalorder %s14, 0
    %p165 = por %p163, %p164
    %p166 = scmp.ne.s32.totalorder %s158, %s160
    %p167 = scmp.eq.s32.totalorder %s19, 1
    %p168 = por %p166, %p167
    %p169 = scmp.ne.s32.totalorder %s160, %s161
    %p170 = scmp.eq.s32.totalorder %s19, 0
    %p171 = por %p169, %p170
    %p172 = scmp.ne.s32.totalorder %s160, %s161
    %p173 = scmp.eq.s32.totalorder %s20, 1
    %p174 = por %p172, %p173
    %p176 = scmp.ne.s32.totalorder %s161, %s175
    %p177 = scmp.eq.s32.totalorder %s20, 0
    %p178 = por %p176, %p177
    %s180 = sadd.s32 %s179, 1
    %p183 = scmp.eq.s32.totalorder %s14, 1
    %p184 = scmp.ne.s32.totalorder %s179, %s181
    %p185 = scmp.eq.s32.totalorder %s14, 0
    %p186 = por %p184, %p185
    %p187 = scmp.ne.s32.totalorder %s179, %s181
    %p188 = scmp.eq.s32.totalorder %s19, 1
    %p189 = por %p187, %p188
    %p190 = scmp.ne.s32.totalorder %s181, %s182
    %p191 = scmp.eq.s32.totalorder %s19, 0
    %p192 = por %p190, %p191
    %p193 = scmp.ne.s32.totalorder %s181, %s182
    %p194 = scmp.eq.s32.totalorder %s20, 1
    %p195 = por %p193, %p194
    %p197 = scmp.ne.s32.totalorder %s182, %s196
    %p198 = scmp.eq.s32.totalorder %s20, 0
    %p199 = por %p197, %p198
    %s200 = ssub.s32 %s14, %s21
    %p201 = scmp.eq.s32.totalorder %s200, 0
    %s203 = sadd.s32 %s202, 1
    %s204 = scalar_select %p201, %s202, %s203
    %p207 = pneg %p201
    %p208 = scmp.eq.s32.totalorder %s14, 1
    %p209 = por %p207, %p208
    %p210 = scmp.ne.s32.totalorder %s202, %s205
    %p211 = scmp.eq.s32.totalorder %s14, 0
    %p212 = por %p210, %p211
    %p213 = scmp.ne.s32.totalorder %s202, %s205
    %p214 = scmp.eq.s32.totalorder %s19, 1
    %p215 = por %p213, %p214
    %p216 = scmp.ne.s32.totalorder %s205, %s206
    %p217 = scmp.eq.s32.totalorder %s19, 0
    %p218 = por %p216, %p217
    %p219 = scmp.ne.s32.totalorder %s205, %s206
    %p220 = scmp.eq.s32.totalorder %s20, 1
    %p221 = por %p219, %p220
    %p223 = scmp.ne.s32.totalorder %s206, %s222
    %p224 = scmp.eq.s32.totalorder %s20, 0
    %p225 = por %p223, %p224
    %p226 = scmp.le.s32.totalorder 1, %s14
    %p227 = scmp.lt.s32.totalorder %s14, 3
    %p228 = pnand %p226, %p227
    %p229 = pneg %p228
    // Predicated region
    $region9: #{_lambda_.17} parent=5 // pred_check
      _
    $region10: #{_lambda_.17} parent=5 // pred_check_branch
      %231 = sbr.rel (%p228) target = $region12
    $region11: #{_lambda_.17} parent=5 // pred_region
      %s232 = ssub.s32 %s14, 1
      // Predicated region
      $region13: #{_lambda_.17} parent=11 // pred_check
        %p233 = pneg %p61
      $region14: #{_lambda_.17} parent=11 // pred_check_branch
        %235 = sbr.rel (%p233) target = $region16
      $region15: #{_lambda_.17} parent=11 // pred_region
        _
      $region16: #{_lambda_.17} parent=11 // pred_fallthru
        _
      // Predicated region
      $region17: #{_lambda_.17} parent=11 // pred_check
        %p236 = pneg %p82
      $region18: #{_lambda_.17} parent=11 // pred_check_branch
        %238 = sbr.rel (%p236) target = $region20
      $region19: #{_lambda_.17} parent=11 // pred_region
        _
      $region20: #{_lambda_.17} parent=11 // pred_fallthru
        _
      // Predicated region
      $region21: #{_lambda_.17} parent=11 // pred_check
        %p239 = pneg %p129
      $region22: #{_lambda_.17} parent=11 // pred_check_branch
        %241 = sbr.rel (%p239) target = $region24
      $region23: #{_lambda_.17} parent=11 // pred_region
        _
      $region24: #{_lambda_.17} parent=11 // pred_fallthru
        _
      // Predicated region
      $region25: #{_lambda_.17} parent=11 // pred_check
        %p242 = pneg %p150
      $region26: #{_lambda_.17} parent=11 // pred_check_branch
        %244 = sbr.rel (%p242) target = $region28
      $region27: #{_lambda_.17} parent=11 // pred_region
        _
      $region28: #{_lambda_.17} parent=11 // pred_fallthru
        _
      // Predicated region
      $region29: #{_lambda_.17} parent=11 // pred_check
        %p245 = pneg %p171
      $region30: #{_lambda_.17} parent=11 // pred_check_branch
        %247 = sbr.rel (%p245) target = $region32
      $region31: #{_lambda_.17} parent=11 // pred_region
        _
      $region32: #{_lambda_.17} parent=11 // pred_fallthru
        _
      // Predicated region
      $region33: #{_lambda_.17} parent=11 // pred_check
        %p248 = pneg %p192
      $region34: #{_lambda_.17} parent=11 // pred_check_branch
        %250 = sbr.rel (%p248) target = $region36
      $region35: #{_lambda_.17} parent=11 // pred_region
        _
      $region36: #{_lambda_.17} parent=11 // pred_fallthru
        _
    $region12: #{_lambda_.17} parent=5 // pred_fallthru
      _
    %p251 = scmp.lt.s32.totalorder %s14, 2
    // Predicated region
    $region37: #{_lambda_.17} parent=5 // pred_check
      %p252 = pneg %p251
    $region38: #{_lambda_.17} parent=5 // pred_check_branch
      %254 = sbr.rel (%p252) target = $region40
    $region39: #{_lambda_.17} parent=5 // pred_region
      // Predicated region
      $region41: #{_lambda_.17} parent=39 // pred_check
        %p255 = pneg %p34
      $region42: #{_lambda_.17} parent=39 // pred_check_branch
        %257 = sbr.rel (%p255) target = $region44
      $region43: #{_lambda_.17} parent=39 // pred_region
        %s258 = smul.u32 2, %s14
        %p259 = scmp.lt.s32.totalorder %s258, 3
        %s260 = scalar_select %p259, %s258, 3
        %s261 = smul.addr %s260, 4
        %s262 = scalar_lea.vmem %s0, %s261
        %s263 = smul.u32 2, %s14
      $region44: #{_lambda_.17} parent=39 // pred_fallthru
        _
      // Predicated region
      $region45: #{_lambda_.17} parent=39 // pred_check
        %p264 = pneg %p102
      $region46: #{_lambda_.17} parent=39 // pred_check_branch
        %266 = sbr.rel (%p264) target = $region48
      $region47: #{_lambda_.17} parent=39 // pred_region
        %s267 = smul.u32 2, %s14
        %p268 = scmp.lt.s32.totalorder %s267, 3
        %s269 = scalar_select %p268, %s267, 3
        %s270 = smul.addr %s269, 8
        %s271 = scalar_lea.vmem %s3, %s270
        %s272 = smul.u32 2, %s14
      $region48: #{_lambda_.17} parent=39 // pred_fallthru
        _
    $region40: #{_lambda_.17} parent=5 // pred_fallthru
      _
    %p273 = scmp.le.s32.totalorder 1, %s14
    %p274 = scmp.lt.s32.totalorder %s14, 3
    %p275 = pnand %p273, %p274
    %p276 = pneg %p275
    // Predicated region
    $region49: #{_lambda_.17} parent=5 // pred_check
      _
    $region50: #{_lambda_.17} parent=5 // pred_check_branch
      %278 = sbr.rel (%p275) target = $region52
    $region51: #{_lambda_.17} parent=5 // pred_region
      %s279 = ssub.s32 %s14, 1
      %s280 = smul.u32 2, %s19
      %p281 = scmp.lt.s32.totalorder %s280, 3
      %s282 = scalar_select %p281, %s280, 3
      %s283 = smul.addr %s282, 4
      %s284 = scalar_lea.vmem %s0, %s283
      %p285 = pneg %p40
      %p286 = pneg %p37
      %p287 = pneg %p61
      %p288 = pneg %p58
      %p289 = pneg %p82
      %p290 = pneg %p79
      %s291 = smul.u32 2, %s19
      %p292 = scmp.lt.s32.totalorder %s291, 3
      %s293 = scalar_select %p292, %s291, 3
      %s294 = smul.addr %s293, 8
      %s295 = scalar_lea.vmem %s3, %s294
      %p296 = pneg %p108
      %p297 = pneg %p105
      %p298 = pneg %p129
      %p299 = pneg %p126
      %p300 = pneg %p150
      %p301 = pneg %p147
      %p302 = pneg %p171
      %p303 = pneg %p168
      %p304 = pneg %p192
      %p305 = pneg %p189
      %p306 = pneg %p218
      %p307 = pneg %p215
      %s308 = smul.u32 2, %s19
      %p309 = scmp.lt.s32.totalorder %s308, 3
      %s310 = scalar_select %p309, %s308, 3
      %s311 = smul.addr %s310, 8
      %s312 = scalar_lea.vmem %s8, %s311
      %s313 = smul.u32 2, %s19
      %p314 = scmp.lt.s32.totalorder %s313, 3
      %s315 = scalar_select %p314, %s313, 3
      %s316 = smul.addr %s315, 4
      %s317 = scalar_lea.vmem %s0, %s316
      %s318 = smul.u32 2, %s19
      %s319 = smul.u32 2, %s19
      %p320 = scmp.lt.s32.totalorder %s319, 3
      %s321 = scalar_select %p320, %s319, 3
      %s322 = smul.addr %s321, 8
      %s323 = scalar_lea.vmem %s3, %s322
      %s324 = smul.u32 2, %s19
      %s325 = smul.u32 2, %s19
      %p326 = scmp.lt.s32.totalorder %s325, 3
      %s327 = scalar_select %p326, %s325, 3
      %s328 = smul.addr %s327, 8
      %s329 = scalar_lea.vmem %s8, %s328
      %s330 = smul.u32 2, %s19
      %v332 = vld [vmem:[%s317] sm:$0xf]
      %v333 = vld [vmem:[%s317 + $0x4] sm:$0xf]
      %v334 = vld [vmem:[%s1] sm:$0xf]
      %v335 = vld [vmem:[%s1 + $0x4] sm:$0xf]
      %v336 = vld [vmem:[%s1 + $0x8] sm:$0xf]
      %v337 = vld [vmem:[%s1 + $0xc] sm:$0xf]
      %v338 = vld [vmem:[%s1 + $0x10] sm:$0xf]
      %v339 = vld [vmem:[%s1 + $0x14] sm:$0xf]
      %v340 = vld [vmem:[%s1 + $0x18] sm:$0xf]
      %v341 = vld [vmem:[%s1 + $0x1c] sm:$0xf]
      %v342 = vld [vmem:[%s2] sm:$0x1]
      %v344 = vperm.slane %v342, 0
      %v348 = vunpack.c.l.b16 %v332
      %v349 = vunpack.c.l.b16 %v333
      %v350 = vpack.c.b16 %v349, %v348
      %v359 = vunpack.c.l.b16 %v334
      %v360 = vunpack.c.l.b16 %v335
      %v361 = vunpack.c.l.b16 %v336
      %v362 = vunpack.c.l.b16 %v337
      %v363 = vunpack.c.l.b16 %v338
      %v364 = vunpack.c.l.b16 %v339
      %v365 = vunpack.c.l.b16 %v340
      %v366 = vunpack.c.l.b16 %v341
      %v367 = vpack.c.b16 %v360, %v359
      %v368 = vpack.c.b16 %v362, %v361
      %v369 = vpack.c.b16 %v364, %v363
      %v370 = vpack.c.b16 %v366, %v365
      %vm375 = vcmask 523264
      %v377 = vsel %vm375, %v350, 0
      %379 = vmatpush.bf16.msra.mxu0 0
      %380 = vmatpush.bf16.msra.mxu0 0
      %381 = vmatpush.bf16.msra.mxu0 0
      %382 = vmatpush.bf16.msra.mxu0 0
      %383 = vmatpush.bf16.msra.mxu0 %v370
      %384 = vmatpush.bf16.msra.mxu0 %v369
      %385 = vmatpush.bf16.msra.mxu0 %v368
      %386 = vmatpush.bf16.msra.mxu0 %v367
      %387 = vmatmul.bf16.gmra.mxu0 %v377
      %v388 = vpop.f32.mrf.mxu0
      %v389 = vadd.f32 %v344, %v388
      %v390 = vpop.f32.mrf.mxu0
      %v391 = vadd.f32 %v344, %v390
      %392 = vdwg.mxu0
      %v393 = vld [vmem:[%s323] sm:$0xff]
      %v394 = vld [vmem:[%s323 + $0x8] sm:$0xff]
      %v395 = vadd.f32 %v389, %v393
      %v396 = vadd.f32 %v391, %v394
      %vm397 = vcmask 261120
      %v398 = vsel %vm397, %v395, 0.0
      %399 = vadd.xlane.f32.xlu0 %v398
      %v400 = vpop.xlane.xlu0 %399
      %v401 = vsel %vm397, %v396, 0.0
      %402 = vadd.xlane.f32.xlu0 %v401
      %v403 = vpop.xlane.xlu0 %402
      %v404 = vrcp.pop 32.0
      %v405 = vmul.f32 32.0, %v404
      %v406 = vsub.f32 1.0, %v405
      %v407 = vmul.f32 %v404, %v406
      %v408 = vadd.f32 %v404, %v407
      %vm409 = vweird.f32 %v404
      %v410 = vsel %vm409, %v404, %v408
      %v411 = vmul.f32 %v400, %v410
      %v412 = vmul.f32 %v403, %v410
      %v413 = vsub.f32 %v395, %v411
      %v414 = vsub.f32 %v396, %v412
      %v415 = vmul.f32 %v413, %v413
      %v416 = vmul.f32 %v414, %v414
      %v417 = vsel %vm397, %v415, 0.0
      %418 = vadd.xlane.f32.xlu0 %v417
      %v419 = vpop.xlane.xlu0 %418
      %v420 = vsel %vm397, %v416, 0.0
      %421 = vadd.xlane.f32.xlu0 %v420
      %v422 = vpop.xlane.xlu0 %421
      %v423 = vmul.f32 %v419, %v410
      %v424 = vmul.f32 %v422, %v410
      %v425 = vadd.f32 %v423, 1e-12
      %v426 = vadd.f32 %v424, 1e-12
      %v427 = vrsqrt.pop %v425
      %v428 = vmul.f32 %v427, %v425
      %v429 = vmul.f32 %v428, %v427
      %v430 = vmul.f32 0.5, %v429
      %v431 = vsub.f32 1.5, %v430
      %v432 = vmul.f32 %v427, %v431
      %vm433 = vweird.f32 %v425
      %vm434 = vweird.f32 %v427
      %vm435 = vmor %vm433, %vm434
      %v436 = vsel %vm435, %v427, %v432
      %v437 = vrsqrt.pop %v426
      %v438 = vmul.f32 %v437, %v426
      %v439 = vmul.f32 %v438, %v437
      %v440 = vmul.f32 0.5, %v439
      %v441 = vsub.f32 1.5, %v440
      %v442 = vmul.f32 %v437, %v441
      %vm443 = vweird.f32 %v426
      %vm444 = vweird.f32 %v437
      %vm445 = vmor %vm443, %vm444
      %v446 = vsel %vm445, %v437, %v442
      %v447 = vmul.f32 %v413, %v436
      %v448 = vmul.f32 %v414, %v446
      %v449 = vld [vmem:[%s4] sm:$0x1]
      %v451 = vperm.slane %v449, 0
      %v453 = vmul.f32 %v447, %v451
      %v454 = vmul.f32 %v448, %v451
      %v455 = vld [vmem:[%s5] sm:$0x1]
      %v457 = vperm.slane %v455, 0
      %v459 = vadd.f32 %v453, %v457
      %v460 = vadd.f32 %v454, %v457
      %v461 = vpack.c.bf16 %v460, %v459
      %v462 = vld [vmem:[%s6] sm:$0xf]
      %v463 = vld [vmem:[%s6 + $0x4] sm:$0xf]
      %v464 = vld [vmem:[%s6 + $0x8] sm:$0xf]
      %v465 = vld [vmem:[%s6 + $0xc] sm:$0xf]
      %v466 = vld [vmem:[%s7] sm:$0x1]
      %v468 = vperm.slane %v466, 0
      %v474 = vunpack.c.l.b16 %v462
      %v475 = vunpack.c.l.b16 %v463
      %v476 = vunpack.c.l.b16 %v464
      %v477 = vunpack.c.l.b16 %v465
      %v478 = vpack.c.b16 %v475, %v474
      %v479 = vpack.c.b16 %v477, %v476
      %v483 = vsel %vm397, %v461, 0
      %485 = vmatpush.bf16.msra.mxu0 0
      %486 = vmatpush.bf16.msra.mxu0 0
      %487 = vmatpush.bf16.msra.mxu0 0
      %488 = vmatpush.bf16.msra.mxu0 0
      %489 = vmatpush.bf16.msra.mxu0 0
      %490 = vmatpush.bf16.msra.mxu0 0
      %491 = vmatpush.bf16.msra.mxu0 %v479
      %492 = vmatpush.bf16.msra.mxu0 %v478
      %493 = vmatmul.bf16.gmra.mxu0 %v483
      %v494 = vpop.f32.mrf.mxu0
      %v495 = vadd.f32 %v468, %v494
      %v496 = vpop.f32.mrf.mxu0
      %v497 = vadd.f32 %v468, %v496
      %498 = vdwg.mxu0
      %499 = vst [vmem:[%s329] sm:$0xff] %v495
      %500 = vst [vmem:[%s329 + $0x8] sm:$0xff] %v497
      %s501 = smul.u32 2, %s19
      %p502 = scmp.lt.s32.totalorder %s501, 3
      %s503 = scalar_select %p502, %s501, 3
      %s504 = smul.addr %s503, 8
      %s505 = scalar_lea.vmem %s8, %s504
      // Predicated region
      $region53: #{_lambda_.17} parent=51 // pred_check
        %p506 = pneg %p215
      $region54: #{_lambda_.17} parent=51 // pred_check_branch
        %508 = sbr.rel (%p506) target = $region56
      $region55: #{_lambda_.17} parent=51 // pred_region
        %s509 = smul.u32 2, %s19
      $region56: #{_lambda_.17} parent=51 // pred_fallthru
        _
    $region52: #{_lambda_.17} parent=5 // pred_fallthru
      _
    %p510 = scmp.le.s32.totalorder 2, %s14
    // Predicated region
    $region57: #{_lambda_.17} parent=5 // pred_check
      %p511 = pneg %p510
    $region58: #{_lambda_.17} parent=5 // pred_check_branch
      %513 = sbr.rel (%p511) target = $region60
    $region59: #{_lambda_.17} parent=5 // pred_region
      %s514 = ssub.s32 %s14, 2
      // Predicated region
      $region61: #{_lambda_.17} parent=59 // pred_check
        %p515 = pneg %p221
      $region62: #{_lambda_.17} parent=59 // pred_check_branch
        %517 = sbr.rel (%p515) target = $region64
      $region63: #{_lambda_.17} parent=59 // pred_region
        %s518 = smul.u32 2, %s20
        %p519 = scmp.lt.s32.totalorder %s518, 3
        %s520 = scalar_select %p519, %s518, 3
        %s521 = smul.addr %s520, 8
        %s522 = scalar_lea.vmem %s8, %s521
      $region64: #{_lambda_.17} parent=59 // pred_fallthru
        _
    $region60: #{_lambda_.17} parent=5 // pred_fallthru
      _
  $region6: #{_lambda_.17} parent=0 // loop_footer
    %s18 = sadd.s32 1, %s14
  $region7: #{_lambda_.17} parent=0 // loop_footer_branch
    %13 = sbr.rel target = $region3
  $region8: #{_lambda_.17} parent=0 // loop_exit
    _

</llo_original>
